<compile_context>
chip_gen: v5e
topology: v5e:2x2
jax: 0.10.0
libtpu: 0.0.40
codegen_flags: <defaults>
</compile_context>

<pallas_src>
import functools

import numpy as np

import jax
import jax.numpy as jnp
from jax.experimental import pallas as pl
from jax.experimental.pallas import tpu as pltpu


# ------------------------------ fused kernel --------------------------------

def _std_block_kernel(x_ref, masks_ref, sq_w_ref, sq_b_ref, dw_w_ref, dw_b_ref,
                      rs_w_ref, rs_b_ref, *rest, H, W, n_dw, has_expand):
    """One full STDBlock for one batch element, activations resident in VMEM.

    x_ref    : (1, Cin, H*W)  input, spatial on lanes
    masks_ref: (9, H*W)       1.0 where the 3x3 tap is inside the image
    sq_*     : squeeze 1x1    w (mid, Cin),  b (mid, 1)
    dw_*     : dw 3x3 stack   w (n_dw, mid, 9), b (n_dw, mid, 1)
    rs_*     : restore 1x1    w (Cout, mid), b (Cout, 1)
    ex_*     : expand 1x1     w (Cout, Cin), b (Cout, 1)   [only if has_expand]
    o_ref    : (1, Cout, H*W)
    """
    if has_expand:
        ex_w_ref, ex_b_ref, o_ref = rest
    else:
        (o_ref,) = rest
    HW = H * W

    x_in = x_ref[0].astype(jnp.float32)          # (Cin, HW)
    masks = masks_ref[...]                       # (9, HW)

    def pw1x1(x, w_ref, b_ref, relu):
        # y[o, p] = sum_c w[o, c] * x[c, p] + b[o]   (unrolled VPU FMAs)
        cout, cin = w_ref.shape
        w = w_ref[...]
        acc = jnp.zeros((cout, HW), jnp.float32)
        for c in range(cin):
            acc = acc + w[:, c:c + 1] * x[c:c + 1, :]
        acc = acc + b_ref[...]                   # (cout, 1) broadcast over lanes
        return jnp.maximum(acc, 0.0) if relu else acc

    # ---- squeeze: 1x1 conv + folded BN + ReLU ----
    h = pw1x1(x_in, sq_w_ref, sq_b_ref, relu=True)        # (mid, HW)
    mid = sq_w_ref.shape[0]

    # ---- conv1 / conv2: stack of depthwise 3x3 + folded BN + ReLU ----
    for layer in range(n_dw):
        wl = dw_w_ref[layer]                     # (mid, 9)
        bl = dw_b_ref[layer]                     # (mid, 1)
        acc = jnp.zeros((mid, HW), jnp.float32)
        k = 0
        for dy in (-1, 0, 1):
            for dx in (-1, 0, 1):
                s = dy * W + dx                  # flattened source offset
                shifted = pltpu.roll(h, (-s) % HW, axis=1) if s != 0 else h
                acc = acc + (shifted * masks[k:k + 1, :]) * wl[:, k:k + 1]
                k += 1
        h = jnp.maximum(acc + bl, 0.0)

    # ---- restore 1x1 + BN, fused expand branch, residual add, ReLU ----
    y = pw1x1(h, rs_w_ref, rs_b_ref, relu=False)          # (Cout, HW)
    if has_expand:
        identity = pw1x1(x_in, ex_w_ref, ex_b_ref, relu=False)
    else:
        identity = x_in                                   # Cin == Cout here
    o_ref[0] = jnp.maximum(y + identity, 0.0).astype(o_ref.dtype)


# ------------------------------ kernel wrapper -------------------------------

def _make_tap_masks(H, W):
    """(9, H*W) float32 masks: 1.0 where the (dy, dx) tap source is in-bounds."""
    row = np.arange(H)[:, None]
    col = np.arange(W)[None, :]
    masks = []
    for dy in (-1, 0, 1):
        for dx in (-1, 0, 1):
            valid = ((row + dy >= 0) & (row + dy < H) &
                     (col + dx >= 0) & (col + dx < W))
            masks.append(valid.reshape(-1))
    return jnp.asarray(np.stack(masks).astype(np.float32))


def std_block_forward(params, x3, *, H, W):
    """One STDBlock.  x3: (N, Cin, H*W) -> (N, Cout, H*W)."""
    N, Cin, HW = x3.shape
    assert HW == H * W

    sq_w, sq_b = params["squeeze"]               # (mid, Cin), (mid,)
    mid = sq_w.shape[0]
    dw_w = jnp.stack([w.reshape(mid, 9) for (w, _) in params["dw"]])   # (n_dw, mid, 9)
    dw_b = jnp.stack([b for (_, b) in params["dw"]])[..., None]        # (n_dw, mid, 1)
    rs_w, rs_b = params["restore"]               # (Cout, mid), (Cout,)
    Cout = rs_w.shape[0]
    has_expand = params["expand"] is not None
    n_dw = dw_w.shape[0]

    masks = _make_tap_masks(H, W)

    args = [x3, masks, sq_w, sq_b[:, None], dw_w, dw_b, rs_w, rs_b[:, None]]
    in_specs = [
        pl.BlockSpec((1, Cin, HW), lambda n: (n, 0, 0)),
        pl.BlockSpec((9, HW), lambda n: (0, 0)),
        pl.BlockSpec((mid, Cin), lambda n: (0, 0)),
        pl.BlockSpec((mid, 1), lambda n: (0, 0)),
        pl.BlockSpec((n_dw, mid, 9), lambda n: (0, 0, 0)),
        pl.BlockSpec((n_dw, mid, 1), lambda n: (0, 0, 0)),
        pl.BlockSpec((Cout, mid), lambda n: (0, 0)),
        pl.BlockSpec((Cout, 1), lambda n: (0, 0)),
    ]
    if has_expand:
        ex_w, ex_b = params["expand"]            # (Cout, Cin), (Cout,)
        args += [ex_w, ex_b[:, None]]
        in_specs += [
            pl.BlockSpec((Cout, Cin), lambda n: (0, 0)),
            pl.BlockSpec((Cout, 1), lambda n: (0, 0)),
        ]

    kernel = functools.partial(_std_block_kernel, H=H, W=W, n_dw=n_dw,
                               has_expand=has_expand)
    return pl.pallas_call(
        kernel,
        out_shape=jax.ShapeDtypeStruct((N, Cout, HW), x3.dtype),
        grid=(N,),
        in_specs=in_specs,
        out_specs=pl.BlockSpec((1, Cout, HW), lambda n: (n, 0, 0)),
        compiler_params=pltpu.CompilerParams(dimension_semantics=("parallel",)),
    )(*args)


def stdd_block_forward(block_params, x_nchw):
    """STDDBlock forward.  x_nchw: (N, C, H, W) -> (N, Cout, H, W)."""
    N, C, H, W = x_nchw.shape
    x = x_nchw.reshape(N, C, H * W)              # spatial-on-lanes layout, free
    for p in block_params:
        x = std_block_forward(p, x, H=H, W=W)
    return x.reshape(N, x.shape[1], H, W)


# -------------------------- parameter construction ---------------------------

_BN_EPS = 1e-5


def _fold_bn(gamma, beta):
    # fresh BN in eval mode: running_mean = 0, running_var = 1
    scale = gamma / jnp.sqrt(1.0 + _BN_EPS)
    return scale, beta


def make_conv1x1_bn(key, cin, cout):
    kw, kg, kb = jax.random.split(key, 3)
    w = jax.random.normal(kw, (cout, cin), jnp.float32) * 0.2
    gamma = 1.0 + 0.1 * jax.random.normal(kg, (cout,), jnp.float32)
    beta = 0.1 * jax.random.normal(kb, (cout,), jnp.float32)
    scale, bias = _fold_bn(gamma, beta)
    return w * scale[:, None], bias


def make_dw3x3_bn(key, c):
    kw, kg, kb = jax.random.split(key, 3)
    w = jax.random.normal(kw, (c, 3, 3), jnp.float32) * 0.2
    gamma = 1.0 + 0.1 * jax.random.normal(kg, (c,), jnp.float32)
    beta = 0.1 * jax.random.normal(kb, (c,), jnp.float32)
    scale, bias = _fold_bn(gamma, beta)
    return w * scale[:, None, None], bias


def make_std_block_params(key, in_planes, out_planes, k1, k2, reduction=4):
    mid = out_planes // reduction
    n_dw = (k1 // 2) + (k2 // 2)
    keys = jax.random.split(key, 4 + n_dw)
    it = iter(keys)
    return {
        "squeeze": make_conv1x1_bn(next(it), in_planes, mid),
        "dw": [make_dw3x3_bn(next(it), mid) for _ in range(n_dw)],
        "restore": make_conv1x1_bn(next(it), mid, out_planes),
        "expand": (make_conv1x1_bn(next(it), in_planes, out_planes)
                   if in_planes != out_planes else None),
    }


def make_stdd_block_params(key, in_planes, out_planes, kernel_list):
    k1, k2, r = kernel_list
    keys = jax.random.split(key, r)
    blocks = [make_std_block_params(keys[0], in_planes, out_planes, k1, k2)]
    for i in range(1, r):
        blocks.append(make_std_block_params(keys[i], out_planes, out_planes, k1, k2))
    return blocks


# ----------------------------- pure-JAX reference ----------------------------

def _ref_pw(x, w, b):
    # x: (N, C, H, W), w: (O, C), b: (O,)
    return jnp.einsum("oc,nchw->nohw", w, x) + b[None, :, None, None]


def _ref_dw(x, w, b):
    # depthwise 3x3, pad=1.  x: (N, C, H, W), w: (C, 3, 3), b: (C,)
    N, C, H, W = x.shape
    xp = jnp.pad(x, ((0, 0), (0, 0), (1, 1), (1, 1)))
    acc = jnp.zeros_like(x)
    for dy in range(3):
        for dx in range(3):
            acc = acc + xp[:, :, dy:dy + H, dx:dx + W] * w[:, dy, dx][None, :, None, None]
    return acc + b[None, :, None, None]


def std_block_ref(params, x):
    identity = x
    h = jax.nn.relu(_ref_pw(x, *params["squeeze"]))
    for w, b in params["dw"]:
        h = jax.nn.relu(_ref_dw(h, w, b))
    y = _ref_pw(h, *params["restore"])
    if params["expand"] is not None:
        identity = _ref_pw(identity, *params["expand"])
    return jax.nn.relu(y + identity)


def stdd_block_ref(block_params, x):
    for p in block_params:
        x = std_block_ref(p, x)
    return x


# ----------------------------------- main ------------------------------------

if __name__ == "__main__":
    key = jax.random.PRNGKey(0)
    k_x, k_p = jax.random.split(key)

    # STDDBlock(in_planes=4, out_planes=8, kernel_list=(3, 5, 2))
    in_planes, out_planes = 4, 8
    kernel_list = (3, 5, 2)

    x = jax.random.normal(k_x, (2, in_planes, 16, 16), jnp.float32)  # NCHW
    params = make_stdd_block_params(k_p, in_planes, out_planes, kernel_list)

    fwd = jax.jit(stdd_block_forward)
    out = jax.block_until_ready(fwd(params, x))
    assert out.shape == (2, out_planes, 16, 16)

    ref = jax.block_until_ready(stdd_block_ref(params, x))
    np.testing.assert_allclose(np.asarray(out), np.asarray(ref),
                               rtol=1e-3, atol=1e-3)
    print("KERNEL_OK")
</pallas_src>

<mosaic_0001>
module attributes {stable_mosaic.version = 11 : i64} {
  func.func @_std_block_kernel(%arg0: i32, %arg1: memref<1x8x256xf32, #tpu.memory_space<vmem>>, %arg2: memref<9x256xf32, #tpu.memory_space<vmem>>, %arg3: memref<2x8xf32, #tpu.memory_space<vmem>>, %arg4: memref<2x1xf32, #tpu.memory_space<vmem>>, %arg5: memref<3x2x9xf32, #tpu.memory_space<vmem>>, %arg6: memref<3x2x1xf32, #tpu.memory_space<vmem>>, %arg7: memref<8x2xf32, #tpu.memory_space<vmem>>, %arg8: memref<8x1xf32, #tpu.memory_space<vmem>>, %arg9: memref<1x8x256xf32, #tpu.memory_space<vmem>>) attributes {dimension_semantics = [#tpu.dimension_semantics<parallel>], iteration_bounds = array<i64: 2>, scalar_prefetch = 0 : i64, scratch_operands = 0 : i64, tpu.core_type = #tpu.core_type<tc>, window_params = [{transform_indices = @transform_0, window_bounds = array<i64: 1, 8, 256>}, {pipeline_mode = #tpu.pipeline_mode<synchronous>, transform_indices = @transform_1, window_bounds = array<i64: 9, 256>}, {pipeline_mode = #tpu.pipeline_mode<synchronous>, transform_indices = @transform_2, window_bounds = array<i64: 2, 8>}, {pipeline_mode = #tpu.pipeline_mode<synchronous>, transform_indices = @transform_3, window_bounds = array<i64: 2, 1>}, {pipeline_mode = #tpu.pipeline_mode<synchronous>, transform_indices = @transform_4, window_bounds = array<i64: 3, 2, 9>}, {pipeline_mode = #tpu.pipeline_mode<synchronous>, transform_indices = @transform_5, window_bounds = array<i64: 3, 2, 1>}, {pipeline_mode = #tpu.pipeline_mode<synchronous>, transform_indices = @transform_6, window_bounds = array<i64: 8, 2>}, {pipeline_mode = #tpu.pipeline_mode<synchronous>, transform_indices = @transform_7, window_bounds = array<i64: 8, 1>}, {transform_indices = @transform_8, window_bounds = array<i64: 1, 8, 256>}]} {
    %c0 = arith.constant 0 : index
    %c0_0 = arith.constant 0 : index
    %c0_1 = arith.constant 0 : index
    %0 = vector.load %arg1[%c0, %c0_0, %c0_1] : memref<1x8x256xf32, #tpu.memory_space<vmem>>, vector<1x8x256xf32>
    %1 = vector.shape_cast %0 : vector<1x8x256xf32> to vector<8x256xf32>
    %c0_2 = arith.constant 0 : index
    %c0_3 = arith.constant 0 : index
    %2 = vector.load %arg2[%c0_2, %c0_3] : memref<9x256xf32, #tpu.memory_space<vmem>>, vector<9x256xf32>
    %c0_4 = arith.constant 0 : index
    %c0_5 = arith.constant 0 : index
    %3 = vector.load %arg3[%c0_4, %c0_5] : memref<2x8xf32, #tpu.memory_space<vmem>>, vector<2x8xf32>
    %cst = arith.constant 0.000000e+00 : f32
    %4 = vector.broadcast %cst : f32 to vector<2x256xf32>
    %5 = vector.extract_strided_slice %3 {offsets = [0, 0], sizes = [2, 1], strides = [1, 1]} : vector<2x8xf32> to vector<2x1xf32>
    %6 = vector.extract_strided_slice %1 {offsets = [0, 0], sizes = [1, 256], strides = [1, 1]} : vector<8x256xf32> to vector<1x256xf32>
    %7 = vector.broadcast %5 : vector<2x1xf32> to vector<2x256xf32>
    %8 = vector.broadcast %6 : vector<1x256xf32> to vector<2x256xf32>
    %9 = arith.mulf %7, %8 : vector<2x256xf32>
    %10 = arith.addf %4, %9 : vector<2x256xf32>
    %11 = vector.extract_strided_slice %3 {offsets = [0, 1], sizes = [2, 1], strides = [1, 1]} : vector<2x8xf32> to vector<2x1xf32>
    %12 = vector.extract_strided_slice %1 {offsets = [1, 0], sizes = [1, 256], strides = [1, 1]} : vector<8x256xf32> to vector<1x256xf32>
    %13 = vector.broadcast %11 : vector<2x1xf32> to vector<2x256xf32>
    %14 = vector.broadcast %12 : vector<1x256xf32> to vector<2x256xf32>
    %15 = arith.mulf %13, %14 : vector<2x256xf32>
    %16 = arith.addf %10, %15 : vector<2x256xf32>
    %17 = vector.extract_strided_slice %3 {offsets = [0, 2], sizes = [2, 1], strides = [1, 1]} : vector<2x8xf32> to vector<2x1xf32>
    %18 = vector.extract_strided_slice %1 {offsets = [2, 0], sizes = [1, 256], strides = [1, 1]} : vector<8x256xf32> to vector<1x256xf32>
    %19 = vector.broadcast %17 : vector<2x1xf32> to vector<2x256xf32>
    %20 = vector.broadcast %18 : vector<1x256xf32> to vector<2x256xf32>
    %21 = arith.mulf %19, %20 : vector<2x256xf32>
    %22 = arith.addf %16, %21 : vector<2x256xf32>
    %23 = vector.extract_strided_slice %3 {offsets = [0, 3], sizes = [2, 1], strides = [1, 1]} : vector<2x8xf32> to vector<2x1xf32>
    %24 = vector.extract_strided_slice %1 {offsets = [3, 0], sizes = [1, 256], strides = [1, 1]} : vector<8x256xf32> to vector<1x256xf32>
    %25 = vector.broadcast %23 : vector<2x1xf32> to vector<2x256xf32>
    %26 = vector.broadcast %24 : vector<1x256xf32> to vector<2x256xf32>
    %27 = arith.mulf %25, %26 : vector<2x256xf32>
    %28 = arith.addf %22, %27 : vector<2x256xf32>
    %29 = vector.extract_strided_slice %3 {offsets = [0, 4], sizes = [2, 1], strides = [1, 1]} : vector<2x8xf32> to vector<2x1xf32>
    %30 = vector.extract_strided_slice %1 {offsets = [4, 0], sizes = [1, 256], strides = [1, 1]} : vector<8x256xf32> to vector<1x256xf32>
    %31 = vector.broadcast %29 : vector<2x1xf32> to vector<2x256xf32>
    %32 = vector.broadcast %30 : vector<1x256xf32> to vector<2x256xf32>
    %33 = arith.mulf %31, %32 : vector<2x256xf32>
    %34 = arith.addf %28, %33 : vector<2x256xf32>
    %35 = vector.extract_strided_slice %3 {offsets = [0, 5], sizes = [2, 1], strides = [1, 1]} : vector<2x8xf32> to vector<2x1xf32>
    %36 = vector.extract_strided_slice %1 {offsets = [5, 0], sizes = [1, 256], strides = [1, 1]} : vector<8x256xf32> to vector<1x256xf32>
    %37 = vector.broadcast %35 : vector<2x1xf32> to vector<2x256xf32>
    %38 = vector.broadcast %36 : vector<1x256xf32> to vector<2x256xf32>
    %39 = arith.mulf %37, %38 : vector<2x256xf32>
    %40 = arith.addf %34, %39 : vector<2x256xf32>
    %41 = vector.extract_strided_slice %3 {offsets = [0, 6], sizes = [2, 1], strides = [1, 1]} : vector<2x8xf32> to vector<2x1xf32>
    %42 = vector.extract_strided_slice %1 {offsets = [6, 0], sizes = [1, 256], strides = [1, 1]} : vector<8x256xf32> to vector<1x256xf32>
    %43 = vector.broadcast %41 : vector<2x1xf32> to vector<2x256xf32>
    %44 = vector.broadcast %42 : vector<1x256xf32> to vector<2x256xf32>
    %45 = arith.mulf %43, %44 : vector<2x256xf32>
    %46 = arith.addf %40, %45 : vector<2x256xf32>
    %47 = vector.extract_strided_slice %3 {offsets = [0, 7], sizes = [2, 1], strides = [1, 1]} : vector<2x8xf32> to vector<2x1xf32>
    %48 = vector.extract_strided_slice %1 {offsets = [7, 0], sizes = [1, 256], strides = [1, 1]} : vector<8x256xf32> to vector<1x256xf32>
    %49 = vector.broadcast %47 : vector<2x1xf32> to vector<2x256xf32>
    %50 = vector.broadcast %48 : vector<1x256xf32> to vector<2x256xf32>
    %51 = arith.mulf %49, %50 : vector<2x256xf32>
    %52 = arith.addf %46, %51 : vector<2x256xf32>
    %c0_6 = arith.constant 0 : index
    %c0_7 = arith.constant 0 : index
    %53 = vector.load %arg4[%c0_6, %c0_7] : memref<2x1xf32, #tpu.memory_space<vmem>>, vector<2x1xf32>
    %54 = vector.broadcast %53 : vector<2x1xf32> to vector<2x256xf32>
    %55 = arith.addf %52, %54 : vector<2x256xf32>
    %cst_8 = arith.constant 0.000000e+00 : f32
    %56 = vector.broadcast %cst_8 : f32 to vector<2x256xf32>
    %57 = arith.maximumf %55, %56 : vector<2x256xf32>
    %c0_9 = arith.constant 0 : index
    %c0_10 = arith.constant 0 : index
    %c0_11 = arith.constant 0 : index
    %58 = vector.load %arg5[%c0_9, %c0_10, %c0_11] : memref<3x2x9xf32, #tpu.memory_space<vmem>>, vector<1x2x9xf32>
    %59 = vector.shape_cast %58 : vector<1x2x9xf32> to vector<2x9xf32>
    %c0_12 = arith.constant 0 : index
    %c0_13 = arith.constant 0 : index
    %c0_14 = arith.constant 0 : index
    %60 = vector.load %arg6[%c0_12, %c0_13, %c0_14] : memref<3x2x1xf32, #tpu.memory_space<vmem>>, vector<1x2x1xf32>
    %61 = vector.shape_cast %60 : vector<1x2x1xf32> to vector<2x1xf32>
    %cst_15 = arith.constant 0.000000e+00 : f32
    %62 = vector.broadcast %cst_15 : f32 to vector<2x256xf32>
    %c17_i32 = arith.constant 17 : i32
    %63 = tpu.dynamic_rotate %57 by %c17_i32 dim 1 : vector<2x256xf32>, i32 -> vector<2x256xf32>
    %64 = vector.extract_strided_slice %2 {offsets = [0, 0], sizes = [1, 256], strides = [1, 1]} : vector<9x256xf32> to vector<1x256xf32>
    %65 = vector.broadcast %64 : vector<1x256xf32> to vector<2x256xf32>
    %66 = arith.mulf %63, %65 : vector<2x256xf32>
    %67 = vector.extract_strided_slice %59 {offsets = [0, 0], sizes = [2, 1], strides = [1, 1]} : vector<2x9xf32> to vector<2x1xf32>
    %68 = vector.broadcast %67 : vector<2x1xf32> to vector<2x256xf32>
    %69 = arith.mulf %66, %68 : vector<2x256xf32>
    %70 = arith.addf %62, %69 : vector<2x256xf32>
    %c16_i32 = arith.constant 16 : i32
    %71 = tpu.dynamic_rotate %57 by %c16_i32 dim 1 : vector<2x256xf32>, i32 -> vector<2x256xf32>
    %72 = vector.extract_strided_slice %2 {offsets = [1, 0], sizes = [1, 256], strides = [1, 1]} : vector<9x256xf32> to vector<1x256xf32>
    %73 = vector.broadcast %72 : vector<1x256xf32> to vector<2x256xf32>
    %74 = arith.mulf %71, %73 : vector<2x256xf32>
    %75 = vector.extract_strided_slice %59 {offsets = [0, 1], sizes = [2, 1], strides = [1, 1]} : vector<2x9xf32> to vector<2x1xf32>
    %76 = vector.broadcast %75 : vector<2x1xf32> to vector<2x256xf32>
    %77 = arith.mulf %74, %76 : vector<2x256xf32>
    %78 = arith.addf %70, %77 : vector<2x256xf32>
    %c15_i32 = arith.constant 15 : i32
    %79 = tpu.dynamic_rotate %57 by %c15_i32 dim 1 : vector<2x256xf32>, i32 -> vector<2x256xf32>
    %80 = vector.extract_strided_slice %2 {offsets = [2, 0], sizes = [1, 256], strides = [1, 1]} : vector<9x256xf32> to vector<1x256xf32>
    %81 = vector.broadcast %80 : vector<1x256xf32> to vector<2x256xf32>
    %82 = arith.mulf %79, %81 : vector<2x256xf32>
    %83 = vector.extract_strided_slice %59 {offsets = [0, 2], sizes = [2, 1], strides = [1, 1]} : vector<2x9xf32> to vector<2x1xf32>
    %84 = vector.broadcast %83 : vector<2x1xf32> to vector<2x256xf32>
    %85 = arith.mulf %82, %84 : vector<2x256xf32>
    %86 = arith.addf %78, %85 : vector<2x256xf32>
    %c1_i32 = arith.constant 1 : i32
    %87 = tpu.dynamic_rotate %57 by %c1_i32 dim 1 : vector<2x256xf32>, i32 -> vector<2x256xf32>
    %88 = vector.extract_strided_slice %2 {offsets = [3, 0], sizes = [1, 256], strides = [1, 1]} : vector<9x256xf32> to vector<1x256xf32>
    %89 = vector.broadcast %88 : vector<1x256xf32> to vector<2x256xf32>
    %90 = arith.mulf %87, %89 : vector<2x256xf32>
    %91 = vector.extract_strided_slice %59 {offsets = [0, 3], sizes = [2, 1], strides = [1, 1]} : vector<2x9xf32> to vector<2x1xf32>
    %92 = vector.broadcast %91 : vector<2x1xf32> to vector<2x256xf32>
    %93 = arith.mulf %90, %92 : vector<2x256xf32>
    %94 = arith.addf %86, %93 : vector<2x256xf32>
    %95 = vector.extract_strided_slice %2 {offsets = [4, 0], sizes = [1, 256], strides = [1, 1]} : vector<9x256xf32> to vector<1x256xf32>
    %96 = vector.broadcast %95 : vector<1x256xf32> to vector<2x256xf32>
    %97 = arith.mulf %57, %96 : vector<2x256xf32>
    %98 = vector.extract_strided_slice %59 {offsets = [0, 4], sizes = [2, 1], strides = [1, 1]} : vector<2x9xf32> to vector<2x1xf32>
    %99 = vector.broadcast %98 : vector<2x1xf32> to vector<2x256xf32>
    %100 = arith.mulf %97, %99 : vector<2x256xf32>
    %101 = arith.addf %94, %100 : vector<2x256xf32>
    %c255_i32 = arith.constant 255 : i32
    %102 = tpu.dynamic_rotate %57 by %c255_i32 dim 1 : vector<2x256xf32>, i32 -> vector<2x256xf32>
    %103 = vector.extract_strided_slice %2 {offsets = [5, 0], sizes = [1, 256], strides = [1, 1]} : vector<9x256xf32> to vector<1x256xf32>
    %104 = vector.broadcast %103 : vector<1x256xf32> to vector<2x256xf32>
    %105 = arith.mulf %102, %104 : vector<2x256xf32>
    %106 = vector.extract_strided_slice %59 {offsets = [0, 5], sizes = [2, 1], strides = [1, 1]} : vector<2x9xf32> to vector<2x1xf32>
    %107 = vector.broadcast %106 : vector<2x1xf32> to vector<2x256xf32>
    %108 = arith.mulf %105, %107 : vector<2x256xf32>
    %109 = arith.addf %101, %108 : vector<2x256xf32>
    %c241_i32 = arith.constant 241 : i32
    %110 = tpu.dynamic_rotate %57 by %c241_i32 dim 1 : vector<2x256xf32>, i32 -> vector<2x256xf32>
    %111 = vector.extract_strided_slice %2 {offsets = [6, 0], sizes = [1, 256], strides = [1, 1]} : vector<9x256xf32> to vector<1x256xf32>
    %112 = vector.broadcast %111 : vector<1x256xf32> to vector<2x256xf32>
    %113 = arith.mulf %110, %112 : vector<2x256xf32>
    %114 = vector.extract_strided_slice %59 {offsets = [0, 6], sizes = [2, 1], strides = [1, 1]} : vector<2x9xf32> to vector<2x1xf32>
    %115 = vector.broadcast %114 : vector<2x1xf32> to vector<2x256xf32>
    %116 = arith.mulf %113, %115 : vector<2x256xf32>
    %117 = arith.addf %109, %116 : vector<2x256xf32>
    %c240_i32 = arith.constant 240 : i32
    %118 = tpu.dynamic_rotate %57 by %c240_i32 dim 1 : vector<2x256xf32>, i32 -> vector<2x256xf32>
    %119 = vector.extract_strided_slice %2 {offsets = [7, 0], sizes = [1, 256], strides = [1, 1]} : vector<9x256xf32> to vector<1x256xf32>
    %120 = vector.broadcast %119 : vector<1x256xf32> to vector<2x256xf32>
    %121 = arith.mulf %118, %120 : vector<2x256xf32>
    %122 = vector.extract_strided_slice %59 {offsets = [0, 7], sizes = [2, 1], strides = [1, 1]} : vector<2x9xf32> to vector<2x1xf32>
    %123 = vector.broadcast %122 : vector<2x1xf32> to vector<2x256xf32>
    %124 = arith.mulf %121, %123 : vector<2x256xf32>
    %125 = arith.addf %117, %124 : vector<2x256xf32>
    %c239_i32 = arith.constant 239 : i32
    %126 = tpu.dynamic_rotate %57 by %c239_i32 dim 1 : vector<2x256xf32>, i32 -> vector<2x256xf32>
    %127 = vector.extract_strided_slice %2 {offsets = [8, 0], sizes = [1, 256], strides = [1, 1]} : vector<9x256xf32> to vector<1x256xf32>
    %128 = vector.broadcast %127 : vector<1x256xf32> to vector<2x256xf32>
    %129 = arith.mulf %126, %128 : vector<2x256xf32>
    %130 = vector.extract_strided_slice %59 {offsets = [0, 8], sizes = [2, 1], strides = [1, 1]} : vector<2x9xf32> to vector<2x1xf32>
    %131 = vector.broadcast %130 : vector<2x1xf32> to vector<2x256xf32>
    %132 = arith.mulf %129, %131 : vector<2x256xf32>
    %133 = arith.addf %125, %132 : vector<2x256xf32>
    %134 = vector.broadcast %61 : vector<2x1xf32> to vector<2x256xf32>
    %135 = arith.addf %133, %134 : vector<2x256xf32>
    %cst_16 = arith.constant 0.000000e+00 : f32
    %136 = vector.broadcast %cst_16 : f32 to vector<2x256xf32>
    %137 = arith.maximumf %135, %136 : vector<2x256xf32>
    %c1 = arith.constant 1 : index
    %c0_17 = arith.constant 0 : index
    %c0_18 = arith.constant 0 : index
    %138 = vector.load %arg5[%c1, %c0_17, %c0_18] : memref<3x2x9xf32, #tpu.memory_space<vmem>>, vector<1x2x9xf32>
    %139 = vector.shape_cast %138 : vector<1x2x9xf32> to vector<2x9xf32>
    %c1_19 = arith.constant 1 : index
    %c0_20 = arith.constant 0 : index
    %c0_21 = arith.constant 0 : index
    %140 = vector.load %arg6[%c1_19, %c0_20, %c0_21] : memref<3x2x1xf32, #tpu.memory_space<vmem>>, vector<1x2x1xf32>
    %141 = vector.shape_cast %140 : vector<1x2x1xf32> to vector<2x1xf32>
    %cst_22 = arith.constant 0.000000e+00 : f32
    %142 = vector.broadcast %cst_22 : f32 to vector<2x256xf32>
    %c17_i32_23 = arith.constant 17 : i32
    %143 = tpu.dynamic_rotate %137 by %c17_i32_23 dim 1 : vector<2x256xf32>, i32 -> vector<2x256xf32>
    %144 = vector.extract_strided_slice %2 {offsets = [0, 0], sizes = [1, 256], strides = [1, 1]} : vector<9x256xf32> to vector<1x256xf32>
    %145 = vector.broadcast %144 : vector<1x256xf32> to vector<2x256xf32>
    %146 = arith.mulf %143, %145 : vector<2x256xf32>
    %147 = vector.extract_strided_slice %139 {offsets = [0, 0], sizes = [2, 1], strides = [1, 1]} : vector<2x9xf32> to vector<2x1xf32>
    %148 = vector.broadcast %147 : vector<2x1xf32> to vector<2x256xf32>
    %149 = arith.mulf %146, %148 : vector<2x256xf32>
    %150 = arith.addf %142, %149 : vector<2x256xf32>
    %c16_i32_24 = arith.constant 16 : i32
    %151 = tpu.dynamic_rotate %137 by %c16_i32_24 dim 1 : vector<2x256xf32>, i32 -> vector<2x256xf32>
    %152 = vector.extract_strided_slice %2 {offsets = [1, 0], sizes = [1, 256], strides = [1, 1]} : vector<9x256xf32> to vector<1x256xf32>
    %153 = vector.broadcast %152 : vector<1x256xf32> to vector<2x256xf32>
    %154 = arith.mulf %151, %153 : vector<2x256xf32>
    %155 = vector.extract_strided_slice %139 {offsets = [0, 1], sizes = [2, 1], strides = [1, 1]} : vector<2x9xf32> to vector<2x1xf32>
    %156 = vector.broadcast %155 : vector<2x1xf32> to vector<2x256xf32>
    %157 = arith.mulf %154, %156 : vector<2x256xf32>
    %158 = arith.addf %150, %157 : vector<2x256xf32>
    %c15_i32_25 = arith.constant 15 : i32
    %159 = tpu.dynamic_rotate %137 by %c15_i32_25 dim 1 : vector<2x256xf32>, i32 -> vector<2x256xf32>
    %160 = vector.extract_strided_slice %2 {offsets = [2, 0], sizes = [1, 256], strides = [1, 1]} : vector<9x256xf32> to vector<1x256xf32>
    %161 = vector.broadcast %160 : vector<1x256xf32> to vector<2x256xf32>
    %162 = arith.mulf %159, %161 : vector<2x256xf32>
    %163 = vector.extract_strided_slice %139 {offsets = [0, 2], sizes = [2, 1], strides = [1, 1]} : vector<2x9xf32> to vector<2x1xf32>
    %164 = vector.broadcast %163 : vector<2x1xf32> to vector<2x256xf32>
    %165 = arith.mulf %162, %164 : vector<2x256xf32>
    %166 = arith.addf %158, %165 : vector<2x256xf32>
    %c1_i32_26 = arith.constant 1 : i32
    %167 = tpu.dynamic_rotate %137 by %c1_i32_26 dim 1 : vector<2x256xf32>, i32 -> vector<2x256xf32>
    %168 = vector.extract_strided_slice %2 {offsets = [3, 0], sizes = [1, 256], strides = [1, 1]} : vector<9x256xf32> to vector<1x256xf32>
    %169 = vector.broadcast %168 : vector<1x256xf32> to vector<2x256xf32>
    %170 = arith.mulf %167, %169 : vector<2x256xf32>
    %171 = vector.extract_strided_slice %139 {offsets = [0, 3], sizes = [2, 1], strides = [1, 1]} : vector<2x9xf32> to vector<2x1xf32>
    %172 = vector.broadcast %171 : vector<2x1xf32> to vector<2x256xf32>
    %173 = arith.mulf %170, %172 : vector<2x256xf32>
    %174 = arith.addf %166, %173 : vector<2x256xf32>
    %175 = vector.extract_strided_slice %2 {offsets = [4, 0], sizes = [1, 256], strides = [1, 1]} : vector<9x256xf32> to vector<1x256xf32>
    %176 = vector.broadcast %175 : vector<1x256xf32> to vector<2x256xf32>
    %177 = arith.mulf %137, %176 : vector<2x256xf32>
    %178 = vector.extract_strided_slice %139 {offsets = [0, 4], sizes = [2, 1], strides = [1, 1]} : vector<2x9xf32> to vector<2x1xf32>
    %179 = vector.broadcast %178 : vector<2x1xf32> to vector<2x256xf32>
    %180 = arith.mulf %177, %179 : vector<2x256xf32>
    %181 = arith.addf %174, %180 : vector<2x256xf32>
    %c255_i32_27 = arith.constant 255 : i32
    %182 = tpu.dynamic_rotate %137 by %c255_i32_27 dim 1 : vector<2x256xf32>, i32 -> vector<2x256xf32>
    %183 = vector.extract_strided_slice %2 {offsets = [5, 0], sizes = [1, 256], strides = [1, 1]} : vector<9x256xf32> to vector<1x256xf32>
    %184 = vector.broadcast %183 : vector<1x256xf32> to vector<2x256xf32>
    %185 = arith.mulf %182, %184 : vector<2x256xf32>
    %186 = vector.extract_strided_slice %139 {offsets = [0, 5], sizes = [2, 1], strides = [1, 1]} : vector<2x9xf32> to vector<2x1xf32>
    %187 = vector.broadcast %186 : vector<2x1xf32> to vector<2x256xf32>
    %188 = arith.mulf %185, %187 : vector<2x256xf32>
    %189 = arith.addf %181, %188 : vector<2x256xf32>
    %c241_i32_28 = arith.constant 241 : i32
    %190 = tpu.dynamic_rotate %137 by %c241_i32_28 dim 1 : vector<2x256xf32>, i32 -> vector<2x256xf32>
    %191 = vector.extract_strided_slice %2 {offsets = [6, 0], sizes = [1, 256], strides = [1, 1]} : vector<9x256xf32> to vector<1x256xf32>
    %192 = vector.broadcast %191 : vector<1x256xf32> to vector<2x256xf32>
    %193 = arith.mulf %190, %192 : vector<2x256xf32>
    %194 = vector.extract_strided_slice %139 {offsets = [0, 6], sizes = [2, 1], strides = [1, 1]} : vector<2x9xf32> to vector<2x1xf32>
    %195 = vector.broadcast %194 : vector<2x1xf32> to vector<2x256xf32>
    %196 = arith.mulf %193, %195 : vector<2x256xf32>
    %197 = arith.addf %189, %196 : vector<2x256xf32>
    %c240_i32_29 = arith.constant 240 : i32
    %198 = tpu.dynamic_rotate %137 by %c240_i32_29 dim 1 : vector<2x256xf32>, i32 -> vector<2x256xf32>
    %199 = vector.extract_strided_slice %2 {offsets = [7, 0], sizes = [1, 256], strides = [1, 1]} : vector<9x256xf32> to vector<1x256xf32>
    %200 = vector.broadcast %199 : vector<1x256xf32> to vector<2x256xf32>
    %201 = arith.mulf %198, %200 : vector<2x256xf32>
    %202 = vector.extract_strided_slice %139 {offsets = [0, 7], sizes = [2, 1], strides = [1, 1]} : vector<2x9xf32> to vector<2x1xf32>
    %203 = vector.broadcast %202 : vector<2x1xf32> to vector<2x256xf32>
    %204 = arith.mulf %201, %203 : vector<2x256xf32>
    %205 = arith.addf %197, %204 : vector<2x256xf32>
    %c239_i32_30 = arith.constant 239 : i32
    %206 = tpu.dynamic_rotate %137 by %c239_i32_30 dim 1 : vector<2x256xf32>, i32 -> vector<2x256xf32>
    %207 = vector.extract_strided_slice %2 {offsets = [8, 0], sizes = [1, 256], strides = [1, 1]} : vector<9x256xf32> to vector<1x256xf32>
    %208 = vector.broadcast %207 : vector<1x256xf32> to vector<2x256xf32>
    %209 = arith.mulf %206, %208 : vector<2x256xf32>
    %210 = vector.extract_strided_slice %139 {offsets = [0, 8], sizes = [2, 1], strides = [1, 1]} : vector<2x9xf32> to vector<2x1xf32>
    %211 = vector.broadcast %210 : vector<2x1xf32> to vector<2x256xf32>
    %212 = arith.mulf %209, %211 : vector<2x256xf32>
    %213 = arith.addf %205, %212 : vector<2x256xf32>
    %214 = vector.broadcast %141 : vector<2x1xf32> to vector<2x256xf32>
    %215 = arith.addf %213, %214 : vector<2x256xf32>
    %cst_31 = arith.constant 0.000000e+00 : f32
    %216 = vector.broadcast %cst_31 : f32 to vector<2x256xf32>
    %217 = arith.maximumf %215, %216 : vector<2x256xf32>
    %c2 = arith.constant 2 : index
    %c0_32 = arith.constant 0 : index
    %c0_33 = arith.constant 0 : index
    %218 = vector.load %arg5[%c2, %c0_32, %c0_33] : memref<3x2x9xf32, #tpu.memory_space<vmem>>, vector<1x2x9xf32>
    %219 = vector.shape_cast %218 : vector<1x2x9xf32> to vector<2x9xf32>
    %c2_34 = arith.constant 2 : index
    %c0_35 = arith.constant 0 : index
    %c0_36 = arith.constant 0 : index
    %220 = vector.load %arg6[%c2_34, %c0_35, %c0_36] : memref<3x2x1xf32, #tpu.memory_space<vmem>>, vector<1x2x1xf32>
    %221 = vector.shape_cast %220 : vector<1x2x1xf32> to vector<2x1xf32>
    %cst_37 = arith.constant 0.000000e+00 : f32
    %222 = vector.broadcast %cst_37 : f32 to vector<2x256xf32>
    %c17_i32_38 = arith.constant 17 : i32
    %223 = tpu.dynamic_rotate %217 by %c17_i32_38 dim 1 : vector<2x256xf32>, i32 -> vector<2x256xf32>
    %224 = vector.extract_strided_slice %2 {offsets = [0, 0], sizes = [1, 256], strides = [1, 1]} : vector<9x256xf32> to vector<1x256xf32>
    %225 = vector.broadcast %224 : vector<1x256xf32> to vector<2x256xf32>
    %226 = arith.mulf %223, %225 : vector<2x256xf32>
    %227 = vector.extract_strided_slice %219 {offsets = [0, 0], sizes = [2, 1], strides = [1, 1]} : vector<2x9xf32> to vector<2x1xf32>
    %228 = vector.broadcast %227 : vector<2x1xf32> to vector<2x256xf32>
    %229 = arith.mulf %226, %228 : vector<2x256xf32>
    %230 = arith.addf %222, %229 : vector<2x256xf32>
    %c16_i32_39 = arith.constant 16 : i32
    %231 = tpu.dynamic_rotate %217 by %c16_i32_39 dim 1 : vector<2x256xf32>, i32 -> vector<2x256xf32>
    %232 = vector.extract_strided_slice %2 {offsets = [1, 0], sizes = [1, 256], strides = [1, 1]} : vector<9x256xf32> to vector<1x256xf32>
    %233 = vector.broadcast %232 : vector<1x256xf32> to vector<2x256xf32>
    %234 = arith.mulf %231, %233 : vector<2x256xf32>
    %235 = vector.extract_strided_slice %219 {offsets = [0, 1], sizes = [2, 1], strides = [1, 1]} : vector<2x9xf32> to vector<2x1xf32>
    %236 = vector.broadcast %235 : vector<2x1xf32> to vector<2x256xf32>
    %237 = arith.mulf %234, %236 : vector<2x256xf32>
    %238 = arith.addf %230, %237 : vector<2x256xf32>
    %c15_i32_40 = arith.constant 15 : i32
    %239 = tpu.dynamic_rotate %217 by %c15_i32_40 dim 1 : vector<2x256xf32>, i32 -> vector<2x256xf32>
    %240 = vector.extract_strided_slice %2 {offsets = [2, 0], sizes = [1, 256], strides = [1, 1]} : vector<9x256xf32> to vector<1x256xf32>
    %241 = vector.broadcast %240 : vector<1x256xf32> to vector<2x256xf32>
    %242 = arith.mulf %239, %241 : vector<2x256xf32>
    %243 = vector.extract_strided_slice %219 {offsets = [0, 2], sizes = [2, 1], strides = [1, 1]} : vector<2x9xf32> to vector<2x1xf32>
    %244 = vector.broadcast %243 : vector<2x1xf32> to vector<2x256xf32>
    %245 = arith.mulf %242, %244 : vector<2x256xf32>
    %246 = arith.addf %238, %245 : vector<2x256xf32>
    %c1_i32_41 = arith.constant 1 : i32
    %247 = tpu.dynamic_rotate %217 by %c1_i32_41 dim 1 : vector<2x256xf32>, i32 -> vector<2x256xf32>
    %248 = vector.extract_strided_slice %2 {offsets = [3, 0], sizes = [1, 256], strides = [1, 1]} : vector<9x256xf32> to vector<1x256xf32>
    %249 = vector.broadcast %248 : vector<1x256xf32> to vector<2x256xf32>
    %250 = arith.mulf %247, %249 : vector<2x256xf32>
    %251 = vector.extract_strided_slice %219 {offsets = [0, 3], sizes = [2, 1], strides = [1, 1]} : vector<2x9xf32> to vector<2x1xf32>
    %252 = vector.broadcast %251 : vector<2x1xf32> to vector<2x256xf32>
    %253 = arith.mulf %250, %252 : vector<2x256xf32>
    %254 = arith.addf %246, %253 : vector<2x256xf32>
    %255 = vector.extract_strided_slice %2 {offsets = [4, 0], sizes = [1, 256], strides = [1, 1]} : vector<9x256xf32> to vector<1x256xf32>
    %256 = vector.broadcast %255 : vector<1x256xf32> to vector<2x256xf32>
    %257 = arith.mulf %217, %256 : vector<2x256xf32>
    %258 = vector.extract_strided_slice %219 {offsets = [0, 4], sizes = [2, 1], strides = [1, 1]} : vector<2x9xf32> to vector<2x1xf32>
    %259 = vector.broadcast %258 : vector<2x1xf32> to vector<2x256xf32>
    %260 = arith.mulf %257, %259 : vector<2x256xf32>
    %261 = arith.addf %254, %260 : vector<2x256xf32>
    %c255_i32_42 = arith.constant 255 : i32
    %262 = tpu.dynamic_rotate %217 by %c255_i32_42 dim 1 : vector<2x256xf32>, i32 -> vector<2x256xf32>
    %263 = vector.extract_strided_slice %2 {offsets = [5, 0], sizes = [1, 256], strides = [1, 1]} : vector<9x256xf32> to vector<1x256xf32>
    %264 = vector.broadcast %263 : vector<1x256xf32> to vector<2x256xf32>
    %265 = arith.mulf %262, %264 : vector<2x256xf32>
    %266 = vector.extract_strided_slice %219 {offsets = [0, 5], sizes = [2, 1], strides = [1, 1]} : vector<2x9xf32> to vector<2x1xf32>
    %267 = vector.broadcast %266 : vector<2x1xf32> to vector<2x256xf32>
    %268 = arith.mulf %265, %267 : vector<2x256xf32>
    %269 = arith.addf %261, %268 : vector<2x256xf32>
    %c241_i32_43 = arith.constant 241 : i32
    %270 = tpu.dynamic_rotate %217 by %c241_i32_43 dim 1 : vector<2x256xf32>, i32 -> vector<2x256xf32>
    %271 = vector.extract_strided_slice %2 {offsets = [6, 0], sizes = [1, 256], strides = [1, 1]} : vector<9x256xf32> to vector<1x256xf32>
    %272 = vector.broadcast %271 : vector<1x256xf32> to vector<2x256xf32>
    %273 = arith.mulf %270, %272 : vector<2x256xf32>
    %274 = vector.extract_strided_slice %219 {offsets = [0, 6], sizes = [2, 1], strides = [1, 1]} : vector<2x9xf32> to vector<2x1xf32>
    %275 = vector.broadcast %274 : vector<2x1xf32> to vector<2x256xf32>
    %276 = arith.mulf %273, %275 : vector<2x256xf32>
    %277 = arith.addf %269, %276 : vector<2x256xf32>
    %c240_i32_44 = arith.constant 240 : i32
    %278 = tpu.dynamic_rotate %217 by %c240_i32_44 dim 1 : vector<2x256xf32>, i32 -> vector<2x256xf32>
    %279 = vector.extract_strided_slice %2 {offsets = [7, 0], sizes = [1, 256], strides = [1, 1]} : vector<9x256xf32> to vector<1x256xf32>
    %280 = vector.broadcast %279 : vector<1x256xf32> to vector<2x256xf32>
    %281 = arith.mulf %278, %280 : vector<2x256xf32>
    %282 = vector.extract_strided_slice %219 {offsets = [0, 7], sizes = [2, 1], strides = [1, 1]} : vector<2x9xf32> to vector<2x1xf32>
    %283 = vector.broadcast %282 : vector<2x1xf32> to vector<2x256xf32>
    %284 = arith.mulf %281, %283 : vector<2x256xf32>
    %285 = arith.addf %277, %284 : vector<2x256xf32>
    %c239_i32_45 = arith.constant 239 : i32
    %286 = tpu.dynamic_rotate %217 by %c239_i32_45 dim 1 : vector<2x256xf32>, i32 -> vector<2x256xf32>
    %287 = vector.extract_strided_slice %2 {offsets = [8, 0], sizes = [1, 256], strides = [1, 1]} : vector<9x256xf32> to vector<1x256xf32>
    %288 = vector.broadcast %287 : vector<1x256xf32> to vector<2x256xf32>
    %289 = arith.mulf %286, %288 : vector<2x256xf32>
    %290 = vector.extract_strided_slice %219 {offsets = [0, 8], sizes = [2, 1], strides = [1, 1]} : vector<2x9xf32> to vector<2x1xf32>
    %291 = vector.broadcast %290 : vector<2x1xf32> to vector<2x256xf32>
    %292 = arith.mulf %289, %291 : vector<2x256xf32>
    %293 = arith.addf %285, %292 : vector<2x256xf32>
    %294 = vector.broadcast %221 : vector<2x1xf32> to vector<2x256xf32>
    %295 = arith.addf %293, %294 : vector<2x256xf32>
    %cst_46 = arith.constant 0.000000e+00 : f32
    %296 = vector.broadcast %cst_46 : f32 to vector<2x256xf32>
    %297 = arith.maximumf %295, %296 : vector<2x256xf32>
    %c0_47 = arith.constant 0 : index
    %c0_48 = arith.constant 0 : index
    %298 = vector.load %arg7[%c0_47, %c0_48] : memref<8x2xf32, #tpu.memory_space<vmem>>, vector<8x2xf32>
    %cst_49 = arith.constant 0.000000e+00 : f32
    %299 = vector.broadcast %cst_49 : f32 to vector<8x256xf32>
    %300 = vector.extract_strided_slice %298 {offsets = [0, 0], sizes = [8, 1], strides = [1, 1]} : vector<8x2xf32> to vector<8x1xf32>
    %301 = vector.extract_strided_slice %297 {offsets = [0, 0], sizes = [1, 256], strides = [1, 1]} : vector<2x256xf32> to vector<1x256xf32>
    %302 = vector.broadcast %300 : vector<8x1xf32> to vector<8x256xf32>
    %303 = vector.broadcast %301 : vector<1x256xf32> to vector<8x256xf32>
    %304 = arith.mulf %302, %303 : vector<8x256xf32>
    %305 = arith.addf %299, %304 : vector<8x256xf32>
    %306 = vector.extract_strided_slice %298 {offsets = [0, 1], sizes = [8, 1], strides = [1, 1]} : vector<8x2xf32> to vector<8x1xf32>
    %307 = vector.extract_strided_slice %297 {offsets = [1, 0], sizes = [1, 256], strides = [1, 1]} : vector<2x256xf32> to vector<1x256xf32>
    %308 = vector.broadcast %306 : vector<8x1xf32> to vector<8x256xf32>
    %309 = vector.broadcast %307 : vector<1x256xf32> to vector<8x256xf32>
    %310 = arith.mulf %308, %309 : vector<8x256xf32>
    %311 = arith.addf %305, %310 : vector<8x256xf32>
    %c0_50 = arith.constant 0 : index
    %c0_51 = arith.constant 0 : index
    %312 = vector.load %arg8[%c0_50, %c0_51] : memref<8x1xf32, #tpu.memory_space<vmem>>, vector<8x1xf32>
    %313 = vector.broadcast %312 : vector<8x1xf32> to vector<8x256xf32>
    %314 = arith.addf %311, %313 : vector<8x256xf32>
    %315 = arith.addf %314, %1 : vector<8x256xf32>
    %cst_52 = arith.constant 0.000000e+00 : f32
    %316 = vector.broadcast %cst_52 : f32 to vector<8x256xf32>
    %317 = arith.maximumf %315, %316 : vector<8x256xf32>
    %c0_53 = arith.constant 0 : index
    %c0_54 = arith.constant 0 : index
    %c0_55 = arith.constant 0 : index
    %318 = vector.load %arg9[%c0_53, %c0_54, %c0_55] : memref<1x8x256xf32, #tpu.memory_space<vmem>>, vector<1x8x256xf32>
    %319 = vector.shape_cast %318 : vector<1x8x256xf32> to vector<8x256xf32>
    %320 = vector.shape_cast %317 : vector<8x256xf32> to vector<1x8x256xf32>
    tpu.vector_store %arg9[%c0_53, %c0_54, %c0_55], %320 {strides = array<i32>} : memref<1x8x256xf32, #tpu.memory_space<vmem>>, vector<1x8x256xf32>,
    return
  }
  func.func @transform_0(%arg0: i32) -> (i32, i32, i32) {
    %c0_i32 = arith.constant 0 : i32
    %c0_i32_0 = arith.constant 0 : i32
    %c0_i32_1 = arith.constant 0 : i32
    return %arg0, %c0_i32, %c0_i32_0 : i32, i32, i32
  }
  func.func @transform_1(%arg0: i32) -> (i32, i32) {
    %c0_i32 = arith.constant 0 : i32
    %c0_i32_0 = arith.constant 0 : i32
    %c0_i32_1 = arith.constant 0 : i32
    return %c0_i32, %c0_i32_0 : i32, i32
  }
  func.func @transform_2(%arg0: i32) -> (i32, i32) {
    %c0_i32 = arith.constant 0 : i32
    %c0_i32_0 = arith.constant 0 : i32
    %c0_i32_1 = arith.constant 0 : i32
    return %c0_i32, %c0_i32_0 : i32, i32
  }
  func.func @transform_3(%arg0: i32) -> (i32, i32) {
    %c0_i32 = arith.constant 0 : i32
    %c0_i32_0 = arith.constant 0 : i32
    %c0_i32_1 = arith.constant 0 : i32
    return %c0_i32, %c0_i32_0 : i32, i32
  }
  func.func @transform_4(%arg0: i32) -> (i32, i32, i32) {
    %c0_i32 = arith.constant 0 : i32
    %c0_i32_0 = arith.constant 0 : i32
    %c0_i32_1 = arith.constant 0 : i32
    %c0_i32_2 = arith.constant 0 : i32
    return %c0_i32, %c0_i32_0, %c0_i32_1 : i32, i32, i32
  }
  func.func @transform_5(%arg0: i32) -> (i32, i32, i32) {
    %c0_i32 = arith.constant 0 : i32
    %c0_i32_0 = arith.constant 0 : i32
    %c0_i32_1 = arith.constant 0 : i32
    %c0_i32_2 = arith.constant 0 : i32
    return %c0_i32, %c0_i32_0, %c0_i32_1 : i32, i32, i32
  }
  func.func @transform_6(%arg0: i32) -> (i32, i32) {
    %c0_i32 = arith.constant 0 : i32
    %c0_i32_0 = arith.constant 0 : i32
    %c0_i32_1 = arith.constant 0 : i32
    return %c0_i32, %c0_i32_0 : i32, i32
  }
  func.func @transform_7(%arg0: i32) -> (i32, i32) {
    %c0_i32 = arith.constant 0 : i32
    %c0_i32_0 = arith.constant 0 : i32
    %c0_i32_1 = arith.constant 0 : i32
    return %c0_i32, %c0_i32_0 : i32, i32
  }
  func.func @transform_8(%arg0: i32) -> (i32, i32, i32) {
    %c0_i32 = arith.constant 0 : i32
    %c0_i32_0 = arith.constant 0 : i32
    %c0_i32_1 = arith.constant 0 : i32
    return %arg0, %c0_i32, %c0_i32_0 : i32, i32, i32
  }
}

module attributes {stable_mosaic.version = 11 : i64} {
  func.func @_std_block_kernel(%arg0: i32, %arg1: memref<1x4x256xf32, #tpu.memory_space<vmem>>, %arg2: memref<9x256xf32, #tpu.memory_space<vmem>>, %arg3: memref<2x4xf32, #tpu.memory_space<vmem>>, %arg4: memref<2x1xf32, #tpu.memory_space<vmem>>, %arg5: memref<3x2x9xf32, #tpu.memory_space<vmem>>, %arg6: memref<3x2x1xf32, #tpu.memory_space<vmem>>, %arg7: memref<8x2xf32, #tpu.memory_space<vmem>>, %arg8: memref<8x1xf32, #tpu.memory_space<vmem>>, %arg9: memref<8x4xf32, #tpu.memory_space<vmem>>, %arg10: memref<8x1xf32, #tpu.memory_space<vmem>>, %arg11: memref<1x8x256xf32, #tpu.memory_space<vmem>>) attributes {dimension_semantics = [#tpu.dimension_semantics<parallel>], iteration_bounds = array<i64: 2>, scalar_prefetch = 0 : i64, scratch_operands = 0 : i64, tpu.core_type = #tpu.core_type<tc>, window_params = [{transform_indices = @transform_0, window_bounds = array<i64: 1, 4, 256>}, {pipeline_mode = #tpu.pipeline_mode<synchronous>, transform_indices = @transform_1, window_bounds = array<i64: 9, 256>}, {pipeline_mode = #tpu.pipeline_mode<synchronous>, transform_indices = @transform_2, window_bounds = array<i64: 2, 4>}, {pipeline_mode = #tpu.pipeline_mode<synchronous>, transform_indices = @transform_3, window_bounds = array<i64: 2, 1>}, {pipeline_mode = #tpu.pipeline_mode<synchronous>, transform_indices = @transform_4, window_bounds = array<i64: 3, 2, 9>}, {pipeline_mode = #tpu.pipeline_mode<synchronous>, transform_indices = @transform_5, window_bounds = array<i64: 3, 2, 1>}, {pipeline_mode = #tpu.pipeline_mode<synchronous>, transform_indices = @transform_6, window_bounds = array<i64: 8, 2>}, {pipeline_mode = #tpu.pipeline_mode<synchronous>, transform_indices = @transform_7, window_bounds = array<i64: 8, 1>}, {pipeline_mode = #tpu.pipeline_mode<synchronous>, transform_indices = @transform_8, window_bounds = array<i64: 8, 4>}, {pipeline_mode = #tpu.pipeline_mode<synchronous>, transform_indices = @transform_9, window_bounds = array<i64: 8, 1>}, {transform_indices = @transform_10, window_bounds = array<i64: 1, 8, 256>}]} {
    %c0 = arith.constant 0 : index
    %c0_0 = arith.constant 0 : index
    %c0_1 = arith.constant 0 : index
    %0 = vector.load %arg1[%c0, %c0_0, %c0_1] : memref<1x4x256xf32, #tpu.memory_space<vmem>>, vector<1x4x256xf32>
    %1 = vector.shape_cast %0 : vector<1x4x256xf32> to vector<4x256xf32>
    %c0_2 = arith.constant 0 : index
    %c0_3 = arith.constant 0 : index
    %2 = vector.load %arg2[%c0_2, %c0_3] : memref<9x256xf32, #tpu.memory_space<vmem>>, vector<9x256xf32>
    %c0_4 = arith.constant 0 : index
    %c0_5 = arith.constant 0 : index
    %3 = vector.load %arg3[%c0_4, %c0_5] : memref<2x4xf32, #tpu.memory_space<vmem>>, vector<2x4xf32>
    %cst = arith.constant 0.000000e+00 : f32
    %4 = vector.broadcast %cst : f32 to vector<2x256xf32>
    %5 = vector.extract_strided_slice %3 {offsets = [0, 0], sizes = [2, 1], strides = [1, 1]} : vector<2x4xf32> to vector<2x1xf32>
    %6 = vector.extract_strided_slice %1 {offsets = [0, 0], sizes = [1, 256], strides = [1, 1]} : vector<4x256xf32> to vector<1x256xf32>
    %7 = vector.broadcast %5 : vector<2x1xf32> to vector<2x256xf32>
    %8 = vector.broadcast %6 : vector<1x256xf32> to vector<2x256xf32>
    %9 = arith.mulf %7, %8 : vector<2x256xf32>
    %10 = arith.addf %4, %9 : vector<2x256xf32>
    %11 = vector.extract_strided_slice %3 {offsets = [0, 1], sizes = [2, 1], strides = [1, 1]} : vector<2x4xf32> to vector<2x1xf32>
    %12 = vector.extract_strided_slice %1 {offsets = [1, 0], sizes = [1, 256], strides = [1, 1]} : vector<4x256xf32> to vector<1x256xf32>
    %13 = vector.broadcast %11 : vector<2x1xf32> to vector<2x256xf32>
    %14 = vector.broadcast %12 : vector<1x256xf32> to vector<2x256xf32>
    %15 = arith.mulf %13, %14 : vector<2x256xf32>
    %16 = arith.addf %10, %15 : vector<2x256xf32>
    %17 = vector.extract_strided_slice %3 {offsets = [0, 2], sizes = [2, 1], strides = [1, 1]} : vector<2x4xf32> to vector<2x1xf32>
    %18 = vector.extract_strided_slice %1 {offsets = [2, 0], sizes = [1, 256], strides = [1, 1]} : vector<4x256xf32> to vector<1x256xf32>
    %19 = vector.broadcast %17 : vector<2x1xf32> to vector<2x256xf32>
    %20 = vector.broadcast %18 : vector<1x256xf32> to vector<2x256xf32>
    %21 = arith.mulf %19, %20 : vector<2x256xf32>
    %22 = arith.addf %16, %21 : vector<2x256xf32>
    %23 = vector.extract_strided_slice %3 {offsets = [0, 3], sizes = [2, 1], strides = [1, 1]} : vector<2x4xf32> to vector<2x1xf32>
    %24 = vector.extract_strided_slice %1 {offsets = [3, 0], sizes = [1, 256], strides = [1, 1]} : vector<4x256xf32> to vector<1x256xf32>
    %25 = vector.broadcast %23 : vector<2x1xf32> to vector<2x256xf32>
    %26 = vector.broadcast %24 : vector<1x256xf32> to vector<2x256xf32>
    %27 = arith.mulf %25, %26 : vector<2x256xf32>
    %28 = arith.addf %22, %27 : vector<2x256xf32>
    %c0_6 = arith.constant 0 : index
    %c0_7 = arith.constant 0 : index
    %29 = vector.load %arg4[%c0_6, %c0_7] : memref<2x1xf32, #tpu.memory_space<vmem>>, vector<2x1xf32>
    %30 = vector.broadcast %29 : vector<2x1xf32> to vector<2x256xf32>
    %31 = arith.addf %28, %30 : vector<2x256xf32>
    %cst_8 = arith.constant 0.000000e+00 : f32
    %32 = vector.broadcast %cst_8 : f32 to vector<2x256xf32>
    %33 = arith.maximumf %31, %32 : vector<2x256xf32>
    %c0_9 = arith.constant 0 : index
    %c0_10 = arith.constant 0 : index
    %c0_11 = arith.constant 0 : index
    %34 = vector.load %arg5[%c0_9, %c0_10, %c0_11] : memref<3x2x9xf32, #tpu.memory_space<vmem>>, vector<1x2x9xf32>
    %35 = vector.shape_cast %34 : vector<1x2x9xf32> to vector<2x9xf32>
    %c0_12 = arith.constant 0 : index
    %c0_13 = arith.constant 0 : index
    %c0_14 = arith.constant 0 : index
    %36 = vector.load %arg6[%c0_12, %c0_13, %c0_14] : memref<3x2x1xf32, #tpu.memory_space<vmem>>, vector<1x2x1xf32>
    %37 = vector.shape_cast %36 : vector<1x2x1xf32> to vector<2x1xf32>
    %cst_15 = arith.constant 0.000000e+00 : f32
    %38 = vector.broadcast %cst_15 : f32 to vector<2x256xf32>
    %c17_i32 = arith.constant 17 : i32
    %39 = tpu.dynamic_rotate %33 by %c17_i32 dim 1 : vector<2x256xf32>, i32 -> vector<2x256xf32>
    %40 = vector.extract_strided_slice %2 {offsets = [0, 0], sizes = [1, 256], strides = [1, 1]} : vector<9x256xf32> to vector<1x256xf32>
    %41 = vector.broadcast %40 : vector<1x256xf32> to vector<2x256xf32>
    %42 = arith.mulf %39, %41 : vector<2x256xf32>
    %43 = vector.extract_strided_slice %35 {offsets = [0, 0], sizes = [2, 1], strides = [1, 1]} : vector<2x9xf32> to vector<2x1xf32>
    %44 = vector.broadcast %43 : vector<2x1xf32> to vector<2x256xf32>
    %45 = arith.mulf %42, %44 : vector<2x256xf32>
    %46 = arith.addf %38, %45 : vector<2x256xf32>
    %c16_i32 = arith.constant 16 : i32
    %47 = tpu.dynamic_rotate %33 by %c16_i32 dim 1 : vector<2x256xf32>, i32 -> vector<2x256xf32>
    %48 = vector.extract_strided_slice %2 {offsets = [1, 0], sizes = [1, 256], strides = [1, 1]} : vector<9x256xf32> to vector<1x256xf32>
    %49 = vector.broadcast %48 : vector<1x256xf32> to vector<2x256xf32>
    %50 = arith.mulf %47, %49 : vector<2x256xf32>
    %51 = vector.extract_strided_slice %35 {offsets = [0, 1], sizes = [2, 1], strides = [1, 1]} : vector<2x9xf32> to vector<2x1xf32>
    %52 = vector.broadcast %51 : vector<2x1xf32> to vector<2x256xf32>
    %53 = arith.mulf %50, %52 : vector<2x256xf32>
    %54 = arith.addf %46, %53 : vector<2x256xf32>
    %c15_i32 = arith.constant 15 : i32
    %55 = tpu.dynamic_rotate %33 by %c15_i32 dim 1 : vector<2x256xf32>, i32 -> vector<2x256xf32>
    %56 = vector.extract_strided_slice %2 {offsets = [2, 0], sizes = [1, 256], strides = [1, 1]} : vector<9x256xf32> to vector<1x256xf32>
    %57 = vector.broadcast %56 : vector<1x256xf32> to vector<2x256xf32>
    %58 = arith.mulf %55, %57 : vector<2x256xf32>
    %59 = vector.extract_strided_slice %35 {offsets = [0, 2], sizes = [2, 1], strides = [1, 1]} : vector<2x9xf32> to vector<2x1xf32>
    %60 = vector.broadcast %59 : vector<2x1xf32> to vector<2x256xf32>
    %61 = arith.mulf %58, %60 : vector<2x256xf32>
    %62 = arith.addf %54, %61 : vector<2x256xf32>
    %c1_i32 = arith.constant 1 : i32
    %63 = tpu.dynamic_rotate %33 by %c1_i32 dim 1 : vector<2x256xf32>, i32 -> vector<2x256xf32>
    %64 = vector.extract_strided_slice %2 {offsets = [3, 0], sizes = [1, 256], strides = [1, 1]} : vector<9x256xf32> to vector<1x256xf32>
    %65 = vector.broadcast %64 : vector<1x256xf32> to vector<2x256xf32>
    %66 = arith.mulf %63, %65 : vector<2x256xf32>
    %67 = vector.extract_strided_slice %35 {offsets = [0, 3], sizes = [2, 1], strides = [1, 1]} : vector<2x9xf32> to vector<2x1xf32>
    %68 = vector.broadcast %67 : vector<2x1xf32> to vector<2x256xf32>
    %69 = arith.mulf %66, %68 : vector<2x256xf32>
    %70 = arith.addf %62, %69 : vector<2x256xf32>
    %71 = vector.extract_strided_slice %2 {offsets = [4, 0], sizes = [1, 256], strides = [1, 1]} : vector<9x256xf32> to vector<1x256xf32>
    %72 = vector.broadcast %71 : vector<1x256xf32> to vector<2x256xf32>
    %73 = arith.mulf %33, %72 : vector<2x256xf32>
    %74 = vector.extract_strided_slice %35 {offsets = [0, 4], sizes = [2, 1], strides = [1, 1]} : vector<2x9xf32> to vector<2x1xf32>
    %75 = vector.broadcast %74 : vector<2x1xf32> to vector<2x256xf32>
    %76 = arith.mulf %73, %75 : vector<2x256xf32>
    %77 = arith.addf %70, %76 : vector<2x256xf32>
    %c255_i32 = arith.constant 255 : i32
    %78 = tpu.dynamic_rotate %33 by %c255_i32 dim 1 : vector<2x256xf32>, i32 -> vector<2x256xf32>
    %79 = vector.extract_strided_slice %2 {offsets = [5, 0], sizes = [1, 256], strides = [1, 1]} : vector<9x256xf32> to vector<1x256xf32>
    %80 = vector.broadcast %79 : vector<1x256xf32> to vector<2x256xf32>
    %81 = arith.mulf %78, %80 : vector<2x256xf32>
    %82 = vector.extract_strided_slice %35 {offsets = [0, 5], sizes = [2, 1], strides = [1, 1]} : vector<2x9xf32> to vector<2x1xf32>
    %83 = vector.broadcast %82 : vector<2x1xf32> to vector<2x256xf32>
    %84 = arith.mulf %81, %83 : vector<2x256xf32>
    %85 = arith.addf %77, %84 : vector<2x256xf32>
    %c241_i32 = arith.constant 241 : i32
    %86 = tpu.dynamic_rotate %33 by %c241_i32 dim 1 : vector<2x256xf32>, i32 -> vector<2x256xf32>
    %87 = vector.extract_strided_slice %2 {offsets = [6, 0], sizes = [1, 256], strides = [1, 1]} : vector<9x256xf32> to vector<1x256xf32>
    %88 = vector.broadcast %87 : vector<1x256xf32> to vector<2x256xf32>
    %89 = arith.mulf %86, %88 : vector<2x256xf32>
    %90 = vector.extract_strided_slice %35 {offsets = [0, 6], sizes = [2, 1], strides = [1, 1]} : vector<2x9xf32> to vector<2x1xf32>
    %91 = vector.broadcast %90 : vector<2x1xf32> to vector<2x256xf32>
    %92 = arith.mulf %89, %91 : vector<2x256xf32>
    %93 = arith.addf %85, %92 : vector<2x256xf32>
    %c240_i32 = arith.constant 240 : i32
    %94 = tpu.dynamic_rotate %33 by %c240_i32 dim 1 : vector<2x256xf32>, i32 -> vector<2x256xf32>
    %95 = vector.extract_strided_slice %2 {offsets = [7, 0], sizes = [1, 256], strides = [1, 1]} : vector<9x256xf32> to vector<1x256xf32>
    %96 = vector.broadcast %95 : vector<1x256xf32> to vector<2x256xf32>
    %97 = arith.mulf %94, %96 : vector<2x256xf32>
    %98 = vector.extract_strided_slice %35 {offsets = [0, 7], sizes = [2, 1], strides = [1, 1]} : vector<2x9xf32> to vector<2x1xf32>
    %99 = vector.broadcast %98 : vector<2x1xf32> to vector<2x256xf32>
    %100 = arith.mulf %97, %99 : vector<2x256xf32>
    %101 = arith.addf %93, %100 : vector<2x256xf32>
    %c239_i32 = arith.constant 239 : i32
    %102 = tpu.dynamic_rotate %33 by %c239_i32 dim 1 : vector<2x256xf32>, i32 -> vector<2x256xf32>
    %103 = vector.extract_strided_slice %2 {offsets = [8, 0], sizes = [1, 256], strides = [1, 1]} : vector<9x256xf32> to vector<1x256xf32>
    %104 = vector.broadcast %103 : vector<1x256xf32> to vector<2x256xf32>
    %105 = arith.mulf %102, %104 : vector<2x256xf32>
    %106 = vector.extract_strided_slice %35 {offsets = [0, 8], sizes = [2, 1], strides = [1, 1]} : vector<2x9xf32> to vector<2x1xf32>
    %107 = vector.broadcast %106 : vector<2x1xf32> to vector<2x256xf32>
    %108 = arith.mulf %105, %107 : vector<2x256xf32>
    %109 = arith.addf %101, %108 : vector<2x256xf32>
    %110 = vector.broadcast %37 : vector<2x1xf32> to vector<2x256xf32>
    %111 = arith.addf %109, %110 : vector<2x256xf32>
    %cst_16 = arith.constant 0.000000e+00 : f32
    %112 = vector.broadcast %cst_16 : f32 to vector<2x256xf32>
    %113 = arith.maximumf %111, %112 : vector<2x256xf32>
    %c1 = arith.constant 1 : index
    %c0_17 = arith.constant 0 : index
    %c0_18 = arith.constant 0 : index
    %114 = vector.load %arg5[%c1, %c0_17, %c0_18] : memref<3x2x9xf32, #tpu.memory_space<vmem>>, vector<1x2x9xf32>
    %115 = vector.shape_cast %114 : vector<1x2x9xf32> to vector<2x9xf32>
    %c1_19 = arith.constant 1 : index
    %c0_20 = arith.constant 0 : index
    %c0_21 = arith.constant 0 : index
    %116 = vector.load %arg6[%c1_19, %c0_20, %c0_21] : memref<3x2x1xf32, #tpu.memory_space<vmem>>, vector<1x2x1xf32>
    %117 = vector.shape_cast %116 : vector<1x2x1xf32> to vector<2x1xf32>
    %cst_22 = arith.constant 0.000000e+00 : f32
    %118 = vector.broadcast %cst_22 : f32 to vector<2x256xf32>
    %c17_i32_23 = arith.constant 17 : i32
    %119 = tpu.dynamic_rotate %113 by %c17_i32_23 dim 1 : vector<2x256xf32>, i32 -> vector<2x256xf32>
    %120 = vector.extract_strided_slice %2 {offsets = [0, 0], sizes = [1, 256], strides = [1, 1]} : vector<9x256xf32> to vector<1x256xf32>
    %121 = vector.broadcast %120 : vector<1x256xf32> to vector<2x256xf32>
    %122 = arith.mulf %119, %121 : vector<2x256xf32>
    %123 = vector.extract_strided_slice %115 {offsets = [0, 0], sizes = [2, 1], strides = [1, 1]} : vector<2x9xf32> to vector<2x1xf32>
    %124 = vector.broadcast %123 : vector<2x1xf32> to vector<2x256xf32>
    %125 = arith.mulf %122, %124 : vector<2x256xf32>
    %126 = arith.addf %118, %125 : vector<2x256xf32>
    %c16_i32_24 = arith.constant 16 : i32
    %127 = tpu.dynamic_rotate %113 by %c16_i32_24 dim 1 : vector<2x256xf32>, i32 -> vector<2x256xf32>
    %128 = vector.extract_strided_slice %2 {offsets = [1, 0], sizes = [1, 256], strides = [1, 1]} : vector<9x256xf32> to vector<1x256xf32>
    %129 = vector.broadcast %128 : vector<1x256xf32> to vector<2x256xf32>
    %130 = arith.mulf %127, %129 : vector<2x256xf32>
    %131 = vector.extract_strided_slice %115 {offsets = [0, 1], sizes = [2, 1], strides = [1, 1]} : vector<2x9xf32> to vector<2x1xf32>
    %132 = vector.broadcast %131 : vector<2x1xf32> to vector<2x256xf32>
    %133 = arith.mulf %130, %132 : vector<2x256xf32>
    %134 = arith.addf %126, %133 : vector<2x256xf32>
    %c15_i32_25 = arith.constant 15 : i32
    %135 = tpu.dynamic_rotate %113 by %c15_i32_25 dim 1 : vector<2x256xf32>, i32 -> vector<2x256xf32>
    %136 = vector.extract_strided_slice %2 {offsets = [2, 0], sizes = [1, 256], strides = [1, 1]} : vector<9x256xf32> to vector<1x256xf32>
    %137 = vector.broadcast %136 : vector<1x256xf32> to vector<2x256xf32>
    %138 = arith.mulf %135, %137 : vector<2x256xf32>
    %139 = vector.extract_strided_slice %115 {offsets = [0, 2], sizes = [2, 1], strides = [1, 1]} : vector<2x9xf32> to vector<2x1xf32>
    %140 = vector.broadcast %139 : vector<2x1xf32> to vector<2x256xf32>
    %141 = arith.mulf %138, %140 : vector<2x256xf32>
    %142 = arith.addf %134, %141 : vector<2x256xf32>
    %c1_i32_26 = arith.constant 1 : i32
    %143 = tpu.dynamic_rotate %113 by %c1_i32_26 dim 1 : vector<2x256xf32>, i32 -> vector<2x256xf32>
    %144 = vector.extract_strided_slice %2 {offsets = [3, 0], sizes = [1, 256], strides = [1, 1]} : vector<9x256xf32> to vector<1x256xf32>
    %145 = vector.broadcast %144 : vector<1x256xf32> to vector<2x256xf32>
    %146 = arith.mulf %143, %145 : vector<2x256xf32>
    %147 = vector.extract_strided_slice %115 {offsets = [0, 3], sizes = [2, 1], strides = [1, 1]} : vector<2x9xf32> to vector<2x1xf32>
    %148 = vector.broadcast %147 : vector<2x1xf32> to vector<2x256xf32>
    %149 = arith.mulf %146, %148 : vector<2x256xf32>
    %150 = arith.addf %142, %149 : vector<2x256xf32>
    %151 = vector.extract_strided_slice %2 {offsets = [4, 0], sizes = [1, 256], strides = [1, 1]} : vector<9x256xf32> to vector<1x256xf32>
    %152 = vector.broadcast %151 : vector<1x256xf32> to vector<2x256xf32>
    %153 = arith.mulf %113, %152 : vector<2x256xf32>
    %154 = vector.extract_strided_slice %115 {offsets = [0, 4], sizes = [2, 1], strides = [1, 1]} : vector<2x9xf32> to vector<2x1xf32>
    %155 = vector.broadcast %154 : vector<2x1xf32> to vector<2x256xf32>
    %156 = arith.mulf %153, %155 : vector<2x256xf32>
    %157 = arith.addf %150, %156 : vector<2x256xf32>
    %c255_i32_27 = arith.constant 255 : i32
    %158 = tpu.dynamic_rotate %113 by %c255_i32_27 dim 1 : vector<2x256xf32>, i32 -> vector<2x256xf32>
    %159 = vector.extract_strided_slice %2 {offsets = [5, 0], sizes = [1, 256], strides = [1, 1]} : vector<9x256xf32> to vector<1x256xf32>
    %160 = vector.broadcast %159 : vector<1x256xf32> to vector<2x256xf32>
    %161 = arith.mulf %158, %160 : vector<2x256xf32>
    %162 = vector.extract_strided_slice %115 {offsets = [0, 5], sizes = [2, 1], strides = [1, 1]} : vector<2x9xf32> to vector<2x1xf32>
    %163 = vector.broadcast %162 : vector<2x1xf32> to vector<2x256xf32>
    %164 = arith.mulf %161, %163 : vector<2x256xf32>
    %165 = arith.addf %157, %164 : vector<2x256xf32>
    %c241_i32_28 = arith.constant 241 : i32
    %166 = tpu.dynamic_rotate %113 by %c241_i32_28 dim 1 : vector<2x256xf32>, i32 -> vector<2x256xf32>
    %167 = vector.extract_strided_slice %2 {offsets = [6, 0], sizes = [1, 256], strides = [1, 1]} : vector<9x256xf32> to vector<1x256xf32>
    %168 = vector.broadcast %167 : vector<1x256xf32> to vector<2x256xf32>
    %169 = arith.mulf %166, %168 : vector<2x256xf32>
    %170 = vector.extract_strided_slice %115 {offsets = [0, 6], sizes = [2, 1], strides = [1, 1]} : vector<2x9xf32> to vector<2x1xf32>
    %171 = vector.broadcast %170 : vector<2x1xf32> to vector<2x256xf32>
    %172 = arith.mulf %169, %171 : vector<2x256xf32>
    %173 = arith.addf %165, %172 : vector<2x256xf32>
    %c240_i32_29 = arith.constant 240 : i32
    %174 = tpu.dynamic_rotate %113 by %c240_i32_29 dim 1 : vector<2x256xf32>, i32 -> vector<2x256xf32>
    %175 = vector.extract_strided_slice %2 {offsets = [7, 0], sizes = [1, 256], strides = [1, 1]} : vector<9x256xf32> to vector<1x256xf32>
    %176 = vector.broadcast %175 : vector<1x256xf32> to vector<2x256xf32>
    %177 = arith.mulf %174, %176 : vector<2x256xf32>
    %178 = vector.extract_strided_slice %115 {offsets = [0, 7], sizes = [2, 1], strides = [1, 1]} : vector<2x9xf32> to vector<2x1xf32>
    %179 = vector.broadcast %178 : vector<2x1xf32> to vector<2x256xf32>
    %180 = arith.mulf %177, %179 : vector<2x256xf32>
    %181 = arith.addf %173, %180 : vector<2x256xf32>
    %c239_i32_30 = arith.constant 239 : i32
    %182 = tpu.dynamic_rotate %113 by %c239_i32_30 dim 1 : vector<2x256xf32>, i32 -> vector<2x256xf32>
    %183 = vector.extract_strided_slice %2 {offsets = [8, 0], sizes = [1, 256], strides = [1, 1]} : vector<9x256xf32> to vector<1x256xf32>
    %184 = vector.broadcast %183 : vector<1x256xf32> to vector<2x256xf32>
    %185 = arith.mulf %182, %184 : vector<2x256xf32>
    %186 = vector.extract_strided_slice %115 {offsets = [0, 8], sizes = [2, 1], strides = [1, 1]} : vector<2x9xf32> to vector<2x1xf32>
    %187 = vector.broadcast %186 : vector<2x1xf32> to vector<2x256xf32>
    %188 = arith.mulf %185, %187 : vector<2x256xf32>
    %189 = arith.addf %181, %188 : vector<2x256xf32>
    %190 = vector.broadcast %117 : vector<2x1xf32> to vector<2x256xf32>
    %191 = arith.addf %189, %190 : vector<2x256xf32>
    %cst_31 = arith.constant 0.000000e+00 : f32
    %192 = vector.broadcast %cst_31 : f32 to vector<2x256xf32>
    %193 = arith.maximumf %191, %192 : vector<2x256xf32>
    %c2 = arith.constant 2 : index
    %c0_32 = arith.constant 0 : index
    %c0_33 = arith.constant 0 : index
    %194 = vector.load %arg5[%c2, %c0_32, %c0_33] : memref<3x2x9xf32, #tpu.memory_space<vmem>>, vector<1x2x9xf32>
    %195 = vector.shape_cast %194 : vector<1x2x9xf32> to vector<2x9xf32>
    %c2_34 = arith.constant 2 : index
    %c0_35 = arith.constant 0 : index
    %c0_36 = arith.constant 0 : index
    %196 = vector.load %arg6[%c2_34, %c0_35, %c0_36] : memref<3x2x1xf32, #tpu.memory_space<vmem>>, vector<1x2x1xf32>
    %197 = vector.shape_cast %196 : vector<1x2x1xf32> to vector<2x1xf32>
    %cst_37 = arith.constant 0.000000e+00 : f32
    %198 = vector.broadcast %cst_37 : f32 to vector<2x256xf32>
    %c17_i32_38 = arith.constant 17 : i32
    %199 = tpu.dynamic_rotate %193 by %c17_i32_38 dim 1 : vector<2x256xf32>, i32 -> vector<2x256xf32>
    %200 = vector.extract_strided_slice %2 {offsets = [0, 0], sizes = [1, 256], strides = [1, 1]} : vector<9x256xf32> to vector<1x256xf32>
    %201 = vector.broadcast %200 : vector<1x256xf32> to vector<2x256xf32>
    %202 = arith.mulf %199, %201 : vector<2x256xf32>
    %203 = vector.extract_strided_slice %195 {offsets = [0, 0], sizes = [2, 1], strides = [1, 1]} : vector<2x9xf32> to vector<2x1xf32>
    %204 = vector.broadcast %203 : vector<2x1xf32> to vector<2x256xf32>
    %205 = arith.mulf %202, %204 : vector<2x256xf32>
    %206 = arith.addf %198, %205 : vector<2x256xf32>
    %c16_i32_39 = arith.constant 16 : i32
    %207 = tpu.dynamic_rotate %193 by %c16_i32_39 dim 1 : vector<2x256xf32>, i32 -> vector<2x256xf32>
    %208 = vector.extract_strided_slice %2 {offsets = [1, 0], sizes = [1, 256], strides = [1, 1]} : vector<9x256xf32> to vector<1x256xf32>
    %209 = vector.broadcast %208 : vector<1x256xf32> to vector<2x256xf32>
    %210 = arith.mulf %207, %209 : vector<2x256xf32>
    %211 = vector.extract_strided_slice %195 {offsets = [0, 1], sizes = [2, 1], strides = [1, 1]} : vector<2x9xf32> to vector<2x1xf32>
    %212 = vector.broadcast %211 : vector<2x1xf32> to vector<2x256xf32>
    %213 = arith.mulf %210, %212 : vector<2x256xf32>
    %214 = arith.addf %206, %213 : vector<2x256xf32>
    %c15_i32_40 = arith.constant 15 : i32
    %215 = tpu.dynamic_rotate %193 by %c15_i32_40 dim 1 : vector<2x256xf32>, i32 -> vector<2x256xf32>
    %216 = vector.extract_strided_slice %2 {offsets = [2, 0], sizes = [1, 256], strides = [1, 1]} : vector<9x256xf32> to vector<1x256xf32>
    %217 = vector.broadcast %216 : vector<1x256xf32> to vector<2x256xf32>
    %218 = arith.mulf %215, %217 : vector<2x256xf32>
    %219 = vector.extract_strided_slice %195 {offsets = [0, 2], sizes = [2, 1], strides = [1, 1]} : vector<2x9xf32> to vector<2x1xf32>
    %220 = vector.broadcast %219 : vector<2x1xf32> to vector<2x256xf32>
    %221 = arith.mulf %218, %220 : vector<2x256xf32>
    %222 = arith.addf %214, %221 : vector<2x256xf32>
    %c1_i32_41 = arith.constant 1 : i32
    %223 = tpu.dynamic_rotate %193 by %c1_i32_41 dim 1 : vector<2x256xf32>, i32 -> vector<2x256xf32>
    %224 = vector.extract_strided_slice %2 {offsets = [3, 0], sizes = [1, 256], strides = [1, 1]} : vector<9x256xf32> to vector<1x256xf32>
    %225 = vector.broadcast %224 : vector<1x256xf32> to vector<2x256xf32>
    %226 = arith.mulf %223, %225 : vector<2x256xf32>
    %227 = vector.extract_strided_slice %195 {offsets = [0, 3], sizes = [2, 1], strides = [1, 1]} : vector<2x9xf32> to vector<2x1xf32>
    %228 = vector.broadcast %227 : vector<2x1xf32> to vector<2x256xf32>
    %229 = arith.mulf %226, %228 : vector<2x256xf32>
    %230 = arith.addf %222, %229 : vector<2x256xf32>
    %231 = vector.extract_strided_slice %2 {offsets = [4, 0], sizes = [1, 256], strides = [1, 1]} : vector<9x256xf32> to vector<1x256xf32>
    %232 = vector.broadcast %231 : vector<1x256xf32> to vector<2x256xf32>
    %233 = arith.mulf %193, %232 : vector<2x256xf32>
    %234 = vector.extract_strided_slice %195 {offsets = [0, 4], sizes = [2, 1], strides = [1, 1]} : vector<2x9xf32> to vector<2x1xf32>
    %235 = vector.broadcast %234 : vector<2x1xf32> to vector<2x256xf32>
    %236 = arith.mulf %233, %235 : vector<2x256xf32>
    %237 = arith.addf %230, %236 : vector<2x256xf32>
    %c255_i32_42 = arith.constant 255 : i32
    %238 = tpu.dynamic_rotate %193 by %c255_i32_42 dim 1 : vector<2x256xf32>, i32 -> vector<2x256xf32>
    %239 = vector.extract_strided_slice %2 {offsets = [5, 0], sizes = [1, 256], strides = [1, 1]} : vector<9x256xf32> to vector<1x256xf32>
    %240 = vector.broadcast %239 : vector<1x256xf32> to vector<2x256xf32>
    %241 = arith.mulf %238, %240 : vector<2x256xf32>
    %242 = vector.extract_strided_slice %195 {offsets = [0, 5], sizes = [2, 1], strides = [1, 1]} : vector<2x9xf32> to vector<2x1xf32>
    %243 = vector.broadcast %242 : vector<2x1xf32> to vector<2x256xf32>
    %244 = arith.mulf %241, %243 : vector<2x256xf32>
    %245 = arith.addf %237, %244 : vector<2x256xf32>
    %c241_i32_43 = arith.constant 241 : i32
    %246 = tpu.dynamic_rotate %193 by %c241_i32_43 dim 1 : vector<2x256xf32>, i32 -> vector<2x256xf32>
    %247 = vector.extract_strided_slice %2 {offsets = [6, 0], sizes = [1, 256], strides = [1, 1]} : vector<9x256xf32> to vector<1x256xf32>
    %248 = vector.broadcast %247 : vector<1x256xf32> to vector<2x256xf32>
    %249 = arith.mulf %246, %248 : vector<2x256xf32>
    %250 = vector.extract_strided_slice %195 {offsets = [0, 6], sizes = [2, 1], strides = [1, 1]} : vector<2x9xf32> to vector<2x1xf32>
    %251 = vector.broadcast %250 : vector<2x1xf32> to vector<2x256xf32>
    %252 = arith.mulf %249, %251 : vector<2x256xf32>
    %253 = arith.addf %245, %252 : vector<2x256xf32>
    %c240_i32_44 = arith.constant 240 : i32
    %254 = tpu.dynamic_rotate %193 by %c240_i32_44 dim 1 : vector<2x256xf32>, i32 -> vector<2x256xf32>
    %255 = vector.extract_strided_slice %2 {offsets = [7, 0], sizes = [1, 256], strides = [1, 1]} : vector<9x256xf32> to vector<1x256xf32>
    %256 = vector.broadcast %255 : vector<1x256xf32> to vector<2x256xf32>
    %257 = arith.mulf %254, %256 : vector<2x256xf32>
    %258 = vector.extract_strided_slice %195 {offsets = [0, 7], sizes = [2, 1], strides = [1, 1]} : vector<2x9xf32> to vector<2x1xf32>
    %259 = vector.broadcast %258 : vector<2x1xf32> to vector<2x256xf32>
    %260 = arith.mulf %257, %259 : vector<2x256xf32>
    %261 = arith.addf %253, %260 : vector<2x256xf32>
    %c239_i32_45 = arith.constant 239 : i32
    %262 = tpu.dynamic_rotate %193 by %c239_i32_45 dim 1 : vector<2x256xf32>, i32 -> vector<2x256xf32>
    %263 = vector.extract_strided_slice %2 {offsets = [8, 0], sizes = [1, 256], strides = [1, 1]} : vector<9x256xf32> to vector<1x256xf32>
    %264 = vector.broadcast %263 : vector<1x256xf32> to vector<2x256xf32>
    %265 = arith.mulf %262, %264 : vector<2x256xf32>
    %266 = vector.extract_strided_slice %195 {offsets = [0, 8], sizes = [2, 1], strides = [1, 1]} : vector<2x9xf32> to vector<2x1xf32>
    %267 = vector.broadcast %266 : vector<2x1xf32> to vector<2x256xf32>
    %268 = arith.mulf %265, %267 : vector<2x256xf32>
    %269 = arith.addf %261, %268 : vector<2x256xf32>
    %270 = vector.broadcast %197 : vector<2x1xf32> to vector<2x256xf32>
    %271 = arith.addf %269, %270 : vector<2x256xf32>
    %cst_46 = arith.constant 0.000000e+00 : f32
    %272 = vector.broadcast %cst_46 : f32 to vector<2x256xf32>
    %273 = arith.maximumf %271, %272 : vector<2x256xf32>
    %c0_47 = arith.constant 0 : index
    %c0_48 = arith.constant 0 : index
    %274 = vector.load %arg7[%c0_47, %c0_48] : memref<8x2xf32, #tpu.memory_space<vmem>>, vector<8x2xf32>
    %cst_49 = arith.constant 0.000000e+00 : f32
    %275 = vector.broadcast %cst_49 : f32 to vector<8x256xf32>
    %276 = vector.extract_strided_slice %274 {offsets = [0, 0], sizes = [8, 1], strides = [1, 1]} : vector<8x2xf32> to vector<8x1xf32>
    %277 = vector.extract_strided_slice %273 {offsets = [0, 0], sizes = [1, 256], strides = [1, 1]} : vector<2x256xf32> to vector<1x256xf32>
    %278 = vector.broadcast %276 : vector<8x1xf32> to vector<8x256xf32>
    %279 = vector.broadcast %277 : vector<1x256xf32> to vector<8x256xf32>
    %280 = arith.mulf %278, %279 : vector<8x256xf32>
    %281 = arith.addf %275, %280 : vector<8x256xf32>
    %282 = vector.extract_strided_slice %274 {offsets = [0, 1], sizes = [8, 1], strides = [1, 1]} : vector<8x2xf32> to vector<8x1xf32>
    %283 = vector.extract_strided_slice %273 {offsets = [1, 0], sizes = [1, 256], strides = [1, 1]} : vector<2x256xf32> to vector<1x256xf32>
    %284 = vector.broadcast %282 : vector<8x1xf32> to vector<8x256xf32>
    %285 = vector.broadcast %283 : vector<1x256xf32> to vector<8x256xf32>
    %286 = arith.mulf %284, %285 : vector<8x256xf32>
    %287 = arith.addf %281, %286 : vector<8x256xf32>
    %c0_50 = arith.constant 0 : index
    %c0_51 = arith.constant 0 : index
    %288 = vector.load %arg8[%c0_50, %c0_51] : memref<8x1xf32, #tpu.memory_space<vmem>>, vector<8x1xf32>
    %289 = vector.broadcast %288 : vector<8x1xf32> to vector<8x256xf32>
    %290 = arith.addf %287, %289 : vector<8x256xf32>
    %c0_52 = arith.constant 0 : index
    %c0_53 = arith.constant 0 : index
    %291 = vector.load %arg9[%c0_52, %c0_53] : memref<8x4xf32, #tpu.memory_space<vmem>>, vector<8x4xf32>
    %cst_54 = arith.constant 0.000000e+00 : f32
    %292 = vector.broadcast %cst_54 : f32 to vector<8x256xf32>
    %293 = vector.extract_strided_slice %291 {offsets = [0, 0], sizes = [8, 1], strides = [1, 1]} : vector<8x4xf32> to vector<8x1xf32>
    %294 = vector.extract_strided_slice %1 {offsets = [0, 0], sizes = [1, 256], strides = [1, 1]} : vector<4x256xf32> to vector<1x256xf32>
    %295 = vector.broadcast %293 : vector<8x1xf32> to vector<8x256xf32>
    %296 = vector.broadcast %294 : vector<1x256xf32> to vector<8x256xf32>
    %297 = arith.mulf %295, %296 : vector<8x256xf32>
    %298 = arith.addf %292, %297 : vector<8x256xf32>
    %299 = vector.extract_strided_slice %291 {offsets = [0, 1], sizes = [8, 1], strides = [1, 1]} : vector<8x4xf32> to vector<8x1xf32>
    %300 = vector.extract_strided_slice %1 {offsets = [1, 0], sizes = [1, 256], strides = [1, 1]} : vector<4x256xf32> to vector<1x256xf32>
    %301 = vector.broadcast %299 : vector<8x1xf32> to vector<8x256xf32>
    %302 = vector.broadcast %300 : vector<1x256xf32> to vector<8x256xf32>
    %303 = arith.mulf %301, %302 : vector<8x256xf32>
    %304 = arith.addf %298, %303 : vector<8x256xf32>
    %305 = vector.extract_strided_slice %291 {offsets = [0, 2], sizes = [8, 1], strides = [1, 1]} : vector<8x4xf32> to vector<8x1xf32>
    %306 = vector.extract_strided_slice %1 {offsets = [2, 0], sizes = [1, 256], strides = [1, 1]} : vector<4x256xf32> to vector<1x256xf32>
    %307 = vector.broadcast %305 : vector<8x1xf32> to vector<8x256xf32>
    %308 = vector.broadcast %306 : vector<1x256xf32> to vector<8x256xf32>
    %309 = arith.mulf %307, %308 : vector<8x256xf32>
    %310 = arith.addf %304, %309 : vector<8x256xf32>
    %311 = vector.extract_strided_slice %291 {offsets = [0, 3], sizes = [8, 1], strides = [1, 1]} : vector<8x4xf32> to vector<8x1xf32>
    %312 = vector.extract_strided_slice %1 {offsets = [3, 0], sizes = [1, 256], strides = [1, 1]} : vector<4x256xf32> to vector<1x256xf32>
    %313 = vector.broadcast %311 : vector<8x1xf32> to vector<8x256xf32>
    %314 = vector.broadcast %312 : vector<1x256xf32> to vector<8x256xf32>
    %315 = arith.mulf %313, %314 : vector<8x256xf32>
    %316 = arith.addf %310, %315 : vector<8x256xf32>
    %c0_55 = arith.constant 0 : index
    %c0_56 = arith.constant 0 : index
    %317 = vector.load %arg10[%c0_55, %c0_56] : memref<8x1xf32, #tpu.memory_space<vmem>>, vector<8x1xf32>
    %318 = vector.broadcast %317 : vector<8x1xf32> to vector<8x256xf32>
    %319 = arith.addf %316, %318 : vector<8x256xf32>
    %320 = arith.addf %290, %319 : vector<8x256xf32>
    %cst_57 = arith.constant 0.000000e+00 : f32
    %321 = vector.broadcast %cst_57 : f32 to vector<8x256xf32>
    %322 = arith.maximumf %320, %321 : vector<8x256xf32>
    %c0_58 = arith.constant 0 : index
    %c0_59 = arith.constant 0 : index
    %c0_60 = arith.constant 0 : index
    %323 = vector.load %arg11[%c0_58, %c0_59, %c0_60] : memref<1x8x256xf32, #tpu.memory_space<vmem>>, vector<1x8x256xf32>
    %324 = vector.shape_cast %323 : vector<1x8x256xf32> to vector<8x256xf32>
    %325 = vector.shape_cast %322 : vector<8x256xf32> to vector<1x8x256xf32>
    tpu.vector_store %arg11[%c0_58, %c0_59, %c0_60], %325 {strides = array<i32>} : memref<1x8x256xf32, #tpu.memory_space<vmem>>, vector<1x8x256xf32>,
    return
  }
  func.func @transform_0(%arg0: i32) -> (i32, i32, i32) {
    %c0_i32 = arith.constant 0 : i32
    %c0_i32_0 = arith.constant 0 : i32
    %c0_i32_1 = arith.constant 0 : i32
    return %arg0, %c0_i32, %c0_i32_0 : i32, i32, i32
  }
  func.func @transform_1(%arg0: i32) -> (i32, i32) {
    %c0_i32 = arith.constant 0 : i32
    %c0_i32_0 = arith.constant 0 : i32
    %c0_i32_1 = arith.constant 0 : i32
    return %c0_i32, %c0_i32_0 : i32, i32
  }
  func.func @transform_2(%arg0: i32) -> (i32, i32) {
    %c0_i32 = arith.constant 0 : i32
    %c0_i32_0 = arith.constant 0 : i32
    %c0_i32_1 = arith.constant 0 : i32
    return %c0_i32, %c0_i32_0 : i32, i32
  }
  func.func @transform_3(%arg0: i32) -> (i32, i32) {
    %c0_i32 = arith.constant 0 : i32
    %c0_i32_0 = arith.constant 0 : i32
    %c0_i32_1 = arith.constant 0 : i32
    return %c0_i32, %c0_i32_0 : i32, i32
  }
  func.func @transform_4(%arg0: i32) -> (i32, i32, i32) {
    %c0_i32 = arith.constant 0 : i32
    %c0_i32_0 = arith.constant 0 : i32
    %c0_i32_1 = arith.constant 0 : i32
    %c0_i32_2 = arith.constant 0 : i32
    return %c0_i32, %c0_i32_0, %c0_i32_1 : i32, i32, i32
  }
  func.func @transform_5(%arg0: i32) -> (i32, i32, i32) {
    %c0_i32 = arith.constant 0 : i32
    %c0_i32_0 = arith.constant 0 : i32
    %c0_i32_1 = arith.constant 0 : i32
    %c0_i32_2 = arith.constant 0 : i32
    return %c0_i32, %c0_i32_0, %c0_i32_1 : i32, i32, i32
  }
  func.func @transform_6(%arg0: i32) -> (i32, i32) {
    %c0_i32 = arith.constant 0 : i32
    %c0_i32_0 = arith.constant 0 : i32
    %c0_i32_1 = arith.constant 0 : i32
    return %c0_i32, %c0_i32_0 : i32, i32
  }
  func.func @transform_7(%arg0: i32) -> (i32, i32) {
    %c0_i32 = arith.constant 0 : i32
    %c0_i32_0 = arith.constant 0 : i32
    %c0_i32_1 = arith.constant 0 : i32
    return %c0_i32, %c0_i32_0 : i32, i32
  }
  func.func @transform_8(%arg0: i32) -> (i32, i32) {
    %c0_i32 = arith.constant 0 : i32
    %c0_i32_0 = arith.constant 0 : i32
    %c0_i32_1 = arith.constant 0 : i32
    return %c0_i32, %c0_i32_0 : i32, i32
  }
  func.func @transform_9(%arg0: i32) -> (i32, i32) {
    %c0_i32 = arith.constant 0 : i32
    %c0_i32_0 = arith.constant 0 : i32
    %c0_i32_1 = arith.constant 0 : i32
    return %c0_i32, %c0_i32_0 : i32, i32
  }
  func.func @transform_10(%arg0: i32) -> (i32, i32, i32) {
    %c0_i32 = arith.constant 0 : i32
    %c0_i32_0 = arith.constant 0 : i32
    %c0_i32_1 = arith.constant 0 : i32
    return %arg0, %c0_i32, %c0_i32_0 : i32, i32, i32
  }
}

</mosaic_0001>

<llo_original>
// kernel: stdd_block_forward.3
$region0: #{stdd_block_forward.3}
  #allocation0 [shape = 'u32[]', space=smem, size = 0x4, offset = 0x4, fixed_abs, tag = 'smem constant byte address 0x4 - core index']
  #allocation1 [shape = 'u32[72,128]{1,0:T(1,128)}', space=vmem, size = 0x9000, scoped, tag = 'internal scratch']
  %s0 = inlined_call_operand.vmem [shape: f32[2,8,256], index: 0, kind: input, shape index: {}]
  %s1 = inlined_call_operand.vmem [shape: f32[9,256], index: 1, kind: input, shape index: {}]
  %s2 = inlined_call_operand.vmem [shape: f32[2,8], index: 2, kind: input, shape index: {}]
  %s3 = inlined_call_operand.vmem [shape: f32[2,1], index: 3, kind: input, shape index: {}]
  %s4 = inlined_call_operand.vmem [shape: f32[3,2,9], index: 4, kind: input, shape index: {}]
  %s5 = inlined_call_operand.vmem [shape: f32[3,2,1], index: 5, kind: input, shape index: {}]
  %s6 = inlined_call_operand.vmem [shape: f32[8,2], index: 6, kind: input, shape index: {}]
  %s7 = inlined_call_operand.vmem [shape: f32[8,1], index: 7, kind: input, shape index: {}]
  %s8 = inlined_call_operand.vmem [shape: f32[2,8,256], index: 8, kind: output, shape index: {}]
  %s9 = sld [smem:[#allocation0]]
  $region65: #{stdd_block_forward.3} parent=0
    _
  %s11 = ssub.s32 1, %s9
  %s12 = scalar_select 0, %s11, %s9
  loop: start=0, step=1, limit=4
  $region2: #{stdd_block_forward.3} parent=0 // loop_pre_header
    _
  $region3: #{stdd_block_forward.3} parent=0 // loop_header
    %s14 = sphi 0, %s18
    %p15 = scmp.ge.s32.totalorder %s14, 4
    %s24 = sphi 0, %s26
    %s27 = sphi 0, %s24
    %s28 = sphi 0, %s27
    %s44 = sphi 0, %s28
    %s48 = sphi 0, %s48
    %s50 = sphi 0, %s48
    %s51 = sphi 0, %s50
    %s65 = sphi 0, %s51
    %s69 = sphi 0, %s69
    %s71 = sphi 0, %s69
    %s72 = sphi 0, %s71
    %s86 = sphi 0, %s72
    %s90 = sphi 0, %s90
    %s92 = sphi 0, %s90
    %s93 = sphi 0, %s92
    %s107 = sphi 0, %s93
    %s111 = sphi 0, %s111
    %s113 = sphi 0, %s111
    %s114 = sphi 0, %s113
    %s128 = sphi 0, %s114
    %s132 = sphi 0, %s132
    %s134 = sphi 0, %s132
    %s135 = sphi 0, %s134
    %s149 = sphi 0, %s135
    %s153 = sphi 0, %s153
    %s155 = sphi 0, %s153
    %s156 = sphi 0, %s155
    %s170 = sphi 0, %s156
    %s174 = sphi 0, %s174
    %s176 = sphi 0, %s174
    %s177 = sphi 0, %s176
    %s191 = sphi 0, %s177
    %s197 = sphi 0, %s199
    %s200 = sphi 0, %s197
    %s201 = sphi 0, %s200
    %s217 = sphi 0, %s201
  $region4: #{stdd_block_forward.3} parent=0 // loop_header_branch
    %17 = sbr.rel (%p15) target = $region8
  $region5: #{stdd_block_forward.3} parent=0 // loop_body
    %s19 = ssub.s32 %s14, 1
    %s20 = ssub.s32 %s14, 2
    %s21 = sadd.s32 %s14, 1
    %s22 = ssub.s32 %s14, %s21
    %p23 = scmp.eq.s32.totalorder %s22, 0
    %s25 = sadd.s32 %s24, 1
    %s26 = scalar_select %p23, %s24, %s25
    %p29 = pneg %p23
    %p30 = scmp.eq.s32.totalorder %s14, 1
    %p31 = por %p29, %p30
    %p32 = scmp.ne.s32.totalorder %s24, %s27
    %p33 = scmp.eq.s32.totalorder %s14, 0
    %p34 = por %p32, %p33
    %p35 = scmp.ne.s32.totalorder %s24, %s27
    %p36 = scmp.eq.s32.totalorder %s19, 1
    %p37 = por %p35, %p36
    %p38 = scmp.ne.s32.totalorder %s27, %s28
    %p39 = scmp.eq.s32.totalorder %s19, 0
    %p40 = por %p38, %p39
    %p41 = scmp.ne.s32.totalorder %s27, %s28
    %p42 = scmp.eq.s32.totalorder %s20, 1
    %p43 = por %p41, %p42
    %p45 = scmp.ne.s32.totalorder %s28, %s44
    %p46 = scmp.eq.s32.totalorder %s20, 0
    %p47 = por %p45, %p46
    %s49 = sadd.s32 %s48, 1
    %p52 = scmp.eq.s32.totalorder %s14, 1
    %p53 = scmp.ne.s32.totalorder %s48, %s50
    %p54 = scmp.eq.s32.totalorder %s14, 0
    %p55 = por %p53, %p54
    %p56 = scmp.ne.s32.totalorder %s48, %s50
    %p57 = scmp.eq.s32.totalorder %s19, 1
    %p58 = por %p56, %p57
    %p59 = scmp.ne.s32.totalorder %s50, %s51
    %p60 = scmp.eq.s32.totalorder %s19, 0
    %p61 = por %p59, %p60
    %p62 = scmp.ne.s32.totalorder %s50, %s51
    %p63 = scmp.eq.s32.totalorder %s20, 1
    %p64 = por %p62, %p63
    %p66 = scmp.ne.s32.totalorder %s51, %s65
    %p67 = scmp.eq.s32.totalorder %s20, 0
    %p68 = por %p66, %p67
    %s70 = sadd.s32 %s69, 1
    %p73 = scmp.eq.s32.totalorder %s14, 1
    %p74 = scmp.ne.s32.totalorder %s69, %s71
    %p75 = scmp.eq.s32.totalorder %s14, 0
    %p76 = por %p74, %p75
    %p77 = scmp.ne.s32.totalorder %s69, %s71
    %p78 = scmp.eq.s32.totalorder %s19, 1
    %p79 = por %p77, %p78
    %p80 = scmp.ne.s32.totalorder %s71, %s72
    %p81 = scmp.eq.s32.totalorder %s19, 0
    %p82 = por %p80, %p81
    %p83 = scmp.ne.s32.totalorder %s71, %s72
    %p84 = scmp.eq.s32.totalorder %s20, 1
    %p85 = por %p83, %p84
    %p87 = scmp.ne.s32.totalorder %s72, %s86
    %p88 = scmp.eq.s32.totalorder %s20, 0
    %p89 = por %p87, %p88
    %s91 = sadd.s32 %s90, 1
    %p94 = scmp.eq.s32.totalorder %s14, 1
    %p95 = scmp.ne.s32.totalorder %s90, %s92
    %p96 = scmp.eq.s32.totalorder %s14, 0
    %p97 = por %p95, %p96
    %p98 = scmp.ne.s32.totalorder %s90, %s92
    %p99 = scmp.eq.s32.totalorder %s19, 1
    %p100 = por %p98, %p99
    %p101 = scmp.ne.s32.totalorder %s92, %s93
    %p102 = scmp.eq.s32.totalorder %s19, 0
    %p103 = por %p101, %p102
    %p104 = scmp.ne.s32.totalorder %s92, %s93
    %p105 = scmp.eq.s32.totalorder %s20, 1
    %p106 = por %p104, %p105
    %p108 = scmp.ne.s32.totalorder %s93, %s107
    %p109 = scmp.eq.s32.totalorder %s20, 0
    %p110 = por %p108, %p109
    %s112 = sadd.s32 %s111, 1
    %p115 = scmp.eq.s32.totalorder %s14, 1
    %p116 = scmp.ne.s32.totalorder %s111, %s113
    %p117 = scmp.eq.s32.totalorder %s14, 0
    %p118 = por %p116, %p117
    %p119 = scmp.ne.s32.totalorder %s111, %s113
    %p120 = scmp.eq.s32.totalorder %s19, 1
    %p121 = por %p119, %p120
    %p122 = scmp.ne.s32.totalorder %s113, %s114
    %p123 = scmp.eq.s32.totalorder %s19, 0
    %p124 = por %p122, %p123
    %p125 = scmp.ne.s32.totalorder %s113, %s114
    %p126 = scmp.eq.s32.totalorder %s20, 1
    %p127 = por %p125, %p126
    %p129 = scmp.ne.s32.totalorder %s114, %s128
    %p130 = scmp.eq.s32.totalorder %s20, 0
    %p131 = por %p129, %p130
    %s133 = sadd.s32 %s132, 1
    %p136 = scmp.eq.s32.totalorder %s14, 1
    %p137 = scmp.ne.s32.totalorder %s132, %s134
    %p138 = scmp.eq.s32.totalorder %s14, 0
    %p139 = por %p137, %p138
    %p140 = scmp.ne.s32.totalorder %s132, %s134
    %p141 = scmp.eq.s32.totalorder %s19, 1
    %p142 = por %p140, %p141
    %p143 = scmp.ne.s32.totalorder %s134, %s135
    %p144 = scmp.eq.s32.totalorder %s19, 0
    %p145 = por %p143, %p144
    %p146 = scmp.ne.s32.totalorder %s134, %s135
    %p147 = scmp.eq.s32.totalorder %s20, 1
    %p148 = por %p146, %p147
    %p150 = scmp.ne.s32.totalorder %s135, %s149
    %p151 = scmp.eq.s32.totalorder %s20, 0
    %p152 = por %p150, %p151
    %s154 = sadd.s32 %s153, 1
    %p157 = scmp.eq.s32.totalorder %s14, 1
    %p158 = scmp.ne.s32.totalorder %s153, %s155
    %p159 = scmp.eq.s32.totalorder %s14, 0
    %p160 = por %p158, %p159
    %p161 = scmp.ne.s32.totalorder %s153, %s155
    %p162 = scmp.eq.s32.totalorder %s19, 1
    %p163 = por %p161, %p162
    %p164 = scmp.ne.s32.totalorder %s155, %s156
    %p165 = scmp.eq.s32.totalorder %s19, 0
    %p166 = por %p164, %p165
    %p167 = scmp.ne.s32.totalorder %s155, %s156
    %p168 = scmp.eq.s32.totalorder %s20, 1
    %p169 = por %p167, %p168
    %p171 = scmp.ne.s32.totalorder %s156, %s170
    %p172 = scmp.eq.s32.totalorder %s20, 0
    %p173 = por %p171, %p172
    %s175 = sadd.s32 %s174, 1
    %p178 = scmp.eq.s32.totalorder %s14, 1
    %p179 = scmp.ne.s32.totalorder %s174, %s176
    %p180 = scmp.eq.s32.totalorder %s14, 0
    %p181 = por %p179, %p180
    %p182 = scmp.ne.s32.totalorder %s174, %s176
    %p183 = scmp.eq.s32.totalorder %s19, 1
    %p184 = por %p182, %p183
    %p185 = scmp.ne.s32.totalorder %s176, %s177
    %p186 = scmp.eq.s32.totalorder %s19, 0
    %p187 = por %p185, %p186
    %p188 = scmp.ne.s32.totalorder %s176, %s177
    %p189 = scmp.eq.s32.totalorder %s20, 1
    %p190 = por %p188, %p189
    %p192 = scmp.ne.s32.totalorder %s177, %s191
    %p193 = scmp.eq.s32.totalorder %s20, 0
    %p194 = por %p192, %p193
    %s195 = ssub.s32 %s14, %s21
    %p196 = scmp.eq.s32.totalorder %s195, 0
    %s198 = sadd.s32 %s197, 1
    %s199 = scalar_select %p196, %s197, %s198
    %p202 = pneg %p196
    %p203 = scmp.eq.s32.totalorder %s14, 1
    %p204 = por %p202, %p203
    %p205 = scmp.ne.s32.totalorder %s197, %s200
    %p206 = scmp.eq.s32.totalorder %s14, 0
    %p207 = por %p205, %p206
    %p208 = scmp.ne.s32.totalorder %s197, %s200
    %p209 = scmp.eq.s32.totalorder %s19, 1
    %p210 = por %p208, %p209
    %p211 = scmp.ne.s32.totalorder %s200, %s201
    %p212 = scmp.eq.s32.totalorder %s19, 0
    %p213 = por %p211, %p212
    %p214 = scmp.ne.s32.totalorder %s200, %s201
    %p215 = scmp.eq.s32.totalorder %s20, 1
    %p216 = por %p214, %p215
    %p218 = scmp.ne.s32.totalorder %s201, %s217
    %p219 = scmp.eq.s32.totalorder %s20, 0
    %p220 = por %p218, %p219
    %p221 = scmp.le.s32.totalorder 1, %s14
    %p222 = scmp.lt.s32.totalorder %s14, 3
    %p223 = pnand %p221, %p222
    %p224 = pneg %p223
    // Predicated region
    $region9: #{stdd_block_forward.3} parent=5 // pred_check
      _
    $region10: #{stdd_block_forward.3} parent=5 // pred_check_branch
      %226 = sbr.rel (%p223) target = $region12
    $region11: #{stdd_block_forward.3} parent=5 // pred_region
      %s227 = ssub.s32 %s14, 1
      // Predicated region
      $region13: #{stdd_block_forward.3} parent=11 // pred_check
        %p228 = pneg %p61
      $region14: #{stdd_block_forward.3} parent=11 // pred_check_branch
        %230 = sbr.rel (%p228) target = $region16
      $region15: #{stdd_block_forward.3} parent=11 // pred_region
        _
      $region16: #{stdd_block_forward.3} parent=11 // pred_fallthru
        _
      // Predicated region
      $region17: #{stdd_block_forward.3} parent=11 // pred_check
        %p231 = pneg %p82
      $region18: #{stdd_block_forward.3} parent=11 // pred_check_branch
        %233 = sbr.rel (%p231) target = $region20
      $region19: #{stdd_block_forward.3} parent=11 // pred_region
        _
      $region20: #{stdd_block_forward.3} parent=11 // pred_fallthru
        _
      // Predicated region
      $region21: #{stdd_block_forward.3} parent=11 // pred_check
        %p234 = pneg %p103
      $region22: #{stdd_block_forward.3} parent=11 // pred_check_branch
        %236 = sbr.rel (%p234) target = $region24
      $region23: #{stdd_block_forward.3} parent=11 // pred_region
        _
      $region24: #{stdd_block_forward.3} parent=11 // pred_fallthru
        _
      // Predicated region
      $region25: #{stdd_block_forward.3} parent=11 // pred_check
        %p237 = pneg %p124
      $region26: #{stdd_block_forward.3} parent=11 // pred_check_branch
        %239 = sbr.rel (%p237) target = $region28
      $region27: #{stdd_block_forward.3} parent=11 // pred_region
        _
      $region28: #{stdd_block_forward.3} parent=11 // pred_fallthru
        _
      // Predicated region
      $region29: #{stdd_block_forward.3} parent=11 // pred_check
        %p240 = pneg %p145
      $region30: #{stdd_block_forward.3} parent=11 // pred_check_branch
        %242 = sbr.rel (%p240) target = $region32
      $region31: #{stdd_block_forward.3} parent=11 // pred_region
        _
      $region32: #{stdd_block_forward.3} parent=11 // pred_fallthru
        _
      // Predicated region
      $region33: #{stdd_block_forward.3} parent=11 // pred_check
        %p243 = pneg %p166
      $region34: #{stdd_block_forward.3} parent=11 // pred_check_branch
        %245 = sbr.rel (%p243) target = $region36
      $region35: #{stdd_block_forward.3} parent=11 // pred_region
        _
      $region36: #{stdd_block_forward.3} parent=11 // pred_fallthru
        _
      // Predicated region
      $region37: #{stdd_block_forward.3} parent=11 // pred_check
        %p246 = pneg %p187
      $region38: #{stdd_block_forward.3} parent=11 // pred_check_branch
        %248 = sbr.rel (%p246) target = $region40
      $region39: #{stdd_block_forward.3} parent=11 // pred_region
        _
      $region40: #{stdd_block_forward.3} parent=11 // pred_fallthru
        _
    $region12: #{stdd_block_forward.3} parent=5 // pred_fallthru
      _
    %p249 = scmp.lt.s32.totalorder %s14, 2
    // Predicated region
    $region41: #{stdd_block_forward.3} parent=5 // pred_check
      %p250 = pneg %p249
    $region42: #{stdd_block_forward.3} parent=5 // pred_check_branch
      %252 = sbr.rel (%p250) target = $region44
    $region43: #{stdd_block_forward.3} parent=5 // pred_region
      // Predicated region
      $region45: #{stdd_block_forward.3} parent=43 // pred_check
        %p253 = pneg %p34
      $region46: #{stdd_block_forward.3} parent=43 // pred_check_branch
        %255 = sbr.rel (%p253) target = $region48
      $region47: #{stdd_block_forward.3} parent=43 // pred_region
        %p256 = scmp.lt.s32.totalorder %s14, 1
        %s257 = scalar_select %p256, %s14, 1
        %s258 = smul.addr %s257, 2
        %s259 = smul.addr %s258, 8
        %s260 = scalar_lea.vmem %s0, %s259
      $region48: #{stdd_block_forward.3} parent=43 // pred_fallthru
        _
    $region44: #{stdd_block_forward.3} parent=5 // pred_fallthru
      _
    %p261 = scmp.le.s32.totalorder 1, %s14
    %p262 = scmp.lt.s32.totalorder %s14, 3
    %p263 = pnand %p261, %p262
    %p264 = pneg %p263
    // Predicated region
    $region49: #{stdd_block_forward.3} parent=5 // pred_check
      _
    $region50: #{stdd_block_forward.3} parent=5 // pred_check_branch
      %266 = sbr.rel (%p263) target = $region52
    $region51: #{stdd_block_forward.3} parent=5 // pred_region
      %s267 = ssub.s32 %s14, 1
      %p268 = scmp.lt.s32.totalorder %s19, 1
      %s269 = scalar_select %p268, %s19, 1
      %s270 = smul.addr %s269, 2
      %s271 = smul.addr %s270, 8
      %s272 = scalar_lea.vmem %s0, %s271
      %p273 = pneg %p40
      %p274 = pneg %p37
      %p275 = pneg %p61
      %p276 = pneg %p58
      %p277 = pneg %p82
      %p278 = pneg %p79
      %p279 = pneg %p103
      %p280 = pneg %p100
      %p281 = pneg %p124
      %p282 = pneg %p121
      %p283 = pneg %p145
      %p284 = pneg %p142
      %p285 = pneg %p166
      %p286 = pneg %p163
      %p287 = pneg %p187
      %p288 = pneg %p184
      %p289 = pneg %p213
      %p290 = pneg %p210
      %p291 = scmp.lt.s32.totalorder %s19, 1
      %s292 = scalar_select %p291, %s19, 1
      %s293 = smul.addr %s292, 2
      %s294 = smul.addr %s293, 8
      %s295 = scalar_lea.vmem %s8, %s294
      %p296 = scmp.lt.s32.totalorder %s19, 1
      %s297 = scalar_select %p296, %s19, 1
      %s298 = smul.addr %s297, 2
      %s299 = smul.addr %s298, 8
      %s300 = scalar_lea.vmem %s0, %s299
      %p301 = scmp.lt.s32.totalorder %s19, 1
      %s302 = scalar_select %p301, %s19, 1
      %s303 = smul.addr %s302, 2
      %s304 = smul.addr %s303, 8
      %s305 = scalar_lea.vmem %s8, %s304
      %v306 = vld [vmem:[%s300] sm:$0xff]
      %v307 = vld [vmem:[%s300 + $0x8] sm:$0xff]
      %v308 = vld [vmem:[%s1] sm:$0xff]
      %v309 = vld [vmem:[%s1 + $0x8] sm:$0xff]
      %v310 = vld [vmem:[%s1 + $0x10] sm:$0x1]
      %v311 = vld [vmem:[%s1 + $0x18] sm:$0x1]
      %v312 = vld [vmem:[%s2] sm:$0x3]
      %314 = vset.pattern.permute.xlu0 0
      %315 = vperm.xlu0 %314, %v312
      %v316 = vpop.permute.xlu0 %315
      %v318 = vperm.slane %v306, 0
      %v319 = vperm.slane %v307, 0
      %v320 = vmul.f32 %v316, %v318
      %v321 = vmul.f32 %v316, %v319
      %v322 = vadd.f32 %v320, 0.0
      %v323 = vadd.f32 %v321, 0.0
      %324 = vset.pattern.permute.xlu0 1
      %325 = vperm.xlu0 %324, %v312
      %v326 = vpop.permute.xlu0 %325
      %v328 = vperm.slane %v306, 1
      %v329 = vperm.slane %v307, 1
      %v330 = vmul.f32 %v326, %v328
      %v331 = vmul.f32 %v326, %v329
      %v332 = vadd.f32 %v322, %v330
      %v333 = vadd.f32 %v323, %v331
      %334 = vset.pattern.permute.xlu0 2
      %335 = vperm.xlu0 %334, %v312
      %v336 = vpop.permute.xlu0 %335
      %v338 = vperm.slane %v306, 2
      %v339 = vperm.slane %v307, 2
      %v340 = vmul.f32 %v336, %v338
      %v341 = vmul.f32 %v336, %v339
      %v342 = vadd.f32 %v332, %v340
      %v343 = vadd.f32 %v333, %v341
      %344 = vset.pattern.permute.xlu0 3
      %345 = vperm.xlu0 %344, %v312
      %v346 = vpop.permute.xlu0 %345
      %v348 = vperm.slane %v306, 3
      %v349 = vperm.slane %v307, 3
      %v350 = vmul.f32 %v346, %v348
      %v351 = vmul.f32 %v346, %v349
      %v352 = vadd.f32 %v342, %v350
      %v353 = vadd.f32 %v343, %v351
      %354 = vset.pattern.permute.xlu0 4
      %355 = vperm.xlu0 %354, %v312
      %v356 = vpop.permute.xlu0 %355
      %v358 = vperm.slane %v306, 4
      %v359 = vperm.slane %v307, 4
      %v360 = vmul.f32 %v356, %v358
      %v361 = vmul.f32 %v356, %v359
      %v362 = vadd.f32 %v352, %v360
      %v363 = vadd.f32 %v353, %v361
      %364 = vset.pattern.permute.xlu0 5
      %365 = vperm.xlu0 %364, %v312
      %v366 = vpop.permute.xlu0 %365
      %v368 = vperm.slane %v306, 5
      %v369 = vperm.slane %v307, 5
      %v370 = vmul.f32 %v366, %v368
      %v371 = vmul.f32 %v366, %v369
      %v372 = vadd.f32 %v362, %v370
      %v373 = vadd.f32 %v363, %v371
      %374 = vset.pattern.permute.xlu0 6
      %375 = vperm.xlu0 %374, %v312
      %v376 = vpop.permute.xlu0 %375
      %v378 = vperm.slane %v306, 6
      %v379 = vperm.slane %v307, 6
      %v380 = vmul.f32 %v376, %v378
      %v381 = vmul.f32 %v376, %v379
      %v382 = vadd.f32 %v372, %v380
      %v383 = vadd.f32 %v373, %v381
      %384 = vset.pattern.permute.xlu0 7
      %385 = vperm.xlu0 %384, %v312
      %v386 = vpop.permute.xlu0 %385
      %v388 = vperm.slane %v306, 7
      %v389 = vperm.slane %v307, 7
      %v390 = vmul.f32 %v386, %v388
      %v391 = vmul.f32 %v386, %v389
      %v392 = vadd.f32 %v382, %v390
      %v393 = vadd.f32 %v383, %v391
      %v394 = vld [vmem:[%s3] sm:$0x3]
      %396 = vset.pattern.permute.xlu0 0
      %397 = vperm.xlu0 %396, %v394
      %v398 = vpop.permute.xlu0 %397
      %v400 = vadd.f32 %v392, %v398
      %v401 = vadd.f32 %v393, %v398
      %v402 = vmax.f32 %v400, 0.0
      %v403 = vmax.f32 %v401, 0.0
      %v404 = vld [vmem:[%s4] sm:$0x3]
      %v405 = vld [vmem:[%s5] sm:$0x3]
      %406 = vrot.lane.b32.xlu0 %v402, 17
      %v407 = vpop.permute.xlu0 %406
      %408 = vrot.lane.b32.xlu0 %v403, 17
      %v409 = vpop.permute.xlu0 %408
      %v410 = vlaneseq
      %v411 = vand.u32 %v410, 127
      %vm412 = vcmp.lt.s32.totalorder %v411, 17
      %v413 = vsel %vm412, %v407, %v409
      %v414 = vsel %vm412, %v409, %v407
      %v415 = vperm.slane %v308, 0
      %v416 = vperm.slane %v309, 0
      %v417 = vmul.f32 %v414, %v415
      %v418 = vmul.f32 %v413, %v416
      %420 = vset.pattern.permute.xlu0 0
      %421 = vperm.xlu0 %420, %v404
      %v422 = vpop.permute.xlu0 %421
      %v424 = vmul.f32 %v417, %v422
      %v425 = vmul.f32 %v418, %v422
      %v426 = vadd.f32 %v424, 0.0
      %v427 = vadd.f32 %v425, 0.0
      %428 = vrot.lane.b32.xlu0 %v402, 16
      %v429 = vpop.permute.xlu0 %428
      %430 = vrot.lane.b32.xlu0 %v403, 16
      %v431 = vpop.permute.xlu0 %430
      %vm432 = vcmp.lt.s32.totalorder %v411, 16
      %v433 = vsel %vm432, %v429, %v431
      %v434 = vsel %vm432, %v431, %v429
      %v435 = vperm.slane %v308, 1
      %v436 = vperm.slane %v309, 1
      %v437 = vmul.f32 %v434, %v435
      %v438 = vmul.f32 %v433, %v436
      %439 = vset.pattern.permute.xlu0 1
      %440 = vperm.xlu0 %439, %v404
      %v441 = vpop.permute.xlu0 %440
      %v443 = vmul.f32 %v437, %v441
      %v444 = vmul.f32 %v438, %v441
      %v445 = vadd.f32 %v426, %v443
      %v446 = vadd.f32 %v427, %v444
      %447 = vrot.lane.b32.xlu0 %v402, 15
      %v448 = vpop.permute.xlu0 %447
      %449 = vrot.lane.b32.xlu0 %v403, 15
      %v450 = vpop.permute.xlu0 %449
      %vm451 = vcmp.lt.s32.totalorder %v411, 15
      %v452 = vsel %vm451, %v448, %v450
      %v453 = vsel %vm451, %v450, %v448
      %v454 = vperm.slane %v308, 2
      %v455 = vperm.slane %v309, 2
      %v456 = vmul.f32 %v453, %v454
      %v457 = vmul.f32 %v452, %v455
      %458 = vset.pattern.permute.xlu0 2
      %459 = vperm.xlu0 %458, %v404
      %v460 = vpop.permute.xlu0 %459
      %v462 = vmul.f32 %v456, %v460
      %v463 = vmul.f32 %v457, %v460
      %v464 = vadd.f32 %v445, %v462
      %v465 = vadd.f32 %v446, %v463
      %466 = vrot.lane.b32.xlu0 %v402, 1
      %v467 = vpop.permute.xlu0 %466
      %468 = vrot.lane.b32.xlu0 %v403, 1
      %v469 = vpop.permute.xlu0 %468
      %vm470 = vcmp.lt.s32.totalorder %v411, 1
      %v471 = vsel %vm470, %v467, %v469
      %v472 = vsel %vm470, %v469, %v467
      %v473 = vperm.slane %v308, 3
      %v474 = vperm.slane %v309, 3
      %v475 = vmul.f32 %v472, %v473
      %v476 = vmul.f32 %v471, %v474
      %477 = vset.pattern.permute.xlu0 3
      %478 = vperm.xlu0 %477, %v404
      %v479 = vpop.permute.xlu0 %478
      %v481 = vmul.f32 %v475, %v479
      %v482 = vmul.f32 %v476, %v479
      %v483 = vadd.f32 %v464, %v481
      %v484 = vadd.f32 %v465, %v482
      %v485 = vperm.slane %v308, 4
      %v486 = vperm.slane %v309, 4
      %v487 = vmul.f32 %v402, %v485
      %v488 = vmul.f32 %v403, %v486
      %489 = vset.pattern.permute.xlu0 4
      %490 = vperm.xlu0 %489, %v404
      %v491 = vpop.permute.xlu0 %490
      %v493 = vmul.f32 %v487, %v491
      %v494 = vmul.f32 %v488, %v491
      %v495 = vadd.f32 %v483, %v493
      %v496 = vadd.f32 %v484, %v494
      %497 = vrot.lane.b32.xlu0 %v402, 127
      %v498 = vpop.permute.xlu0 %497
      %499 = vrot.lane.b32.xlu0 %v403, 127
      %v500 = vpop.permute.xlu0 %499
      %vm501 = vcmp.lt.s32.totalorder %v411, 127
      %v502 = vsel %vm501, %v498, %v500
      %v503 = vsel %vm501, %v500, %v498
      %v504 = vperm.slane %v308, 5
      %v505 = vperm.slane %v309, 5
      %v506 = vmul.f32 %v502, %v504
      %v507 = vmul.f32 %v503, %v505
      %508 = vset.pattern.permute.xlu0 5
      %509 = vperm.xlu0 %508, %v404
      %v510 = vpop.permute.xlu0 %509
      %v512 = vmul.f32 %v506, %v510
      %v513 = vmul.f32 %v507, %v510
      %v514 = vadd.f32 %v495, %v512
      %v515 = vadd.f32 %v496, %v513
      %516 = vrot.lane.b32.xlu0 %v402, 113
      %v517 = vpop.permute.xlu0 %516
      %518 = vrot.lane.b32.xlu0 %v403, 113
      %v519 = vpop.permute.xlu0 %518
      %vm520 = vcmp.lt.s32.totalorder %v411, 113
      %v521 = vsel %vm520, %v517, %v519
      %v522 = vsel %vm520, %v519, %v517
      %v523 = vperm.slane %v308, 6
      %v524 = vperm.slane %v309, 6
      %v525 = vmul.f32 %v521, %v523
      %v526 = vmul.f32 %v522, %v524
      %527 = vset.pattern.permute.xlu0 6
      %528 = vperm.xlu0 %527, %v404
      %v529 = vpop.permute.xlu0 %528
      %v531 = vmul.f32 %v525, %v529
      %v532 = vmul.f32 %v526, %v529
      %v533 = vadd.f32 %v514, %v531
      %v534 = vadd.f32 %v515, %v532
      %535 = vrot.lane.b32.xlu0 %v402, 112
      %v536 = vpop.permute.xlu0 %535
      %537 = vrot.lane.b32.xlu0 %v403, 112
      %v538 = vpop.permute.xlu0 %537
      %vm539 = vcmp.lt.s32.totalorder %v411, 112
      %v540 = vsel %vm539, %v536, %v538
      %v541 = vsel %vm539, %v538, %v536
      %v542 = vperm.slane %v308, 7
      %v543 = vperm.slane %v309, 7
      %v544 = vmul.f32 %v540, %v542
      %v545 = vmul.f32 %v541, %v543
      %546 = vset.pattern.permute.xlu0 7
      %547 = vperm.xlu0 %546, %v404
      %v548 = vpop.permute.xlu0 %547
      %v550 = vmul.f32 %v544, %v548
      %v551 = vmul.f32 %v545, %v548
      %v552 = vadd.f32 %v533, %v550
      %v553 = vadd.f32 %v534, %v551
      %554 = vrot.lane.b32.xlu0 %v402, 111
      %v555 = vpop.permute.xlu0 %554
      %556 = vrot.lane.b32.xlu0 %v403, 111
      %v557 = vpop.permute.xlu0 %556
      %vm558 = vcmp.lt.s32.totalorder %v411, 111
      %v559 = vsel %vm558, %v555, %v557
      %v560 = vsel %vm558, %v557, %v555
      %v561 = vperm.slane %v310, 0
      %v562 = vperm.slane %v311, 0
      %v563 = vmul.f32 %v559, %v561
      %v564 = vmul.f32 %v560, %v562
      %565 = vset.pattern.permute.xlu0 8
      %566 = vperm.xlu0 %565, %v404
      %v567 = vpop.permute.xlu0 %566
      %v569 = vmul.f32 %v563, %v567
      %v570 = vmul.f32 %v564, %v567
      %v571 = vadd.f32 %v552, %v569
      %v572 = vadd.f32 %v553, %v570
      %574 = vset.pattern.permute.xlu0 0
      %575 = vperm.xlu0 %574, %v405
      %v576 = vpop.permute.xlu0 %575
      %v578 = vadd.f32 %v571, %v576
      %v579 = vadd.f32 %v572, %v576
      %v580 = vmax.f32 %v578, 0.0
      %v581 = vmax.f32 %v579, 0.0
      %s582 = scalar_lea.vmem %s4, 2
      %v583 = vld [vmem:[%s582] sm:$0x3]
      %s584 = scalar_lea.vmem %s5, 2
      %v585 = vld [vmem:[%s584] sm:$0x3]
      %586 = vrot.lane.b32.xlu0 %v580, 17
      %v587 = vpop.permute.xlu0 %586
      %588 = vrot.lane.b32.xlu0 %v581, 17
      %v589 = vpop.permute.xlu0 %588
      %v590 = vsel %vm412, %v587, %v589
      %v591 = vsel %vm412, %v589, %v587
      %v592 = vmul.f32 %v591, %v415
      %v593 = vmul.f32 %v590, %v416
      %595 = vset.pattern.permute.xlu0 0
      %596 = vperm.xlu0 %595, %v583
      %v597 = vpop.permute.xlu0 %596
      %v599 = vmul.f32 %v592, %v597
      %v600 = vmul.f32 %v593, %v597
      %v601 = vadd.f32 %v599, 0.0
      %v602 = vadd.f32 %v600, 0.0
      %603 = vrot.lane.b32.xlu0 %v580, 16
      %v604 = vpop.permute.xlu0 %603
      %605 = vrot.lane.b32.xlu0 %v581, 16
      %v606 = vpop.permute.xlu0 %605
      %v607 = vsel %vm432, %v604, %v606
      %v608 = vsel %vm432, %v606, %v604
      %v609 = vmul.f32 %v608, %v435
      %v610 = vmul.f32 %v607, %v436
      %611 = vset.pattern.permute.xlu0 1
      %612 = vperm.xlu0 %611, %v583
      %v613 = vpop.permute.xlu0 %612
      %v615 = vmul.f32 %v609, %v613
      %v616 = vmul.f32 %v610, %v613
      %v617 = vadd.f32 %v601, %v615
      %v618 = vadd.f32 %v602, %v616
      %619 = vrot.lane.b32.xlu0 %v580, 15
      %v620 = vpop.permute.xlu0 %619
      %621 = vrot.lane.b32.xlu0 %v581, 15
      %v622 = vpop.permute.xlu0 %621
      %v623 = vsel %vm451, %v620, %v622
      %v624 = vsel %vm451, %v622, %v620
      %v625 = vmul.f32 %v624, %v454
      %v626 = vmul.f32 %v623, %v455
      %627 = vset.pattern.permute.xlu0 2
      %628 = vperm.xlu0 %627, %v583
      %v629 = vpop.permute.xlu0 %628
      %v631 = vmul.f32 %v625, %v629
      %v632 = vmul.f32 %v626, %v629
      %v633 = vadd.f32 %v617, %v631
      %v634 = vadd.f32 %v618, %v632
      %635 = vrot.lane.b32.xlu0 %v580, 1
      %v636 = vpop.permute.xlu0 %635
      %637 = vrot.lane.b32.xlu0 %v581, 1
      %v638 = vpop.permute.xlu0 %637
      %v639 = vsel %vm470, %v636, %v638
      %v640 = vsel %vm470, %v638, %v636
      %v641 = vmul.f32 %v640, %v473
      %v642 = vmul.f32 %v639, %v474
      %643 = vset.pattern.permute.xlu0 3
      %644 = vperm.xlu0 %643, %v583
      %v645 = vpop.permute.xlu0 %644
      %v647 = vmul.f32 %v641, %v645
      %v648 = vmul.f32 %v642, %v645
      %v649 = vadd.f32 %v633, %v647
      %v650 = vadd.f32 %v634, %v648
      %v651 = vmul.f32 %v580, %v485
      %v652 = vmul.f32 %v581, %v486
      %653 = vset.pattern.permute.xlu0 4
      %654 = vperm.xlu0 %653, %v583
      %v655 = vpop.permute.xlu0 %654
      %v657 = vmul.f32 %v651, %v655
      %v658 = vmul.f32 %v652, %v655
      %v659 = vadd.f32 %v649, %v657
      %v660 = vadd.f32 %v650, %v658
      %661 = vrot.lane.b32.xlu0 %v580, 127
      %v662 = vpop.permute.xlu0 %661
      %663 = vrot.lane.b32.xlu0 %v581, 127
      %v664 = vpop.permute.xlu0 %663
      %v665 = vsel %vm501, %v662, %v664
      %v666 = vsel %vm501, %v664, %v662
      %v667 = vmul.f32 %v665, %v504
      %v668 = vmul.f32 %v666, %v505
      %669 = vset.pattern.permute.xlu0 5
      %670 = vperm.xlu0 %669, %v583
      %v671 = vpop.permute.xlu0 %670
      %v673 = vmul.f32 %v667, %v671
      %v674 = vmul.f32 %v668, %v671
      %v675 = vadd.f32 %v659, %v673
      %v676 = vadd.f32 %v660, %v674
      %677 = vrot.lane.b32.xlu0 %v580, 113
      %v678 = vpop.permute.xlu0 %677
      %679 = vrot.lane.b32.xlu0 %v581, 113
      %v680 = vpop.permute.xlu0 %679
      %v681 = vsel %vm520, %v678, %v680
      %v682 = vsel %vm520, %v680, %v678
      %v683 = vmul.f32 %v681, %v523
      %v684 = vmul.f32 %v682, %v524
      %685 = vset.pattern.permute.xlu0 6
      %686 = vperm.xlu0 %685, %v583
      %v687 = vpop.permute.xlu0 %686
      %v689 = vmul.f32 %v683, %v687
      %v690 = vmul.f32 %v684, %v687
      %v691 = vadd.f32 %v675, %v689
      %v692 = vadd.f32 %v676, %v690
      %693 = vrot.lane.b32.xlu0 %v580, 112
      %v694 = vpop.permute.xlu0 %693
      %695 = vrot.lane.b32.xlu0 %v581, 112
      %v696 = vpop.permute.xlu0 %695
      %v697 = vsel %vm539, %v694, %v696
      %v698 = vsel %vm539, %v696, %v694
      %v699 = vmul.f32 %v697, %v542
      %v700 = vmul.f32 %v698, %v543
      %701 = vset.pattern.permute.xlu0 7
      %702 = vperm.xlu0 %701, %v583
      %v703 = vpop.permute.xlu0 %702
      %v705 = vmul.f32 %v699, %v703
      %v706 = vmul.f32 %v700, %v703
      %v707 = vadd.f32 %v691, %v705
      %v708 = vadd.f32 %v692, %v706
      %709 = vrot.lane.b32.xlu0 %v580, 111
      %v710 = vpop.permute.xlu0 %709
      %711 = vrot.lane.b32.xlu0 %v581, 111
      %v712 = vpop.permute.xlu0 %711
      %v713 = vsel %vm558, %v710, %v712
      %v714 = vsel %vm558, %v712, %v710
      %v715 = vmul.f32 %v713, %v561
      %v716 = vmul.f32 %v714, %v562
      %717 = vset.pattern.permute.xlu0 8
      %718 = vperm.xlu0 %717, %v583
      %v719 = vpop.permute.xlu0 %718
      %v721 = vmul.f32 %v715, %v719
      %v722 = vmul.f32 %v716, %v719
      %v723 = vadd.f32 %v707, %v721
      %v724 = vadd.f32 %v708, %v722
      %726 = vset.pattern.permute.xlu0 0
      %727 = vperm.xlu0 %726, %v585
      %v728 = vpop.permute.xlu0 %727
      %v730 = vadd.f32 %v723, %v728
      %v731 = vadd.f32 %v724, %v728
      %v732 = vmax.f32 %v730, 0.0
      %v733 = vmax.f32 %v731, 0.0
      %s734 = scalar_lea.vmem %s4, 4
      %v735 = vld [vmem:[%s734] sm:$0x3]
      %s736 = scalar_lea.vmem %s5, 4
      %v737 = vld [vmem:[%s736] sm:$0x3]
      %738 = vrot.lane.b32.xlu0 %v732, 17
      %v739 = vpop.permute.xlu0 %738
      %740 = vrot.lane.b32.xlu0 %v733, 17
      %v741 = vpop.permute.xlu0 %740
      %v742 = vsel %vm412, %v739, %v741
      %v743 = vsel %vm412, %v741, %v739
      %v744 = vmul.f32 %v743, %v415
      %v745 = vmul.f32 %v742, %v416
      %747 = vset.pattern.permute.xlu0 0
      %748 = vperm.xlu0 %747, %v735
      %v749 = vpop.permute.xlu0 %748
      %v751 = vmul.f32 %v744, %v749
      %v752 = vmul.f32 %v745, %v749
      %v753 = vadd.f32 %v751, 0.0
      %v754 = vadd.f32 %v752, 0.0
      %755 = vrot.lane.b32.xlu0 %v732, 16
      %v756 = vpop.permute.xlu0 %755
      %757 = vrot.lane.b32.xlu0 %v733, 16
      %v758 = vpop.permute.xlu0 %757
      %v759 = vsel %vm432, %v756, %v758
      %v760 = vsel %vm432, %v758, %v756
      %v761 = vmul.f32 %v760, %v435
      %v762 = vmul.f32 %v759, %v436
      %763 = vset.pattern.permute.xlu0 1
      %764 = vperm.xlu0 %763, %v735
      %v765 = vpop.permute.xlu0 %764
      %v767 = vmul.f32 %v761, %v765
      %v768 = vmul.f32 %v762, %v765
      %v769 = vadd.f32 %v753, %v767
      %v770 = vadd.f32 %v754, %v768
      %771 = vrot.lane.b32.xlu0 %v732, 15
      %v772 = vpop.permute.xlu0 %771
      %773 = vrot.lane.b32.xlu0 %v733, 15
      %v774 = vpop.permute.xlu0 %773
      %v775 = vsel %vm451, %v772, %v774
      %v776 = vsel %vm451, %v774, %v772
      %v777 = vmul.f32 %v776, %v454
      %v778 = vmul.f32 %v775, %v455
      %779 = vset.pattern.permute.xlu0 2
      %780 = vperm.xlu0 %779, %v735
      %v781 = vpop.permute.xlu0 %780
      %v783 = vmul.f32 %v777, %v781
      %v784 = vmul.f32 %v778, %v781
      %v785 = vadd.f32 %v769, %v783
      %v786 = vadd.f32 %v770, %v784
      %787 = vrot.lane.b32.xlu0 %v732, 1
      %v788 = vpop.permute.xlu0 %787
      %789 = vrot.lane.b32.xlu0 %v733, 1
      %v790 = vpop.permute.xlu0 %789
      %v791 = vsel %vm470, %v788, %v790
      %v792 = vsel %vm470, %v790, %v788
      %v793 = vmul.f32 %v792, %v473
      %v794 = vmul.f32 %v791, %v474
      %795 = vset.pattern.permute.xlu0 3
      %796 = vperm.xlu0 %795, %v735
      %v797 = vpop.permute.xlu0 %796
      %v799 = vmul.f32 %v793, %v797
      %v800 = vmul.f32 %v794, %v797
      %v801 = vadd.f32 %v785, %v799
      %v802 = vadd.f32 %v786, %v800
      %v803 = vmul.f32 %v732, %v485
      %v804 = vmul.f32 %v733, %v486
      %805 = vset.pattern.permute.xlu0 4
      %806 = vperm.xlu0 %805, %v735
      %v807 = vpop.permute.xlu0 %806
      %v809 = vmul.f32 %v803, %v807
      %v810 = vmul.f32 %v804, %v807
      %v811 = vadd.f32 %v801, %v809
      %v812 = vadd.f32 %v802, %v810
      %813 = vrot.lane.b32.xlu0 %v732, 127
      %v814 = vpop.permute.xlu0 %813
      %815 = vrot.lane.b32.xlu0 %v733, 127
      %v816 = vpop.permute.xlu0 %815
      %v817 = vsel %vm501, %v814, %v816
      %v818 = vsel %vm501, %v816, %v814
      %v819 = vmul.f32 %v817, %v504
      %v820 = vmul.f32 %v818, %v505
      %821 = vset.pattern.permute.xlu0 5
      %822 = vperm.xlu0 %821, %v735
      %v823 = vpop.permute.xlu0 %822
      %v825 = vmul.f32 %v819, %v823
      %v826 = vmul.f32 %v820, %v823
      %v827 = vadd.f32 %v811, %v825
      %v828 = vadd.f32 %v812, %v826
      %829 = vrot.lane.b32.xlu0 %v732, 113
      %v830 = vpop.permute.xlu0 %829
      %831 = vrot.lane.b32.xlu0 %v733, 113
      %v832 = vpop.permute.xlu0 %831
      %v833 = vsel %vm520, %v830, %v832
      %v834 = vsel %vm520, %v832, %v830
      %v835 = vmul.f32 %v833, %v523
      %v836 = vmul.f32 %v834, %v524
      %837 = vset.pattern.permute.xlu0 6
      %838 = vperm.xlu0 %837, %v735
      %v839 = vpop.permute.xlu0 %838
      %v841 = vmul.f32 %v835, %v839
      %v842 = vmul.f32 %v836, %v839
      %v843 = vadd.f32 %v827, %v841
      %v844 = vadd.f32 %v828, %v842
      %845 = vrot.lane.b32.xlu0 %v732, 112
      %v846 = vpop.permute.xlu0 %845
      %847 = vrot.lane.b32.xlu0 %v733, 112
      %v848 = vpop.permute.xlu0 %847
      %v849 = vsel %vm539, %v846, %v848
      %v850 = vsel %vm539, %v848, %v846
      %v851 = vmul.f32 %v849, %v542
      %v852 = vmul.f32 %v850, %v543
      %853 = vset.pattern.permute.xlu0 7
      %854 = vperm.xlu0 %853, %v735
      %v855 = vpop.permute.xlu0 %854
      %v857 = vmul.f32 %v851, %v855
      %v858 = vmul.f32 %v852, %v855
      %v859 = vadd.f32 %v843, %v857
      %v860 = vadd.f32 %v844, %v858
      %861 = vrot.lane.b32.xlu0 %v732, 111
      %v862 = vpop.permute.xlu0 %861
      %863 = vrot.lane.b32.xlu0 %v733, 111
      %v864 = vpop.permute.xlu0 %863
      %v865 = vsel %vm558, %v862, %v864
      %v866 = vsel %vm558, %v864, %v862
      %v867 = vmul.f32 %v865, %v561
      %v868 = vmul.f32 %v866, %v562
      %869 = vset.pattern.permute.xlu0 8
      %870 = vperm.xlu0 %869, %v735
      %v871 = vpop.permute.xlu0 %870
      %v873 = vmul.f32 %v867, %v871
      %v874 = vmul.f32 %v868, %v871
      %v875 = vadd.f32 %v859, %v873
      %v876 = vadd.f32 %v860, %v874
      %878 = vset.pattern.permute.xlu0 0
      %879 = vperm.xlu0 %878, %v737
      %v880 = vpop.permute.xlu0 %879
      %v882 = vadd.f32 %v875, %v880
      %v883 = vadd.f32 %v876, %v880
      %v884 = vmax.f32 %v882, 0.0
      %v885 = vmax.f32 %v883, 0.0
      %v886 = vld [vmem:[%s6] sm:$0xff]
      %888 = vset.pattern.permute.xlu0 0
      %889 = vperm.xlu0 %888, %v886
      %v890 = vpop.permute.xlu0 %889
      %v892 = vperm.slane %v884, 0
      %v893 = vperm.slane %v885, 0
      %v894 = vmul.f32 %v890, %v892
      %v895 = vmul.f32 %v890, %v893
      %v896 = vadd.f32 %v894, 0.0
      %v897 = vadd.f32 %v895, 0.0
      %898 = vset.pattern.permute.xlu0 1
      %899 = vperm.xlu0 %898, %v886
      %v900 = vpop.permute.xlu0 %899
      %v902 = vperm.slane %v884, 1
      %v903 = vperm.slane %v885, 1
      %v904 = vmul.f32 %v900, %v902
      %v905 = vmul.f32 %v900, %v903
      %v906 = vadd.f32 %v896, %v904
      %v907 = vadd.f32 %v897, %v905
      %v908 = vld [vmem:[%s7] sm:$0xff]
      %910 = vset.pattern.permute.xlu0 0
      %911 = vperm.xlu0 %910, %v908
      %v912 = vpop.permute.xlu0 %911
      %v914 = vadd.f32 %v906, %v912
      %v915 = vadd.f32 %v907, %v912
      %v916 = vadd.f32 %v914, %v306
      %v917 = vadd.f32 %v915, %v307
      %v918 = vmax.f32 %v916, 0.0
      %v919 = vmax.f32 %v917, 0.0
      %920 = vst [vmem:[%s305] sm:$0xff] %v918
      %921 = vst [vmem:[%s305 + $0x8] sm:$0xff] %v919
      %p922 = scmp.lt.s32.totalorder %s19, 1
      %s923 = scalar_select %p922, %s19, 1
      %s924 = smul.addr %s923, 2
      %s925 = smul.addr %s924, 8
      %s926 = scalar_lea.vmem %s8, %s925
      // Predicated region
      $region53: #{stdd_block_forward.3} parent=51 // pred_check
        %p927 = pneg %p210
      $region54: #{stdd_block_forward.3} parent=51 // pred_check_branch
        %929 = sbr.rel (%p927) target = $region56
      $region55: #{stdd_block_forward.3} parent=51 // pred_region
        _
      $region56: #{stdd_block_forward.3} parent=51 // pred_fallthru
        _
    $region52: #{stdd_block_forward.3} parent=5 // pred_fallthru
      _
    %p930 = scmp.le.s32.totalorder 2, %s14
    // Predicated region
    $region57: #{stdd_block_forward.3} parent=5 // pred_check
      %p931 = pneg %p930
    $region58: #{stdd_block_forward.3} parent=5 // pred_check_branch
      %933 = sbr.rel (%p931) target = $region60
    $region59: #{stdd_block_forward.3} parent=5 // pred_region
      %s934 = ssub.s32 %s14, 2
      // Predicated region
      $region61: #{stdd_block_forward.3} parent=59 // pred_check
        %p935 = pneg %p216
      $region62: #{stdd_block_forward.3} parent=59 // pred_check_branch
        %937 = sbr.rel (%p935) target = $region64
      $region63: #{stdd_block_forward.3} parent=59 // pred_region
        %p938 = scmp.lt.s32.totalorder %s20, 1
        %s939 = scalar_select %p938, %s20, 1
        %s940 = smul.addr %s939, 2
        %s941 = smul.addr %s940, 8
        %s942 = scalar_lea.vmem %s8, %s941
      $region64: #{stdd_block_forward.3} parent=59 // pred_fallthru
        _
    $region60: #{stdd_block_forward.3} parent=5 // pred_fallthru
      _
  $region6: #{stdd_block_forward.3} parent=0 // loop_footer
    %s18 = sadd.s32 1, %s14
  $region7: #{stdd_block_forward.3} parent=0 // loop_footer_branch
    %13 = sbr.rel target = $region3
  $region8: #{stdd_block_forward.3} parent=0 // loop_exit
    _

// kernel: stdd_block_forward.2
$region0: #{stdd_block_forward.2}
  #allocation0 [shape = 'u32[]', space=smem, size = 0x4, offset = 0x4, fixed_abs, tag = 'smem constant byte address 0x4 - core index']
  #allocation1 [shape = 'u32[72,128]{1,0:T(1,128)}', space=vmem, size = 0x9000, scoped, tag = 'internal scratch']
  %s0 = inlined_call_operand.vmem [shape: f32[2,4,256], index: 0, kind: input, shape index: {}]
  %s1 = inlined_call_operand.vmem [shape: f32[9,256], index: 1, kind: input, shape index: {}]
  %s2 = inlined_call_operand.vmem [shape: f32[2,4], index: 2, kind: input, shape index: {}]
  %s3 = inlined_call_operand.vmem [shape: f32[2,1], index: 3, kind: input, shape index: {}]
  %s4 = inlined_call_operand.vmem [shape: f32[3,2,9], index: 4, kind: input, shape index: {}]
  %s5 = inlined_call_operand.vmem [shape: f32[3,2,1], index: 5, kind: input, shape index: {}]
  %s6 = inlined_call_operand.vmem [shape: f32[8,2], index: 6, kind: input, shape index: {}]
  %s7 = inlined_call_operand.vmem [shape: f32[8,1], index: 7, kind: input, shape index: {}]
  %s8 = inlined_call_operand.vmem [shape: f32[8,4], index: 8, kind: input, shape index: {}]
  %s9 = inlined_call_operand.vmem [shape: f32[8,1], index: 9, kind: input, shape index: {}]
  %s10 = inlined_call_operand.vmem [shape: f32[2,8,256], index: 10, kind: output, shape index: {}]
  %s11 = sld [smem:[#allocation0]]
  $region73: #{stdd_block_forward.2} parent=0
    _
  %s13 = ssub.s32 1, %s11
  %s14 = scalar_select 0, %s13, %s11
  loop: start=0, step=1, limit=4
  $region2: #{stdd_block_forward.2} parent=0 // loop_pre_header
    _
  $region3: #{stdd_block_forward.2} parent=0 // loop_header
    %s16 = sphi 0, %s20
    %p17 = scmp.ge.s32.totalorder %s16, 4
    %s26 = sphi 0, %s28
    %s29 = sphi 0, %s26
    %s30 = sphi 0, %s29
    %s46 = sphi 0, %s30
    %s50 = sphi 0, %s50
    %s52 = sphi 0, %s50
    %s53 = sphi 0, %s52
    %s67 = sphi 0, %s53
    %s71 = sphi 0, %s71
    %s73 = sphi 0, %s71
    %s74 = sphi 0, %s73
    %s88 = sphi 0, %s74
    %s92 = sphi 0, %s92
    %s94 = sphi 0, %s92
    %s95 = sphi 0, %s94
    %s109 = sphi 0, %s95
    %s113 = sphi 0, %s113
    %s115 = sphi 0, %s113
    %s116 = sphi 0, %s115
    %s130 = sphi 0, %s116
    %s134 = sphi 0, %s134
    %s136 = sphi 0, %s134
    %s137 = sphi 0, %s136
    %s151 = sphi 0, %s137
    %s155 = sphi 0, %s155
    %s157 = sphi 0, %s155
    %s158 = sphi 0, %s157
    %s172 = sphi 0, %s158
    %s176 = sphi 0, %s176
    %s178 = sphi 0, %s176
    %s179 = sphi 0, %s178
    %s193 = sphi 0, %s179
    %s197 = sphi 0, %s197
    %s199 = sphi 0, %s197
    %s200 = sphi 0, %s199
    %s214 = sphi 0, %s200
    %s218 = sphi 0, %s218
    %s220 = sphi 0, %s218
    %s221 = sphi 0, %s220
    %s235 = sphi 0, %s221
    %s241 = sphi 0, %s243
    %s244 = sphi 0, %s241
    %s245 = sphi 0, %s244
    %s261 = sphi 0, %s245
  $region4: #{stdd_block_forward.2} parent=0 // loop_header_branch
    %19 = sbr.rel (%p17) target = $region8
  $region5: #{stdd_block_forward.2} parent=0 // loop_body
    %s21 = ssub.s32 %s16, 1
    %s22 = ssub.s32 %s16, 2
    %s23 = sadd.s32 %s16, 1
    %s24 = ssub.s32 %s16, %s23
    %p25 = scmp.eq.s32.totalorder %s24, 0
    %s27 = sadd.s32 %s26, 1
    %s28 = scalar_select %p25, %s26, %s27
    %p31 = pneg %p25
    %p32 = scmp.eq.s32.totalorder %s16, 1
    %p33 = por %p31, %p32
    %p34 = scmp.ne.s32.totalorder %s26, %s29
    %p35 = scmp.eq.s32.totalorder %s16, 0
    %p36 = por %p34, %p35
    %p37 = scmp.ne.s32.totalorder %s26, %s29
    %p38 = scmp.eq.s32.totalorder %s21, 1
    %p39 = por %p37, %p38
    %p40 = scmp.ne.s32.totalorder %s29, %s30
    %p41 = scmp.eq.s32.totalorder %s21, 0
    %p42 = por %p40, %p41
    %p43 = scmp.ne.s32.totalorder %s29, %s30
    %p44 = scmp.eq.s32.totalorder %s22, 1
    %p45 = por %p43, %p44
    %p47 = scmp.ne.s32.totalorder %s30, %s46
    %p48 = scmp.eq.s32.totalorder %s22, 0
    %p49 = por %p47, %p48
    %s51 = sadd.s32 %s50, 1
    %p54 = scmp.eq.s32.totalorder %s16, 1
    %p55 = scmp.ne.s32.totalorder %s50, %s52
    %p56 = scmp.eq.s32.totalorder %s16, 0
    %p57 = por %p55, %p56
    %p58 = scmp.ne.s32.totalorder %s50, %s52
    %p59 = scmp.eq.s32.totalorder %s21, 1
    %p60 = por %p58, %p59
    %p61 = scmp.ne.s32.totalorder %s52, %s53
    %p62 = scmp.eq.s32.totalorder %s21, 0
    %p63 = por %p61, %p62
    %p64 = scmp.ne.s32.totalorder %s52, %s53
    %p65 = scmp.eq.s32.totalorder %s22, 1
    %p66 = por %p64, %p65
    %p68 = scmp.ne.s32.totalorder %s53, %s67
    %p69 = scmp.eq.s32.totalorder %s22, 0
    %p70 = por %p68, %p69
    %s72 = sadd.s32 %s71, 1
    %p75 = scmp.eq.s32.totalorder %s16, 1
    %p76 = scmp.ne.s32.totalorder %s71, %s73
    %p77 = scmp.eq.s32.totalorder %s16, 0
    %p78 = por %p76, %p77
    %p79 = scmp.ne.s32.totalorder %s71, %s73
    %p80 = scmp.eq.s32.totalorder %s21, 1
    %p81 = por %p79, %p80
    %p82 = scmp.ne.s32.totalorder %s73, %s74
    %p83 = scmp.eq.s32.totalorder %s21, 0
    %p84 = por %p82, %p83
    %p85 = scmp.ne.s32.totalorder %s73, %s74
    %p86 = scmp.eq.s32.totalorder %s22, 1
    %p87 = por %p85, %p86
    %p89 = scmp.ne.s32.totalorder %s74, %s88
    %p90 = scmp.eq.s32.totalorder %s22, 0
    %p91 = por %p89, %p90
    %s93 = sadd.s32 %s92, 1
    %p96 = scmp.eq.s32.totalorder %s16, 1
    %p97 = scmp.ne.s32.totalorder %s92, %s94
    %p98 = scmp.eq.s32.totalorder %s16, 0
    %p99 = por %p97, %p98
    %p100 = scmp.ne.s32.totalorder %s92, %s94
    %p101 = scmp.eq.s32.totalorder %s21, 1
    %p102 = por %p100, %p101
    %p103 = scmp.ne.s32.totalorder %s94, %s95
    %p104 = scmp.eq.s32.totalorder %s21, 0
    %p105 = por %p103, %p104
    %p106 = scmp.ne.s32.totalorder %s94, %s95
    %p107 = scmp.eq.s32.totalorder %s22, 1
    %p108 = por %p106, %p107
    %p110 = scmp.ne.s32.totalorder %s95, %s109
    %p111 = scmp.eq.s32.totalorder %s22, 0
    %p112 = por %p110, %p111
    %s114 = sadd.s32 %s113, 1
    %p117 = scmp.eq.s32.totalorder %s16, 1
    %p118 = scmp.ne.s32.totalorder %s113, %s115
    %p119 = scmp.eq.s32.totalorder %s16, 0
    %p120 = por %p118, %p119
    %p121 = scmp.ne.s32.totalorder %s113, %s115
    %p122 = scmp.eq.s32.totalorder %s21, 1
    %p123 = por %p121, %p122
    %p124 = scmp.ne.s32.totalorder %s115, %s116
    %p125 = scmp.eq.s32.totalorder %s21, 0
    %p126 = por %p124, %p125
    %p127 = scmp.ne.s32.totalorder %s115, %s116
    %p128 = scmp.eq.s32.totalorder %s22, 1
    %p129 = por %p127, %p128
    %p131 = scmp.ne.s32.totalorder %s116, %s130
    %p132 = scmp.eq.s32.totalorder %s22, 0
    %p133 = por %p131, %p132
    %s135 = sadd.s32 %s134, 1
    %p138 = scmp.eq.s32.totalorder %s16, 1
    %p139 = scmp.ne.s32.totalorder %s134, %s136
    %p140 = scmp.eq.s32.totalorder %s16, 0
    %p141 = por %p139, %p140
    %p142 = scmp.ne.s32.totalorder %s134, %s136
    %p143 = scmp.eq.s32.totalorder %s21, 1
    %p144 = por %p142, %p143
    %p145 = scmp.ne.s32.totalorder %s136, %s137
    %p146 = scmp.eq.s32.totalorder %s21, 0
    %p147 = por %p145, %p146
    %p148 = scmp.ne.s32.totalorder %s136, %s137
    %p149 = scmp.eq.s32.totalorder %s22, 1
    %p150 = por %p148, %p149
    %p152 = scmp.ne.s32.totalorder %s137, %s151
    %p153 = scmp.eq.s32.totalorder %s22, 0
    %p154 = por %p152, %p153
    %s156 = sadd.s32 %s155, 1
    %p159 = scmp.eq.s32.totalorder %s16, 1
    %p160 = scmp.ne.s32.totalorder %s155, %s157
    %p161 = scmp.eq.s32.totalorder %s16, 0
    %p162 = por %p160, %p161
    %p163 = scmp.ne.s32.totalorder %s155, %s157
    %p164 = scmp.eq.s32.totalorder %s21, 1
    %p165 = por %p163, %p164
    %p166 = scmp.ne.s32.totalorder %s157, %s158
    %p167 = scmp.eq.s32.totalorder %s21, 0
    %p168 = por %p166, %p167
    %p169 = scmp.ne.s32.totalorder %s157, %s158
    %p170 = scmp.eq.s32.totalorder %s22, 1
    %p171 = por %p169, %p170
    %p173 = scmp.ne.s32.totalorder %s158, %s172
    %p174 = scmp.eq.s32.totalorder %s22, 0
    %p175 = por %p173, %p174
    %s177 = sadd.s32 %s176, 1
    %p180 = scmp.eq.s32.totalorder %s16, 1
    %p181 = scmp.ne.s32.totalorder %s176, %s178
    %p182 = scmp.eq.s32.totalorder %s16, 0
    %p183 = por %p181, %p182
    %p184 = scmp.ne.s32.totalorder %s176, %s178
    %p185 = scmp.eq.s32.totalorder %s21, 1
    %p186 = por %p184, %p185
    %p187 = scmp.ne.s32.totalorder %s178, %s179
    %p188 = scmp.eq.s32.totalorder %s21, 0
    %p189 = por %p187, %p188
    %p190 = scmp.ne.s32.totalorder %s178, %s179
    %p191 = scmp.eq.s32.totalorder %s22, 1
    %p192 = por %p190, %p191
    %p194 = scmp.ne.s32.totalorder %s179, %s193
    %p195 = scmp.eq.s32.totalorder %s22, 0
    %p196 = por %p194, %p195
    %s198 = sadd.s32 %s197, 1
    %p201 = scmp.eq.s32.totalorder %s16, 1
    %p202 = scmp.ne.s32.totalorder %s197, %s199
    %p203 = scmp.eq.s32.totalorder %s16, 0
    %p204 = por %p202, %p203
    %p205 = scmp.ne.s32.totalorder %s197, %s199
    %p206 = scmp.eq.s32.totalorder %s21, 1
    %p207 = por %p205, %p206
    %p208 = scmp.ne.s32.totalorder %s199, %s200
    %p209 = scmp.eq.s32.totalorder %s21, 0
    %p210 = por %p208, %p209
    %p211 = scmp.ne.s32.totalorder %s199, %s200
    %p212 = scmp.eq.s32.totalorder %s22, 1
    %p213 = por %p211, %p212
    %p215 = scmp.ne.s32.totalorder %s200, %s214
    %p216 = scmp.eq.s32.totalorder %s22, 0
    %p217 = por %p215, %p216
    %s219 = sadd.s32 %s218, 1
    %p222 = scmp.eq.s32.totalorder %s16, 1
    %p223 = scmp.ne.s32.totalorder %s218, %s220
    %p224 = scmp.eq.s32.totalorder %s16, 0
    %p225 = por %p223, %p224
    %p226 = scmp.ne.s32.totalorder %s218, %s220
    %p227 = scmp.eq.s32.totalorder %s21, 1
    %p228 = por %p226, %p227
    %p229 = scmp.ne.s32.totalorder %s220, %s221
    %p230 = scmp.eq.s32.totalorder %s21, 0
    %p231 = por %p229, %p230
    %p232 = scmp.ne.s32.totalorder %s220, %s221
    %p233 = scmp.eq.s32.totalorder %s22, 1
    %p234 = por %p232, %p233
    %p236 = scmp.ne.s32.totalorder %s221, %s235
    %p237 = scmp.eq.s32.totalorder %s22, 0
    %p238 = por %p236, %p237
    %s239 = ssub.s32 %s16, %s23
    %p240 = scmp.eq.s32.totalorder %s239, 0
    %s242 = sadd.s32 %s241, 1
    %s243 = scalar_select %p240, %s241, %s242
    %p246 = pneg %p240
    %p247 = scmp.eq.s32.totalorder %s16, 1
    %p248 = por %p246, %p247
    %p249 = scmp.ne.s32.totalorder %s241, %s244
    %p250 = scmp.eq.s32.totalorder %s16, 0
    %p251 = por %p249, %p250
    %p252 = scmp.ne.s32.totalorder %s241, %s244
    %p253 = scmp.eq.s32.totalorder %s21, 1
    %p254 = por %p252, %p253
    %p255 = scmp.ne.s32.totalorder %s244, %s245
    %p256 = scmp.eq.s32.totalorder %s21, 0
    %p257 = por %p255, %p256
    %p258 = scmp.ne.s32.totalorder %s244, %s245
    %p259 = scmp.eq.s32.totalorder %s22, 1
    %p260 = por %p258, %p259
    %p262 = scmp.ne.s32.totalorder %s245, %s261
    %p263 = scmp.eq.s32.totalorder %s22, 0
    %p264 = por %p262, %p263
    %p265 = scmp.le.s32.totalorder 1, %s16
    %p266 = scmp.lt.s32.totalorder %s16, 3
    %p267 = pnand %p265, %p266
    %p268 = pneg %p267
    // Predicated region
    $region9: #{stdd_block_forward.2} parent=5 // pred_check
      _
    $region10: #{stdd_block_forward.2} parent=5 // pred_check_branch
      %270 = sbr.rel (%p267) target = $region12
    $region11: #{stdd_block_forward.2} parent=5 // pred_region
      %s271 = ssub.s32 %s16, 1
      // Predicated region
      $region13: #{stdd_block_forward.2} parent=11 // pred_check
        %p272 = pneg %p63
      $region14: #{stdd_block_forward.2} parent=11 // pred_check_branch
        %274 = sbr.rel (%p272) target = $region16
      $region15: #{stdd_block_forward.2} parent=11 // pred_region
        _
      $region16: #{stdd_block_forward.2} parent=11 // pred_fallthru
        _
      // Predicated region
      $region17: #{stdd_block_forward.2} parent=11 // pred_check
        %p275 = pneg %p84
      $region18: #{stdd_block_forward.2} parent=11 // pred_check_branch
        %277 = sbr.rel (%p275) target = $region20
      $region19: #{stdd_block_forward.2} parent=11 // pred_region
        _
      $region20: #{stdd_block_forward.2} parent=11 // pred_fallthru
        _
      // Predicated region
      $region21: #{stdd_block_forward.2} parent=11 // pred_check
        %p278 = pneg %p105
      $region22: #{stdd_block_forward.2} parent=11 // pred_check_branch
        %280 = sbr.rel (%p278) target = $region24
      $region23: #{stdd_block_forward.2} parent=11 // pred_region
        _
      $region24: #{stdd_block_forward.2} parent=11 // pred_fallthru
        _
      // Predicated region
      $region25: #{stdd_block_forward.2} parent=11 // pred_check
        %p281 = pneg %p126
      $region26: #{stdd_block_forward.2} parent=11 // pred_check_branch
        %283 = sbr.rel (%p281) target = $region28
      $region27: #{stdd_block_forward.2} parent=11 // pred_region
        _
      $region28: #{stdd_block_forward.2} parent=11 // pred_fallthru
        _
      // Predicated region
      $region29: #{stdd_block_forward.2} parent=11 // pred_check
        %p284 = pneg %p147
      $region30: #{stdd_block_forward.2} parent=11 // pred_check_branch
        %286 = sbr.rel (%p284) target = $region32
      $region31: #{stdd_block_forward.2} parent=11 // pred_region
        _
      $region32: #{stdd_block_forward.2} parent=11 // pred_fallthru
        _
      // Predicated region
      $region33: #{stdd_block_forward.2} parent=11 // pred_check
        %p287 = pneg %p168
      $region34: #{stdd_block_forward.2} parent=11 // pred_check_branch
        %289 = sbr.rel (%p287) target = $region36
      $region35: #{stdd_block_forward.2} parent=11 // pred_region
        _
      $region36: #{stdd_block_forward.2} parent=11 // pred_fallthru
        _
      // Predicated region
      $region37: #{stdd_block_forward.2} parent=11 // pred_check
        %p290 = pneg %p189
      $region38: #{stdd_block_forward.2} parent=11 // pred_check_branch
        %292 = sbr.rel (%p290) target = $region40
      $region39: #{stdd_block_forward.2} parent=11 // pred_region
        _
      $region40: #{stdd_block_forward.2} parent=11 // pred_fallthru
        _
      // Predicated region
      $region41: #{stdd_block_forward.2} parent=11 // pred_check
        %p293 = pneg %p210
      $region42: #{stdd_block_forward.2} parent=11 // pred_check_branch
        %295 = sbr.rel (%p293) target = $region44
      $region43: #{stdd_block_forward.2} parent=11 // pred_region
        _
      $region44: #{stdd_block_forward.2} parent=11 // pred_fallthru
        _
      // Predicated region
      $region45: #{stdd_block_forward.2} parent=11 // pred_check
        %p296 = pneg %p231
      $region46: #{stdd_block_forward.2} parent=11 // pred_check_branch
        %298 = sbr.rel (%p296) target = $region48
      $region47: #{stdd_block_forward.2} parent=11 // pred_region
        _
      $region48: #{stdd_block_forward.2} parent=11 // pred_fallthru
        _
    $region12: #{stdd_block_forward.2} parent=5 // pred_fallthru
      _
    %p299 = scmp.lt.s32.totalorder %s16, 2
    // Predicated region
    $region49: #{stdd_block_forward.2} parent=5 // pred_check
      %p300 = pneg %p299
    $region50: #{stdd_block_forward.2} parent=5 // pred_check_branch
      %302 = sbr.rel (%p300) target = $region52
    $region51: #{stdd_block_forward.2} parent=5 // pred_region
      // Predicated region
      $region53: #{stdd_block_forward.2} parent=51 // pred_check
        %p303 = pneg %p36
      $region54: #{stdd_block_forward.2} parent=51 // pred_check_branch
        %305 = sbr.rel (%p303) target = $region56
      $region55: #{stdd_block_forward.2} parent=51 // pred_region
        %p306 = scmp.lt.s32.totalorder %s16, 1
        %s307 = scalar_select %p306, %s16, 1
        %s308 = smul.addr %s307, 2
        %s309 = smul.addr %s308, 4
        %s310 = scalar_lea.vmem %s0, %s309
      $region56: #{stdd_block_forward.2} parent=51 // pred_fallthru
        _
    $region52: #{stdd_block_forward.2} parent=5 // pred_fallthru
      _
    %p311 = scmp.le.s32.totalorder 1, %s16
    %p312 = scmp.lt.s32.totalorder %s16, 3
    %p313 = pnand %p311, %p312
    %p314 = pneg %p313
    // Predicated region
    $region57: #{stdd_block_forward.2} parent=5 // pred_check
      _
    $region58: #{stdd_block_forward.2} parent=5 // pred_check_branch
      %316 = sbr.rel (%p313) target = $region60
    $region59: #{stdd_block_forward.2} parent=5 // pred_region
      %s317 = ssub.s32 %s16, 1
      %p318 = scmp.lt.s32.totalorder %s21, 1
      %s319 = scalar_select %p318, %s21, 1
      %s320 = smul.addr %s319, 2
      %s321 = smul.addr %s320, 4
      %s322 = scalar_lea.vmem %s0, %s321
      %p323 = pneg %p42
      %p324 = pneg %p39
      %p325 = pneg %p63
      %p326 = pneg %p60
      %p327 = pneg %p84
      %p328 = pneg %p81
      %p329 = pneg %p105
      %p330 = pneg %p102
      %p331 = pneg %p126
      %p332 = pneg %p123
      %p333 = pneg %p147
      %p334 = pneg %p144
      %p335 = pneg %p168
      %p336 = pneg %p165
      %p337 = pneg %p189
      %p338 = pneg %p186
      %p339 = pneg %p210
      %p340 = pneg %p207
      %p341 = pneg %p231
      %p342 = pneg %p228
      %p343 = pneg %p257
      %p344 = pneg %p254
      %p345 = scmp.lt.s32.totalorder %s21, 1
      %s346 = scalar_select %p345, %s21, 1
      %s347 = smul.addr %s346, 2
      %s348 = smul.addr %s347, 8
      %s349 = scalar_lea.vmem %s10, %s348
      %p350 = scmp.lt.s32.totalorder %s21, 1
      %s351 = scalar_select %p350, %s21, 1
      %s352 = smul.addr %s351, 2
      %s353 = smul.addr %s352, 4
      %s354 = scalar_lea.vmem %s0, %s353
      %p355 = scmp.lt.s32.totalorder %s21, 1
      %s356 = scalar_select %p355, %s21, 1
      %s357 = smul.addr %s356, 2
      %s358 = smul.addr %s357, 8
      %s359 = scalar_lea.vmem %s10, %s358
      %v360 = vld [vmem:[%s354] sm:$0xff]
      %v361 = vld [vmem:[%s1] sm:$0xff]
      %v362 = vld [vmem:[%s1 + $0x8] sm:$0xff]
      %v363 = vld [vmem:[%s1 + $0x10] sm:$0x1]
      %v364 = vld [vmem:[%s1 + $0x18] sm:$0x1]
      %v365 = vld [vmem:[%s2] sm:$0x3]
      %367 = vset.pattern.permute.xlu0 0
      %368 = vperm.xlu0 %367, %v365
      %v369 = vpop.permute.xlu0 %368
      %v372 = vperm.slane %v360, 0
      %v373 = vperm.slane %v360, 4
      %v376 = vperm.slane %v372, 0
      %v377 = vperm.slane %v373, 0
      %v378 = vmul.f32 %v369, %v376
      %v379 = vmul.f32 %v369, %v377
      %v380 = vadd.f32 %v378, 0.0
      %v381 = vadd.f32 %v379, 0.0
      %382 = vset.pattern.permute.xlu0 1
      %383 = vperm.xlu0 %382, %v365
      %v384 = vpop.permute.xlu0 %383
      %v386 = vperm.slane %v360, 1
      %v387 = vperm.slane %v360, 5
      %v390 = vperm.slane %v386, 1
      %v391 = vperm.slane %v387, 1
      %v392 = vmul.f32 %v384, %v390
      %v393 = vmul.f32 %v384, %v391
      %v394 = vadd.f32 %v380, %v392
      %v395 = vadd.f32 %v381, %v393
      %396 = vset.pattern.permute.xlu0 2
      %397 = vperm.xlu0 %396, %v365
      %v398 = vpop.permute.xlu0 %397
      %v400 = vperm.slane %v360, 2
      %v401 = vperm.slane %v360, 6
      %v404 = vperm.slane %v400, 2
      %v405 = vperm.slane %v401, 2
      %v406 = vmul.f32 %v398, %v404
      %v407 = vmul.f32 %v398, %v405
      %v408 = vadd.f32 %v394, %v406
      %v409 = vadd.f32 %v395, %v407
      %410 = vset.pattern.permute.xlu0 3
      %411 = vperm.xlu0 %410, %v365
      %v412 = vpop.permute.xlu0 %411
      %v414 = vperm.slane %v360, 3
      %v415 = vperm.slane %v360, 7
      %v418 = vperm.slane %v414, 3
      %v419 = vperm.slane %v415, 3
      %v420 = vmul.f32 %v412, %v418
      %v421 = vmul.f32 %v412, %v419
      %v422 = vadd.f32 %v408, %v420
      %v423 = vadd.f32 %v409, %v421
      %v424 = vld [vmem:[%s3] sm:$0x3]
      %426 = vset.pattern.permute.xlu0 0
      %427 = vperm.xlu0 %426, %v424
      %v428 = vpop.permute.xlu0 %427
      %v430 = vadd.f32 %v422, %v428
      %v431 = vadd.f32 %v423, %v428
      %v432 = vmax.f32 %v430, 0.0
      %v433 = vmax.f32 %v431, 0.0
      %v434 = vld [vmem:[%s4] sm:$0x3]
      %v435 = vld [vmem:[%s5] sm:$0x3]
      %436 = vrot.lane.b32.xlu0 %v432, 17
      %v437 = vpop.permute.xlu0 %436
      %438 = vrot.lane.b32.xlu0 %v433, 17
      %v439 = vpop.permute.xlu0 %438
      %v440 = vlaneseq
      %v441 = vand.u32 %v440, 127
      %vm442 = vcmp.lt.s32.totalorder %v441, 17
      %v443 = vsel %vm442, %v437, %v439
      %v444 = vsel %vm442, %v439, %v437
      %v445 = vperm.slane %v361, 0
      %v446 = vperm.slane %v362, 0
      %v447 = vmul.f32 %v444, %v445
      %v448 = vmul.f32 %v443, %v446
      %450 = vset.pattern.permute.xlu0 0
      %451 = vperm.xlu0 %450, %v434
      %v452 = vpop.permute.xlu0 %451
      %v454 = vmul.f32 %v447, %v452
      %v455 = vmul.f32 %v448, %v452
      %v456 = vadd.f32 %v454, 0.0
      %v457 = vadd.f32 %v455, 0.0
      %458 = vrot.lane.b32.xlu0 %v432, 16
      %v459 = vpop.permute.xlu0 %458
      %460 = vrot.lane.b32.xlu0 %v433, 16
      %v461 = vpop.permute.xlu0 %460
      %vm462 = vcmp.lt.s32.totalorder %v441, 16
      %v463 = vsel %vm462, %v459, %v461
      %v464 = vsel %vm462, %v461, %v459
      %v465 = vperm.slane %v361, 1
      %v466 = vperm.slane %v362, 1
      %v467 = vmul.f32 %v464, %v465
      %v468 = vmul.f32 %v463, %v466
      %469 = vset.pattern.permute.xlu0 1
      %470 = vperm.xlu0 %469, %v434
      %v471 = vpop.permute.xlu0 %470
      %v473 = vmul.f32 %v467, %v471
      %v474 = vmul.f32 %v468, %v471
      %v475 = vadd.f32 %v456, %v473
      %v476 = vadd.f32 %v457, %v474
      %477 = vrot.lane.b32.xlu0 %v432, 15
      %v478 = vpop.permute.xlu0 %477
      %479 = vrot.lane.b32.xlu0 %v433, 15
      %v480 = vpop.permute.xlu0 %479
      %vm481 = vcmp.lt.s32.totalorder %v441, 15
      %v482 = vsel %vm481, %v478, %v480
      %v483 = vsel %vm481, %v480, %v478
      %v484 = vperm.slane %v361, 2
      %v485 = vperm.slane %v362, 2
      %v486 = vmul.f32 %v483, %v484
      %v487 = vmul.f32 %v482, %v485
      %488 = vset.pattern.permute.xlu0 2
      %489 = vperm.xlu0 %488, %v434
      %v490 = vpop.permute.xlu0 %489
      %v492 = vmul.f32 %v486, %v490
      %v493 = vmul.f32 %v487, %v490
      %v494 = vadd.f32 %v475, %v492
      %v495 = vadd.f32 %v476, %v493
      %496 = vrot.lane.b32.xlu0 %v432, 1
      %v497 = vpop.permute.xlu0 %496
      %498 = vrot.lane.b32.xlu0 %v433, 1
      %v499 = vpop.permute.xlu0 %498
      %vm500 = vcmp.lt.s32.totalorder %v441, 1
      %v501 = vsel %vm500, %v497, %v499
      %v502 = vsel %vm500, %v499, %v497
      %v503 = vperm.slane %v361, 3
      %v504 = vperm.slane %v362, 3
      %v505 = vmul.f32 %v502, %v503
      %v506 = vmul.f32 %v501, %v504
      %507 = vset.pattern.permute.xlu0 3
      %508 = vperm.xlu0 %507, %v434
      %v509 = vpop.permute.xlu0 %508
      %v511 = vmul.f32 %v505, %v509
      %v512 = vmul.f32 %v506, %v509
      %v513 = vadd.f32 %v494, %v511
      %v514 = vadd.f32 %v495, %v512
      %v515 = vperm.slane %v361, 4
      %v516 = vperm.slane %v362, 4
      %v517 = vmul.f32 %v432, %v515
      %v518 = vmul.f32 %v433, %v516
      %519 = vset.pattern.permute.xlu0 4
      %520 = vperm.xlu0 %519, %v434
      %v521 = vpop.permute.xlu0 %520
      %v523 = vmul.f32 %v517, %v521
      %v524 = vmul.f32 %v518, %v521
      %v525 = vadd.f32 %v513, %v523
      %v526 = vadd.f32 %v514, %v524
      %527 = vrot.lane.b32.xlu0 %v432, 127
      %v528 = vpop.permute.xlu0 %527
      %529 = vrot.lane.b32.xlu0 %v433, 127
      %v530 = vpop.permute.xlu0 %529
      %vm531 = vcmp.lt.s32.totalorder %v441, 127
      %v532 = vsel %vm531, %v528, %v530
      %v533 = vsel %vm531, %v530, %v528
      %v534 = vperm.slane %v361, 5
      %v535 = vperm.slane %v362, 5
      %v536 = vmul.f32 %v532, %v534
      %v537 = vmul.f32 %v533, %v535
      %538 = vset.pattern.permute.xlu0 5
      %539 = vperm.xlu0 %538, %v434
      %v540 = vpop.permute.xlu0 %539
      %v542 = vmul.f32 %v536, %v540
      %v543 = vmul.f32 %v537, %v540
      %v544 = vadd.f32 %v525, %v542
      %v545 = vadd.f32 %v526, %v543
      %546 = vrot.lane.b32.xlu0 %v432, 113
      %v547 = vpop.permute.xlu0 %546
      %548 = vrot.lane.b32.xlu0 %v433, 113
      %v549 = vpop.permute.xlu0 %548
      %vm550 = vcmp.lt.s32.totalorder %v441, 113
      %v551 = vsel %vm550, %v547, %v549
      %v552 = vsel %vm550, %v549, %v547
      %v553 = vperm.slane %v361, 6
      %v554 = vperm.slane %v362, 6
      %v555 = vmul.f32 %v551, %v553
      %v556 = vmul.f32 %v552, %v554
      %557 = vset.pattern.permute.xlu0 6
      %558 = vperm.xlu0 %557, %v434
      %v559 = vpop.permute.xlu0 %558
      %v561 = vmul.f32 %v555, %v559
      %v562 = vmul.f32 %v556, %v559
      %v563 = vadd.f32 %v544, %v561
      %v564 = vadd.f32 %v545, %v562
      %565 = vrot.lane.b32.xlu0 %v432, 112
      %v566 = vpop.permute.xlu0 %565
      %567 = vrot.lane.b32.xlu0 %v433, 112
      %v568 = vpop.permute.xlu0 %567
      %vm569 = vcmp.lt.s32.totalorder %v441, 112
      %v570 = vsel %vm569, %v566, %v568
      %v571 = vsel %vm569, %v568, %v566
      %v572 = vperm.slane %v361, 7
      %v573 = vperm.slane %v362, 7
      %v574 = vmul.f32 %v570, %v572
      %v575 = vmul.f32 %v571, %v573
      %576 = vset.pattern.permute.xlu0 7
      %577 = vperm.xlu0 %576, %v434
      %v578 = vpop.permute.xlu0 %577
      %v580 = vmul.f32 %v574, %v578
      %v581 = vmul.f32 %v575, %v578
      %v582 = vadd.f32 %v563, %v580
      %v583 = vadd.f32 %v564, %v581
      %584 = vrot.lane.b32.xlu0 %v432, 111
      %v585 = vpop.permute.xlu0 %584
      %586 = vrot.lane.b32.xlu0 %v433, 111
      %v587 = vpop.permute.xlu0 %586
      %vm588 = vcmp.lt.s32.totalorder %v441, 111
      %v589 = vsel %vm588, %v585, %v587
      %v590 = vsel %vm588, %v587, %v585
      %v591 = vperm.slane %v363, 0
      %v592 = vperm.slane %v364, 0
      %v593 = vmul.f32 %v589, %v591
      %v594 = vmul.f32 %v590, %v592
      %595 = vset.pattern.permute.xlu0 8
      %596 = vperm.xlu0 %595, %v434
      %v597 = vpop.permute.xlu0 %596
      %v599 = vmul.f32 %v593, %v597
      %v600 = vmul.f32 %v594, %v597
      %v601 = vadd.f32 %v582, %v599
      %v602 = vadd.f32 %v583, %v600
      %604 = vset.pattern.permute.xlu0 0
      %605 = vperm.xlu0 %604, %v435
      %v606 = vpop.permute.xlu0 %605
      %v608 = vadd.f32 %v601, %v606
      %v609 = vadd.f32 %v602, %v606
      %v610 = vmax.f32 %v608, 0.0
      %v611 = vmax.f32 %v609, 0.0
      %s612 = scalar_lea.vmem %s4, 2
      %v613 = vld [vmem:[%s612] sm:$0x3]
      %s614 = scalar_lea.vmem %s5, 2
      %v615 = vld [vmem:[%s614] sm:$0x3]
      %616 = vrot.lane.b32.xlu0 %v610, 17
      %v617 = vpop.permute.xlu0 %616
      %618 = vrot.lane.b32.xlu0 %v611, 17
      %v619 = vpop.permute.xlu0 %618
      %v620 = vsel %vm442, %v617, %v619
      %v621 = vsel %vm442, %v619, %v617
      %v622 = vmul.f32 %v621, %v445
      %v623 = vmul.f32 %v620, %v446
      %625 = vset.pattern.permute.xlu0 0
      %626 = vperm.xlu0 %625, %v613
      %v627 = vpop.permute.xlu0 %626
      %v629 = vmul.f32 %v622, %v627
      %v630 = vmul.f32 %v623, %v627
      %v631 = vadd.f32 %v629, 0.0
      %v632 = vadd.f32 %v630, 0.0
      %633 = vrot.lane.b32.xlu0 %v610, 16
      %v634 = vpop.permute.xlu0 %633
      %635 = vrot.lane.b32.xlu0 %v611, 16
      %v636 = vpop.permute.xlu0 %635
      %v637 = vsel %vm462, %v634, %v636
      %v638 = vsel %vm462, %v636, %v634
      %v639 = vmul.f32 %v638, %v465
      %v640 = vmul.f32 %v637, %v466
      %641 = vset.pattern.permute.xlu0 1
      %642 = vperm.xlu0 %641, %v613
      %v643 = vpop.permute.xlu0 %642
      %v645 = vmul.f32 %v639, %v643
      %v646 = vmul.f32 %v640, %v643
      %v647 = vadd.f32 %v631, %v645
      %v648 = vadd.f32 %v632, %v646
      %649 = vrot.lane.b32.xlu0 %v610, 15
      %v650 = vpop.permute.xlu0 %649
      %651 = vrot.lane.b32.xlu0 %v611, 15
      %v652 = vpop.permute.xlu0 %651
      %v653 = vsel %vm481, %v650, %v652
      %v654 = vsel %vm481, %v652, %v650
      %v655 = vmul.f32 %v654, %v484
      %v656 = vmul.f32 %v653, %v485
      %657 = vset.pattern.permute.xlu0 2
      %658 = vperm.xlu0 %657, %v613
      %v659 = vpop.permute.xlu0 %658
      %v661 = vmul.f32 %v655, %v659
      %v662 = vmul.f32 %v656, %v659
      %v663 = vadd.f32 %v647, %v661
      %v664 = vadd.f32 %v648, %v662
      %665 = vrot.lane.b32.xlu0 %v610, 1
      %v666 = vpop.permute.xlu0 %665
      %667 = vrot.lane.b32.xlu0 %v611, 1
      %v668 = vpop.permute.xlu0 %667
      %v669 = vsel %vm500, %v666, %v668
      %v670 = vsel %vm500, %v668, %v666
      %v671 = vmul.f32 %v670, %v503
      %v672 = vmul.f32 %v669, %v504
      %673 = vset.pattern.permute.xlu0 3
      %674 = vperm.xlu0 %673, %v613
      %v675 = vpop.permute.xlu0 %674
      %v677 = vmul.f32 %v671, %v675
      %v678 = vmul.f32 %v672, %v675
      %v679 = vadd.f32 %v663, %v677
      %v680 = vadd.f32 %v664, %v678
      %v681 = vmul.f32 %v610, %v515
      %v682 = vmul.f32 %v611, %v516
      %683 = vset.pattern.permute.xlu0 4
      %684 = vperm.xlu0 %683, %v613
      %v685 = vpop.permute.xlu0 %684
      %v687 = vmul.f32 %v681, %v685
      %v688 = vmul.f32 %v682, %v685
      %v689 = vadd.f32 %v679, %v687
      %v690 = vadd.f32 %v680, %v688
      %691 = vrot.lane.b32.xlu0 %v610, 127
      %v692 = vpop.permute.xlu0 %691
      %693 = vrot.lane.b32.xlu0 %v611, 127
      %v694 = vpop.permute.xlu0 %693
      %v695 = vsel %vm531, %v692, %v694
      %v696 = vsel %vm531, %v694, %v692
      %v697 = vmul.f32 %v695, %v534
      %v698 = vmul.f32 %v696, %v535
      %699 = vset.pattern.permute.xlu0 5
      %700 = vperm.xlu0 %699, %v613
      %v701 = vpop.permute.xlu0 %700
      %v703 = vmul.f32 %v697, %v701
      %v704 = vmul.f32 %v698, %v701
      %v705 = vadd.f32 %v689, %v703
      %v706 = vadd.f32 %v690, %v704
      %707 = vrot.lane.b32.xlu0 %v610, 113
      %v708 = vpop.permute.xlu0 %707
      %709 = vrot.lane.b32.xlu0 %v611, 113
      %v710 = vpop.permute.xlu0 %709
      %v711 = vsel %vm550, %v708, %v710
      %v712 = vsel %vm550, %v710, %v708
      %v713 = vmul.f32 %v711, %v553
      %v714 = vmul.f32 %v712, %v554
      %715 = vset.pattern.permute.xlu0 6
      %716 = vperm.xlu0 %715, %v613
      %v717 = vpop.permute.xlu0 %716
      %v719 = vmul.f32 %v713, %v717
      %v720 = vmul.f32 %v714, %v717
      %v721 = vadd.f32 %v705, %v719
      %v722 = vadd.f32 %v706, %v720
      %723 = vrot.lane.b32.xlu0 %v610, 112
      %v724 = vpop.permute.xlu0 %723
      %725 = vrot.lane.b32.xlu0 %v611, 112
      %v726 = vpop.permute.xlu0 %725
      %v727 = vsel %vm569, %v724, %v726
      %v728 = vsel %vm569, %v726, %v724
      %v729 = vmul.f32 %v727, %v572
      %v730 = vmul.f32 %v728, %v573
      %731 = vset.pattern.permute.xlu0 7
      %732 = vperm.xlu0 %731, %v613
      %v733 = vpop.permute.xlu0 %732
      %v735 = vmul.f32 %v729, %v733
      %v736 = vmul.f32 %v730, %v733
      %v737 = vadd.f32 %v721, %v735
      %v738 = vadd.f32 %v722, %v736
      %739 = vrot.lane.b32.xlu0 %v610, 111
      %v740 = vpop.permute.xlu0 %739
      %741 = vrot.lane.b32.xlu0 %v611, 111
      %v742 = vpop.permute.xlu0 %741
      %v743 = vsel %vm588, %v740, %v742
      %v744 = vsel %vm588, %v742, %v740
      %v745 = vmul.f32 %v743, %v591
      %v746 = vmul.f32 %v744, %v592
      %747 = vset.pattern.permute.xlu0 8
      %748 = vperm.xlu0 %747, %v613
      %v749 = vpop.permute.xlu0 %748
      %v751 = vmul.f32 %v745, %v749
      %v752 = vmul.f32 %v746, %v749
      %v753 = vadd.f32 %v737, %v751
      %v754 = vadd.f32 %v738, %v752
      %756 = vset.pattern.permute.xlu0 0
      %757 = vperm.xlu0 %756, %v615
      %v758 = vpop.permute.xlu0 %757
      %v760 = vadd.f32 %v753, %v758
      %v761 = vadd.f32 %v754, %v758
      %v762 = vmax.f32 %v760, 0.0
      %v763 = vmax.f32 %v761, 0.0
      %s764 = scalar_lea.vmem %s4, 4
      %v765 = vld [vmem:[%s764] sm:$0x3]
      %s766 = scalar_lea.vmem %s5, 4
      %v767 = vld [vmem:[%s766] sm:$0x3]
      %768 = vrot.lane.b32.xlu0 %v762, 17
      %v769 = vpop.permute.xlu0 %768
      %770 = vrot.lane.b32.xlu0 %v763, 17
      %v771 = vpop.permute.xlu0 %770
      %v772 = vsel %vm442, %v769, %v771
      %v773 = vsel %vm442, %v771, %v769
      %v774 = vmul.f32 %v773, %v445
      %v775 = vmul.f32 %v772, %v446
      %777 = vset.pattern.permute.xlu0 0
      %778 = vperm.xlu0 %777, %v765
      %v779 = vpop.permute.xlu0 %778
      %v781 = vmul.f32 %v774, %v779
      %v782 = vmul.f32 %v775, %v779
      %v783 = vadd.f32 %v781, 0.0
      %v784 = vadd.f32 %v782, 0.0
      %785 = vrot.lane.b32.xlu0 %v762, 16
      %v786 = vpop.permute.xlu0 %785
      %787 = vrot.lane.b32.xlu0 %v763, 16
      %v788 = vpop.permute.xlu0 %787
      %v789 = vsel %vm462, %v786, %v788
      %v790 = vsel %vm462, %v788, %v786
      %v791 = vmul.f32 %v790, %v465
      %v792 = vmul.f32 %v789, %v466
      %793 = vset.pattern.permute.xlu0 1
      %794 = vperm.xlu0 %793, %v765
      %v795 = vpop.permute.xlu0 %794
      %v797 = vmul.f32 %v791, %v795
      %v798 = vmul.f32 %v792, %v795
      %v799 = vadd.f32 %v783, %v797
      %v800 = vadd.f32 %v784, %v798
      %801 = vrot.lane.b32.xlu0 %v762, 15
      %v802 = vpop.permute.xlu0 %801
      %803 = vrot.lane.b32.xlu0 %v763, 15
      %v804 = vpop.permute.xlu0 %803
      %v805 = vsel %vm481, %v802, %v804
      %v806 = vsel %vm481, %v804, %v802
      %v807 = vmul.f32 %v806, %v484
      %v808 = vmul.f32 %v805, %v485
      %809 = vset.pattern.permute.xlu0 2
      %810 = vperm.xlu0 %809, %v765
      %v811 = vpop.permute.xlu0 %810
      %v813 = vmul.f32 %v807, %v811
      %v814 = vmul.f32 %v808, %v811
      %v815 = vadd.f32 %v799, %v813
      %v816 = vadd.f32 %v800, %v814
      %817 = vrot.lane.b32.xlu0 %v762, 1
      %v818 = vpop.permute.xlu0 %817
      %819 = vrot.lane.b32.xlu0 %v763, 1
      %v820 = vpop.permute.xlu0 %819
      %v821 = vsel %vm500, %v818, %v820
      %v822 = vsel %vm500, %v820, %v818
      %v823 = vmul.f32 %v822, %v503
      %v824 = vmul.f32 %v821, %v504
      %825 = vset.pattern.permute.xlu0 3
      %826 = vperm.xlu0 %825, %v765
      %v827 = vpop.permute.xlu0 %826
      %v829 = vmul.f32 %v823, %v827
      %v830 = vmul.f32 %v824, %v827
      %v831 = vadd.f32 %v815, %v829
      %v832 = vadd.f32 %v816, %v830
      %v833 = vmul.f32 %v762, %v515
      %v834 = vmul.f32 %v763, %v516
      %835 = vset.pattern.permute.xlu0 4
      %836 = vperm.xlu0 %835, %v765
      %v837 = vpop.permute.xlu0 %836
      %v839 = vmul.f32 %v833, %v837
      %v840 = vmul.f32 %v834, %v837
      %v841 = vadd.f32 %v831, %v839
      %v842 = vadd.f32 %v832, %v840
      %843 = vrot.lane.b32.xlu0 %v762, 127
      %v844 = vpop.permute.xlu0 %843
      %845 = vrot.lane.b32.xlu0 %v763, 127
      %v846 = vpop.permute.xlu0 %845
      %v847 = vsel %vm531, %v844, %v846
      %v848 = vsel %vm531, %v846, %v844
      %v849 = vmul.f32 %v847, %v534
      %v850 = vmul.f32 %v848, %v535
      %851 = vset.pattern.permute.xlu0 5
      %852 = vperm.xlu0 %851, %v765
      %v853 = vpop.permute.xlu0 %852
      %v855 = vmul.f32 %v849, %v853
      %v856 = vmul.f32 %v850, %v853
      %v857 = vadd.f32 %v841, %v855
      %v858 = vadd.f32 %v842, %v856
      %859 = vrot.lane.b32.xlu0 %v762, 113
      %v860 = vpop.permute.xlu0 %859
      %861 = vrot.lane.b32.xlu0 %v763, 113
      %v862 = vpop.permute.xlu0 %861
      %v863 = vsel %vm550, %v860, %v862
      %v864 = vsel %vm550, %v862, %v860
      %v865 = vmul.f32 %v863, %v553
      %v866 = vmul.f32 %v864, %v554
      %867 = vset.pattern.permute.xlu0 6
      %868 = vperm.xlu0 %867, %v765
      %v869 = vpop.permute.xlu0 %868
      %v871 = vmul.f32 %v865, %v869
      %v872 = vmul.f32 %v866, %v869
      %v873 = vadd.f32 %v857, %v871
      %v874 = vadd.f32 %v858, %v872
      %875 = vrot.lane.b32.xlu0 %v762, 112
      %v876 = vpop.permute.xlu0 %875
      %877 = vrot.lane.b32.xlu0 %v763, 112
      %v878 = vpop.permute.xlu0 %877
      %v879 = vsel %vm569, %v876, %v878
      %v880 = vsel %vm569, %v878, %v876
      %v881 = vmul.f32 %v879, %v572
      %v882 = vmul.f32 %v880, %v573
      %883 = vset.pattern.permute.xlu0 7
      %884 = vperm.xlu0 %883, %v765
      %v885 = vpop.permute.xlu0 %884
      %v887 = vmul.f32 %v881, %v885
      %v888 = vmul.f32 %v882, %v885
      %v889 = vadd.f32 %v873, %v887
      %v890 = vadd.f32 %v874, %v888
      %891 = vrot.lane.b32.xlu0 %v762, 111
      %v892 = vpop.permute.xlu0 %891
      %893 = vrot.lane.b32.xlu0 %v763, 111
      %v894 = vpop.permute.xlu0 %893
      %v895 = vsel %vm588, %v892, %v894
      %v896 = vsel %vm588, %v894, %v892
      %v897 = vmul.f32 %v895, %v591
      %v898 = vmul.f32 %v896, %v592
      %899 = vset.pattern.permute.xlu0 8
      %900 = vperm.xlu0 %899, %v765
      %v901 = vpop.permute.xlu0 %900
      %v903 = vmul.f32 %v897, %v901
      %v904 = vmul.f32 %v898, %v901
      %v905 = vadd.f32 %v889, %v903
      %v906 = vadd.f32 %v890, %v904
      %908 = vset.pattern.permute.xlu0 0
      %909 = vperm.xlu0 %908, %v767
      %v910 = vpop.permute.xlu0 %909
      %v912 = vadd.f32 %v905, %v910
      %v913 = vadd.f32 %v906, %v910
      %v914 = vmax.f32 %v912, 0.0
      %v915 = vmax.f32 %v913, 0.0
      %v916 = vld [vmem:[%s6] sm:$0xff]
      %918 = vset.pattern.permute.xlu0 0
      %919 = vperm.xlu0 %918, %v916
      %v920 = vpop.permute.xlu0 %919
      %v922 = vperm.slane %v914, 0
      %v923 = vperm.slane %v915, 0
      %v924 = vmul.f32 %v920, %v922
      %v925 = vmul.f32 %v920, %v923
      %v926 = vadd.f32 %v924, 0.0
      %v927 = vadd.f32 %v925, 0.0
      %928 = vset.pattern.permute.xlu0 1
      %929 = vperm.xlu0 %928, %v916
      %v930 = vpop.permute.xlu0 %929
      %v932 = vperm.slane %v914, 1
      %v933 = vperm.slane %v915, 1
      %v934 = vmul.f32 %v930, %v932
      %v935 = vmul.f32 %v930, %v933
      %v936 = vadd.f32 %v926, %v934
      %v937 = vadd.f32 %v927, %v935
      %v938 = vld [vmem:[%s7] sm:$0xff]
      %940 = vset.pattern.permute.xlu0 0
      %941 = vperm.xlu0 %940, %v938
      %v942 = vpop.permute.xlu0 %941
      %v944 = vadd.f32 %v936, %v942
      %v945 = vadd.f32 %v937, %v942
      %v946 = vld [vmem:[%s8] sm:$0xff]
      %948 = vset.pattern.permute.xlu0 0
      %949 = vperm.xlu0 %948, %v946
      %v950 = vpop.permute.xlu0 %949
      %v952 = vmul.f32 %v950, %v376
      %v953 = vmul.f32 %v950, %v377
      %v954 = vadd.f32 %v952, 0.0
      %v955 = vadd.f32 %v953, 0.0
      %956 = vset.pattern.permute.xlu0 1
      %957 = vperm.xlu0 %956, %v946
      %v958 = vpop.permute.xlu0 %957
      %v960 = vmul.f32 %v958, %v390
      %v961 = vmul.f32 %v958, %v391
      %v962 = vadd.f32 %v954, %v960
      %v963 = vadd.f32 %v955, %v961
      %964 = vset.pattern.permute.xlu0 2
      %965 = vperm.xlu0 %964, %v946
      %v966 = vpop.permute.xlu0 %965
      %v968 = vmul.f32 %v966, %v404
      %v969 = vmul.f32 %v966, %v405
      %v970 = vadd.f32 %v962, %v968
      %v971 = vadd.f32 %v963, %v969
      %972 = vset.pattern.permute.xlu0 3
      %973 = vperm.xlu0 %972, %v946
      %v974 = vpop.permute.xlu0 %973
      %v976 = vmul.f32 %v974, %v418
      %v977 = vmul.f32 %v974, %v419
      %v978 = vadd.f32 %v970, %v976
      %v979 = vadd.f32 %v971, %v977
      %v980 = vld [vmem:[%s9] sm:$0xff]
      %982 = vset.pattern.permute.xlu0 0
      %983 = vperm.xlu0 %982, %v980
      %v984 = vpop.permute.xlu0 %983
      %v986 = vadd.f32 %v978, %v984
      %v987 = vadd.f32 %v979, %v984
      %v988 = vadd.f32 %v944, %v986
      %v989 = vadd.f32 %v945, %v987
      %v990 = vmax.f32 %v988, 0.0
      %v991 = vmax.f32 %v989, 0.0
      %992 = vst [vmem:[%s359] sm:$0xff] %v990
      %993 = vst [vmem:[%s359 + $0x8] sm:$0xff] %v991
      %p994 = scmp.lt.s32.totalorder %s21, 1
      %s995 = scalar_select %p994, %s21, 1
      %s996 = smul.addr %s995, 2
      %s997 = smul.addr %s996, 8
      %s998 = scalar_lea.vmem %s10, %s997
      // Predicated region
      $region61: #{stdd_block_forward.2} parent=59 // pred_check
        %p999 = pneg %p254
      $region62: #{stdd_block_forward.2} parent=59 // pred_check_branch
        %1001 = sbr.rel (%p999) target = $region64
      $region63: #{stdd_block_forward.2} parent=59 // pred_region
        _
      $region64: #{stdd_block_forward.2} parent=59 // pred_fallthru
        _
    $region60: #{stdd_block_forward.2} parent=5 // pred_fallthru
      _
    %p1002 = scmp.le.s32.totalorder 2, %s16
    // Predicated region
    $region65: #{stdd_block_forward.2} parent=5 // pred_check
      %p1003 = pneg %p1002
    $region66: #{stdd_block_forward.2} parent=5 // pred_check_branch
      %1005 = sbr.rel (%p1003) target = $region68
    $region67: #{stdd_block_forward.2} parent=5 // pred_region
      %s1006 = ssub.s32 %s16, 2
      // Predicated region
      $region69: #{stdd_block_forward.2} parent=67 // pred_check
        %p1007 = pneg %p260
      $region70: #{stdd_block_forward.2} parent=67 // pred_check_branch
        %1009 = sbr.rel (%p1007) target = $region72
      $region71: #{stdd_block_forward.2} parent=67 // pred_region
        %p1010 = scmp.lt.s32.totalorder %s22, 1
        %s1011 = scalar_select %p1010, %s22, 1
        %s1012 = smul.addr %s1011, 2
        %s1013 = smul.addr %s1012, 8
        %s1014 = scalar_lea.vmem %s10, %s1013
      $region72: #{stdd_block_forward.2} parent=67 // pred_fallthru
        _
    $region68: #{stdd_block_forward.2} parent=5 // pred_fallthru
      _
  $region6: #{stdd_block_forward.2} parent=0 // loop_footer
    %s20 = sadd.s32 1, %s16
  $region7: #{stdd_block_forward.2} parent=0 // loop_footer_branch
    %15 = sbr.rel target = $region3
  $region8: #{stdd_block_forward.2} parent=0 // loop_exit
    _

</llo_original>
